<compile_context>
chip_gen: v5e
topology: v5e:2x2
jax: 0.10.0
libtpu: 0.0.40
codegen_flags: <defaults>
</compile_context>

<pallas_src>
import numpy as np

import jax
import jax.numpy as jnp
from jax.experimental import pallas as pl
from jax.experimental.pallas import tpu as pltpu


def _round_up(n, m):
    return ((n + m - 1) // m) * m


def _cdiv(a, b):
    return -(-a // b)


def _choose_batch_block(B, block_b):
    """Batch block: multiple of 8 (or all of B when B < 8); keep >= 2 grid steps
    when the batch allows it so both v7x TensorCores get work."""
    if B < 8:
        return B
    bb = max(8, min((block_b // 8) * 8, (B // 8) * 8))
    if _cdiv(B, bb) < 2 and B >= 16:
        bb = min(bb, _round_up(_cdiv(B, 2), 8))
    return bb


def _make_cnn_kernel(C1, C2, L, Np, dot_dtype):
    L2, L4 = L // 2, L // 4

    def kernel(x_ref, w1_ref, b1_ref, w2_ref, b2_ref, wfc_ref, bfc_ref, o_ref):
        BB = x_ref.shape[0]
        f32 = jnp.float32

        # ---- batch block -> time-major; batch stays dense on the lane axis ----
        xt = x_ref[...].T                                    # (L, BB)

        # x rows pre-broadcast to (C1, BB); xrows[k] holds x[k-1] (zero time pad).
        zrow = jnp.zeros((C1, BB), f32)
        xrows = [zrow] + [jnp.broadcast_to(xt[t:t + 1, :], (C1, BB))
                          for t in range(L)] + [zrow]

        # conv1 weights / bias as lane-broadcast (C1, BB) slabs (hoisted).
        W0 = jnp.broadcast_to(w1_ref[:, 0:1], (C1, BB))
        W1 = jnp.broadcast_to(w1_ref[:, 1:2], (C1, BB))
        W2 = jnp.broadcast_to(w1_ref[:, 2:3], (C1, BB))
        B1 = jnp.broadcast_to(b1_ref[...], (C1, BB))

        # ---- conv1 (1->C1, k=3, p=1) + ReLU + maxpool1, fused per pooled pos ----
        h1 = []                                              # each (C1, BB)
        for s in range(L2):
            t = 2 * s
            ya = W0 * xrows[t] + W1 * xrows[t + 1] + W2 * xrows[t + 2] + B1
            yb = W0 * xrows[t + 1] + W1 * xrows[t + 2] + W2 * xrows[t + 3] + B1
            # relu(max(a,b)) == max(relu(a), relu(b))
            h1.append(jnp.maximum(jnp.maximum(ya, yb), 0.0))

        zslab = jnp.zeros((C1, BB), f32)
        hpad = [zslab] + h1 + [zslab]                        # hpad[s + 1] == h1[s]

        w2c = w2_ref[...].astype(dot_dtype)                  # (C2, 3*C1)
        B2 = jnp.broadcast_to(b2_ref[...], (C2, BB))         # (C2, BB)
        wfc = wfc_ref[...].astype(dot_dtype)                 # (L4, Np, C2)

        def conv2_at(s):
            # fused 3-tap conv2: K = 3*C1 = 96, batch stays on lanes -> (C2, BB)
            hs = jnp.concatenate([hpad[s], hpad[s + 1], hpad[s + 2]], axis=0)
            y = jnp.dot(w2c, hs.astype(dot_dtype),
                        preferred_element_type=jnp.float32) + B2
            return jnp.maximum(y, 0.0)

        # ---- conv2 + ReLU + maxpool2 + fc, accumulated over pooled positions ----
        acc = None
        for u in range(L4):
            h2_u = jnp.maximum(conv2_at(2 * u), conv2_at(2 * u + 1))    # (C2, BB)
            term = jnp.dot(wfc[u], h2_u.astype(dot_dtype),
                           preferred_element_type=jnp.float32)           # (Np, BB)
            acc = term if acc is None else acc + term
        acc = acc + bfc_ref[...]                                          # (Np, BB)

        # lane-dense (BB, Np=128) output block
        o_ref[...] = acc.T

    return kernel


def cnn_forward(x, params, *, block_b=512, dot_dtype=jnp.float32):
    w1, b1, w2, b2, wfc, bfc = params
    B, L = x.shape
    C1 = w1.shape[0]
    C2 = w2.shape[0]
    N = wfc.shape[0]
    assert L % 4 == 0 and L >= 4, "input_size must be divisible by 4 (two stride-2 pools)"
    L4 = L // 4
    Np = _round_up(N, 128)                       # lane-dense output / FC columns

    BB = _choose_batch_block(B, block_b)
    grid = (_cdiv(B, BB),)

    xf = x.astype(jnp.float32)                   # no transpose / pad of x in the wrapper

    # --- small parameter re-layouts (tiny, one-time) ---
    w1r = w1.reshape(C1, 3).astype(jnp.float32)                                  # (C1, 3)
    b1r = b1.reshape(C1, 1).astype(jnp.float32)
    # conv2 taps fused into one K = 3*C1 contraction, column order k*C1 + c1
    w2r = jnp.transpose(w2, (0, 2, 1)).reshape(C2, 3 * C1).astype(jnp.float32)   # (C2, 96)
    b2r = b2.reshape(C2, 1).astype(jnp.float32)
    # fc weights per pooled position u (PyTorch flatten index = c*L4 + u), N padded to 128
    wfc3 = jnp.transpose(wfc.reshape(N, C2, L4), (2, 0, 1))                      # (L4, N, C2)
    wfc3 = jnp.pad(wfc3, ((0, 0), (0, Np - N), (0, 0))).astype(jnp.float32)
    bfcr = jnp.pad(bfc, (0, Np - N)).reshape(Np, 1).astype(jnp.float32)

    kern = _make_cnn_kernel(C1, C2, L, Np, dot_dtype)

    # rough per-block VMEM footprint (f32) + headroom; capped for v7x's 64 MiB VMEM
    vmem_est = 4 * BB * ((L + 2) * C1 + (L // 2) * C1 + 8 * C2 + 2 * Np + 2 * L) \
        + 4 * (L4 * Np * C2 + 3 * C1 * C2 + C1 * 8 + C2 + Np)
    vmem_limit = int(min(64 << 20, max(32 << 20, 2 * vmem_est)))

    out = pl.pallas_call(
        kern,
        out_shape=jax.ShapeDtypeStruct((B, Np), jnp.float32),
        grid=grid,
        in_specs=[
            pl.BlockSpec((BB, L), lambda i: (i, 0)),             # x, batch-major
            pl.BlockSpec((C1, 3), lambda i: (0, 0)),             # conv1 weights
            pl.BlockSpec((C1, 1), lambda i: (0, 0)),             # conv1 bias
            pl.BlockSpec((C2, 3 * C1), lambda i: (0, 0)),        # conv2 weights (fused taps)
            pl.BlockSpec((C2, 1), lambda i: (0, 0)),             # conv2 bias
            pl.BlockSpec((L4, Np, C2), lambda i: (0, 0, 0)),     # fc weights per pooled pos
            pl.BlockSpec((Np, 1), lambda i: (0, 0)),             # fc bias (padded)
        ],
        out_specs=pl.BlockSpec((BB, Np), lambda i: (i, 0)),
        compiler_params=pltpu.CompilerParams(
            dimension_semantics=("parallel",),
            vmem_limit_bytes=vmem_limit),
    )(xf, w1r, b1r, w2r, b2r, wfc3, bfcr)
    return out[:, :N]


def cnn_reference(x, params):
    """Pure-JAX reference matching the PyTorch forward (NCH layout)."""
    w1, b1, w2, b2, wfc, bfc = params
    B, L = x.shape
    xi = x[:, None, :]                                           # (B, 1, L)
    dn = ('NCH', 'OIH', 'NCH')
    y1 = jax.lax.conv_general_dilated(xi, w1, (1,), [(1, 1)], dimension_numbers=dn)
    y1 = jnp.maximum(y1 + b1[None, :, None], 0.0)
    h1 = y1.reshape(B, w1.shape[0], L // 2, 2).max(-1)
    y2 = jax.lax.conv_general_dilated(h1, w2, (1,), [(1, 1)], dimension_numbers=dn)
    y2 = jnp.maximum(y2 + b2[None, :, None], 0.0)
    h2 = y2.reshape(B, w2.shape[0], L // 4, 2).max(-1)
    return h2.reshape(B, -1) @ wfc.T + bfc[None, :]


def init_params(key, input_size, num_classes):
    C1, C2 = 32, 64
    k1, k2, k3, k4, k5, k6 = jax.random.split(key, 6)
    w1 = 0.2 * jax.random.normal(k1, (C1, 1, 3), jnp.float32)
    b1 = 0.1 * jax.random.normal(k2, (C1,), jnp.float32)
    w2 = 0.1 * jax.random.normal(k3, (C2, C1, 3), jnp.float32)
    b2 = 0.1 * jax.random.normal(k4, (C2,), jnp.float32)
    wfc = 0.05 * jax.random.normal(k5, (num_classes, C2 * (input_size // 4)), jnp.float32)
    bfc = 0.1 * jax.random.normal(k6, (num_classes,), jnp.float32)
    return (w1, b1, w2, b2, wfc, bfc)


if __name__ == "__main__":
    input_size = 32
    num_classes = 10

    key = jax.random.PRNGKey(0)
    kx, kp = jax.random.split(key)
    params = init_params(kp, input_size, num_classes)

    # Small case (single tiny block) and a larger case that exercises the batched
    # grid (2 blocks of 128 on the batch axis -> feeds both v7x TensorCores).
    for B in (2, 256):
        x = jax.random.normal(jax.random.fold_in(kx, B), (B, input_size), jnp.float32)
        ref = cnn_reference(x, params)

        out = jax.block_until_ready(cnn_forward(x, params))
        np.testing.assert_allclose(np.asarray(out), np.asarray(ref),
                                   atol=1e-4, rtol=1e-4)

        # bf16 MXU operands (f32 accumulation) — the v5e-safe subset of the bf16 plan.
        out_bf = jax.block_until_ready(cnn_forward(x, params, dot_dtype=jnp.bfloat16))
        np.testing.assert_allclose(np.asarray(out_bf), np.asarray(ref),
                                   atol=3e-2, rtol=3e-2)

    print("KERNEL_OK")
</pallas_src>

<mosaic_0001>
module attributes {stable_mosaic.version = 11 : i64} {
  func.func @kernel(%arg0: i32, %arg1: memref<2x32xf32, #tpu.memory_space<vmem>>, %arg2: memref<32x3xf32, #tpu.memory_space<vmem>>, %arg3: memref<32x1xf32, #tpu.memory_space<vmem>>, %arg4: memref<64x96xf32, #tpu.memory_space<vmem>>, %arg5: memref<64x1xf32, #tpu.memory_space<vmem>>, %arg6: memref<8x128x64xf32, #tpu.memory_space<vmem>>, %arg7: memref<128x1xf32, #tpu.memory_space<vmem>>, %arg8: memref<2x128xf32, #tpu.memory_space<vmem>>) attributes {dimension_semantics = [#tpu.dimension_semantics<parallel>], iteration_bounds = array<i64: 1>, scalar_prefetch = 0 : i64, scratch_operands = 0 : i64, tpu.core_type = #tpu.core_type<tc>, window_params = [{transform_indices = @transform_0, window_bounds = array<i64: 2, 32>}, {pipeline_mode = #tpu.pipeline_mode<synchronous>, transform_indices = @transform_1, window_bounds = array<i64: 32, 3>}, {pipeline_mode = #tpu.pipeline_mode<synchronous>, transform_indices = @transform_2, window_bounds = array<i64: 32, 1>}, {pipeline_mode = #tpu.pipeline_mode<synchronous>, transform_indices = @transform_3, window_bounds = array<i64: 64, 96>}, {pipeline_mode = #tpu.pipeline_mode<synchronous>, transform_indices = @transform_4, window_bounds = array<i64: 64, 1>}, {pipeline_mode = #tpu.pipeline_mode<synchronous>, transform_indices = @transform_5, window_bounds = array<i64: 8, 128, 64>}, {pipeline_mode = #tpu.pipeline_mode<synchronous>, transform_indices = @transform_6, window_bounds = array<i64: 128, 1>}, {transform_indices = @transform_7, window_bounds = array<i64: 2, 128>}]} {
    %c0 = arith.constant 0 : index
    %c0_0 = arith.constant 0 : index
    %0 = vector.load %arg1[%c0, %c0_0] : memref<2x32xf32, #tpu.memory_space<vmem>>, vector<2x32xf32>
    %1 = tpu.transpose %0, [1, 0] : vector<2x32xf32> -> vector<32x2xf32>
    %cst = arith.constant 0.000000e+00 : f32
    %2 = vector.broadcast %cst : f32 to vector<32x2xf32>
    %3 = vector.extract_strided_slice %1 {offsets = [0, 0], sizes = [1, 2], strides = [1, 1]} : vector<32x2xf32> to vector<1x2xf32>
    %4 = vector.shape_cast %3 : vector<1x2xf32> to vector<1x2xf32>
    %5 = vector.broadcast %4 : vector<1x2xf32> to vector<32x2xf32>
    %6 = vector.extract_strided_slice %1 {offsets = [1, 0], sizes = [1, 2], strides = [1, 1]} : vector<32x2xf32> to vector<1x2xf32>
    %7 = vector.shape_cast %6 : vector<1x2xf32> to vector<1x2xf32>
    %8 = vector.broadcast %7 : vector<1x2xf32> to vector<32x2xf32>
    %9 = vector.extract_strided_slice %1 {offsets = [2, 0], sizes = [1, 2], strides = [1, 1]} : vector<32x2xf32> to vector<1x2xf32>
    %10 = vector.shape_cast %9 : vector<1x2xf32> to vector<1x2xf32>
    %11 = vector.broadcast %10 : vector<1x2xf32> to vector<32x2xf32>
    %12 = vector.extract_strided_slice %1 {offsets = [3, 0], sizes = [1, 2], strides = [1, 1]} : vector<32x2xf32> to vector<1x2xf32>
    %13 = vector.shape_cast %12 : vector<1x2xf32> to vector<1x2xf32>
    %14 = vector.broadcast %13 : vector<1x2xf32> to vector<32x2xf32>
    %15 = vector.extract_strided_slice %1 {offsets = [4, 0], sizes = [1, 2], strides = [1, 1]} : vector<32x2xf32> to vector<1x2xf32>
    %16 = vector.shape_cast %15 : vector<1x2xf32> to vector<1x2xf32>
    %17 = vector.broadcast %16 : vector<1x2xf32> to vector<32x2xf32>
    %18 = vector.extract_strided_slice %1 {offsets = [5, 0], sizes = [1, 2], strides = [1, 1]} : vector<32x2xf32> to vector<1x2xf32>
    %19 = vector.shape_cast %18 : vector<1x2xf32> to vector<1x2xf32>
    %20 = vector.broadcast %19 : vector<1x2xf32> to vector<32x2xf32>
    %21 = vector.extract_strided_slice %1 {offsets = [6, 0], sizes = [1, 2], strides = [1, 1]} : vector<32x2xf32> to vector<1x2xf32>
    %22 = vector.shape_cast %21 : vector<1x2xf32> to vector<1x2xf32>
    %23 = vector.broadcast %22 : vector<1x2xf32> to vector<32x2xf32>
    %24 = vector.extract_strided_slice %1 {offsets = [7, 0], sizes = [1, 2], strides = [1, 1]} : vector<32x2xf32> to vector<1x2xf32>
    %25 = vector.shape_cast %24 : vector<1x2xf32> to vector<1x2xf32>
    %26 = vector.broadcast %25 : vector<1x2xf32> to vector<32x2xf32>
    %27 = vector.extract_strided_slice %1 {offsets = [8, 0], sizes = [1, 2], strides = [1, 1]} : vector<32x2xf32> to vector<1x2xf32>
    %28 = vector.shape_cast %27 : vector<1x2xf32> to vector<1x2xf32>
    %29 = vector.broadcast %28 : vector<1x2xf32> to vector<32x2xf32>
    %30 = vector.extract_strided_slice %1 {offsets = [9, 0], sizes = [1, 2], strides = [1, 1]} : vector<32x2xf32> to vector<1x2xf32>
    %31 = vector.shape_cast %30 : vector<1x2xf32> to vector<1x2xf32>
    %32 = vector.broadcast %31 : vector<1x2xf32> to vector<32x2xf32>
    %33 = vector.extract_strided_slice %1 {offsets = [10, 0], sizes = [1, 2], strides = [1, 1]} : vector<32x2xf32> to vector<1x2xf32>
    %34 = vector.shape_cast %33 : vector<1x2xf32> to vector<1x2xf32>
    %35 = vector.broadcast %34 : vector<1x2xf32> to vector<32x2xf32>
    %36 = vector.extract_strided_slice %1 {offsets = [11, 0], sizes = [1, 2], strides = [1, 1]} : vector<32x2xf32> to vector<1x2xf32>
    %37 = vector.shape_cast %36 : vector<1x2xf32> to vector<1x2xf32>
    %38 = vector.broadcast %37 : vector<1x2xf32> to vector<32x2xf32>
    %39 = vector.extract_strided_slice %1 {offsets = [12, 0], sizes = [1, 2], strides = [1, 1]} : vector<32x2xf32> to vector<1x2xf32>
    %40 = vector.shape_cast %39 : vector<1x2xf32> to vector<1x2xf32>
    %41 = vector.broadcast %40 : vector<1x2xf32> to vector<32x2xf32>
    %42 = vector.extract_strided_slice %1 {offsets = [13, 0], sizes = [1, 2], strides = [1, 1]} : vector<32x2xf32> to vector<1x2xf32>
    %43 = vector.shape_cast %42 : vector<1x2xf32> to vector<1x2xf32>
    %44 = vector.broadcast %43 : vector<1x2xf32> to vector<32x2xf32>
    %45 = vector.extract_strided_slice %1 {offsets = [14, 0], sizes = [1, 2], strides = [1, 1]} : vector<32x2xf32> to vector<1x2xf32>
    %46 = vector.shape_cast %45 : vector<1x2xf32> to vector<1x2xf32>
    %47 = vector.broadcast %46 : vector<1x2xf32> to vector<32x2xf32>
    %48 = vector.extract_strided_slice %1 {offsets = [15, 0], sizes = [1, 2], strides = [1, 1]} : vector<32x2xf32> to vector<1x2xf32>
    %49 = vector.shape_cast %48 : vector<1x2xf32> to vector<1x2xf32>
    %50 = vector.broadcast %49 : vector<1x2xf32> to vector<32x2xf32>
    %51 = vector.extract_strided_slice %1 {offsets = [16, 0], sizes = [1, 2], strides = [1, 1]} : vector<32x2xf32> to vector<1x2xf32>
    %52 = vector.shape_cast %51 : vector<1x2xf32> to vector<1x2xf32>
    %53 = vector.broadcast %52 : vector<1x2xf32> to vector<32x2xf32>
    %54 = vector.extract_strided_slice %1 {offsets = [17, 0], sizes = [1, 2], strides = [1, 1]} : vector<32x2xf32> to vector<1x2xf32>
    %55 = vector.shape_cast %54 : vector<1x2xf32> to vector<1x2xf32>
    %56 = vector.broadcast %55 : vector<1x2xf32> to vector<32x2xf32>
    %57 = vector.extract_strided_slice %1 {offsets = [18, 0], sizes = [1, 2], strides = [1, 1]} : vector<32x2xf32> to vector<1x2xf32>
    %58 = vector.shape_cast %57 : vector<1x2xf32> to vector<1x2xf32>
    %59 = vector.broadcast %58 : vector<1x2xf32> to vector<32x2xf32>
    %60 = vector.extract_strided_slice %1 {offsets = [19, 0], sizes = [1, 2], strides = [1, 1]} : vector<32x2xf32> to vector<1x2xf32>
    %61 = vector.shape_cast %60 : vector<1x2xf32> to vector<1x2xf32>
    %62 = vector.broadcast %61 : vector<1x2xf32> to vector<32x2xf32>
    %63 = vector.extract_strided_slice %1 {offsets = [20, 0], sizes = [1, 2], strides = [1, 1]} : vector<32x2xf32> to vector<1x2xf32>
    %64 = vector.shape_cast %63 : vector<1x2xf32> to vector<1x2xf32>
    %65 = vector.broadcast %64 : vector<1x2xf32> to vector<32x2xf32>
    %66 = vector.extract_strided_slice %1 {offsets = [21, 0], sizes = [1, 2], strides = [1, 1]} : vector<32x2xf32> to vector<1x2xf32>
    %67 = vector.shape_cast %66 : vector<1x2xf32> to vector<1x2xf32>
    %68 = vector.broadcast %67 : vector<1x2xf32> to vector<32x2xf32>
    %69 = vector.extract_strided_slice %1 {offsets = [22, 0], sizes = [1, 2], strides = [1, 1]} : vector<32x2xf32> to vector<1x2xf32>
    %70 = vector.shape_cast %69 : vector<1x2xf32> to vector<1x2xf32>
    %71 = vector.broadcast %70 : vector<1x2xf32> to vector<32x2xf32>
    %72 = vector.extract_strided_slice %1 {offsets = [23, 0], sizes = [1, 2], strides = [1, 1]} : vector<32x2xf32> to vector<1x2xf32>
    %73 = vector.shape_cast %72 : vector<1x2xf32> to vector<1x2xf32>
    %74 = vector.broadcast %73 : vector<1x2xf32> to vector<32x2xf32>
    %75 = vector.extract_strided_slice %1 {offsets = [24, 0], sizes = [1, 2], strides = [1, 1]} : vector<32x2xf32> to vector<1x2xf32>
    %76 = vector.shape_cast %75 : vector<1x2xf32> to vector<1x2xf32>
    %77 = vector.broadcast %76 : vector<1x2xf32> to vector<32x2xf32>
    %78 = vector.extract_strided_slice %1 {offsets = [25, 0], sizes = [1, 2], strides = [1, 1]} : vector<32x2xf32> to vector<1x2xf32>
    %79 = vector.shape_cast %78 : vector<1x2xf32> to vector<1x2xf32>
    %80 = vector.broadcast %79 : vector<1x2xf32> to vector<32x2xf32>
    %81 = vector.extract_strided_slice %1 {offsets = [26, 0], sizes = [1, 2], strides = [1, 1]} : vector<32x2xf32> to vector<1x2xf32>
    %82 = vector.shape_cast %81 : vector<1x2xf32> to vector<1x2xf32>
    %83 = vector.broadcast %82 : vector<1x2xf32> to vector<32x2xf32>
    %84 = vector.extract_strided_slice %1 {offsets = [27, 0], sizes = [1, 2], strides = [1, 1]} : vector<32x2xf32> to vector<1x2xf32>
    %85 = vector.shape_cast %84 : vector<1x2xf32> to vector<1x2xf32>
    %86 = vector.broadcast %85 : vector<1x2xf32> to vector<32x2xf32>
    %87 = vector.extract_strided_slice %1 {offsets = [28, 0], sizes = [1, 2], strides = [1, 1]} : vector<32x2xf32> to vector<1x2xf32>
    %88 = vector.shape_cast %87 : vector<1x2xf32> to vector<1x2xf32>
    %89 = vector.broadcast %88 : vector<1x2xf32> to vector<32x2xf32>
    %90 = vector.extract_strided_slice %1 {offsets = [29, 0], sizes = [1, 2], strides = [1, 1]} : vector<32x2xf32> to vector<1x2xf32>
    %91 = vector.shape_cast %90 : vector<1x2xf32> to vector<1x2xf32>
    %92 = vector.broadcast %91 : vector<1x2xf32> to vector<32x2xf32>
    %93 = vector.extract_strided_slice %1 {offsets = [30, 0], sizes = [1, 2], strides = [1, 1]} : vector<32x2xf32> to vector<1x2xf32>
    %94 = vector.shape_cast %93 : vector<1x2xf32> to vector<1x2xf32>
    %95 = vector.broadcast %94 : vector<1x2xf32> to vector<32x2xf32>
    %96 = vector.extract_strided_slice %1 {offsets = [31, 0], sizes = [1, 2], strides = [1, 1]} : vector<32x2xf32> to vector<1x2xf32>
    %97 = vector.shape_cast %96 : vector<1x2xf32> to vector<1x2xf32>
    %98 = vector.broadcast %97 : vector<1x2xf32> to vector<32x2xf32>
    %c0_1 = arith.constant 0 : index
    %c0_2 = arith.constant 0 : index
    %99 = vector.load %arg2[%c0_1, %c0_2] : memref<32x3xf32, #tpu.memory_space<vmem>>, vector<32x1xf32>
    %100 = vector.shape_cast %99 : vector<32x1xf32> to vector<32x1xf32>
    %101 = vector.broadcast %100 : vector<32x1xf32> to vector<32x2xf32>
    %c0_3 = arith.constant 0 : index
    %c1 = arith.constant 1 : index
    %102 = vector.load %arg2[%c0_3, %c1] : memref<32x3xf32, #tpu.memory_space<vmem>>, vector<32x1xf32>
    %103 = vector.shape_cast %102 : vector<32x1xf32> to vector<32x1xf32>
    %104 = vector.broadcast %103 : vector<32x1xf32> to vector<32x2xf32>
    %c0_4 = arith.constant 0 : index
    %c2 = arith.constant 2 : index
    %105 = vector.load %arg2[%c0_4, %c2] : memref<32x3xf32, #tpu.memory_space<vmem>>, vector<32x1xf32>
    %106 = vector.shape_cast %105 : vector<32x1xf32> to vector<32x1xf32>
    %107 = vector.broadcast %106 : vector<32x1xf32> to vector<32x2xf32>
    %c0_5 = arith.constant 0 : index
    %c0_6 = arith.constant 0 : index
    %108 = vector.load %arg3[%c0_5, %c0_6] : memref<32x1xf32, #tpu.memory_space<vmem>>, vector<32x1xf32>
    %109 = vector.shape_cast %108 : vector<32x1xf32> to vector<32x1xf32>
    %110 = vector.broadcast %109 : vector<32x1xf32> to vector<32x2xf32>
    %111 = arith.mulf %101, %2 : vector<32x2xf32>
    %112 = arith.mulf %104, %5 : vector<32x2xf32>
    %113 = arith.addf %111, %112 : vector<32x2xf32>
    %114 = arith.mulf %107, %8 : vector<32x2xf32>
    %115 = arith.addf %113, %114 : vector<32x2xf32>
    %116 = arith.addf %115, %110 : vector<32x2xf32>
    %117 = arith.mulf %101, %5 : vector<32x2xf32>
    %118 = arith.mulf %104, %8 : vector<32x2xf32>
    %119 = arith.addf %117, %118 : vector<32x2xf32>
    %120 = arith.mulf %107, %11 : vector<32x2xf32>
    %121 = arith.addf %119, %120 : vector<32x2xf32>
    %122 = arith.addf %121, %110 : vector<32x2xf32>
    %123 = arith.maximumf %116, %122 : vector<32x2xf32>
    %cst_7 = arith.constant 0.000000e+00 : f32
    %124 = vector.broadcast %cst_7 : f32 to vector<32x2xf32>
    %125 = arith.maximumf %123, %124 : vector<32x2xf32>
    %126 = arith.mulf %101, %8 : vector<32x2xf32>
    %127 = arith.mulf %104, %11 : vector<32x2xf32>
    %128 = arith.addf %126, %127 : vector<32x2xf32>
    %129 = arith.mulf %107, %14 : vector<32x2xf32>
    %130 = arith.addf %128, %129 : vector<32x2xf32>
    %131 = arith.addf %130, %110 : vector<32x2xf32>
    %132 = arith.mulf %101, %11 : vector<32x2xf32>
    %133 = arith.mulf %104, %14 : vector<32x2xf32>
    %134 = arith.addf %132, %133 : vector<32x2xf32>
    %135 = arith.mulf %107, %17 : vector<32x2xf32>
    %136 = arith.addf %134, %135 : vector<32x2xf32>
    %137 = arith.addf %136, %110 : vector<32x2xf32>
    %138 = arith.maximumf %131, %137 : vector<32x2xf32>
    %cst_8 = arith.constant 0.000000e+00 : f32
    %139 = vector.broadcast %cst_8 : f32 to vector<32x2xf32>
    %140 = arith.maximumf %138, %139 : vector<32x2xf32>
    %141 = arith.mulf %101, %14 : vector<32x2xf32>
    %142 = arith.mulf %104, %17 : vector<32x2xf32>
    %143 = arith.addf %141, %142 : vector<32x2xf32>
    %144 = arith.mulf %107, %20 : vector<32x2xf32>
    %145 = arith.addf %143, %144 : vector<32x2xf32>
    %146 = arith.addf %145, %110 : vector<32x2xf32>
    %147 = arith.mulf %101, %17 : vector<32x2xf32>
    %148 = arith.mulf %104, %20 : vector<32x2xf32>
    %149 = arith.addf %147, %148 : vector<32x2xf32>
    %150 = arith.mulf %107, %23 : vector<32x2xf32>
    %151 = arith.addf %149, %150 : vector<32x2xf32>
    %152 = arith.addf %151, %110 : vector<32x2xf32>
    %153 = arith.maximumf %146, %152 : vector<32x2xf32>
    %cst_9 = arith.constant 0.000000e+00 : f32
    %154 = vector.broadcast %cst_9 : f32 to vector<32x2xf32>
    %155 = arith.maximumf %153, %154 : vector<32x2xf32>
    %156 = arith.mulf %101, %20 : vector<32x2xf32>
    %157 = arith.mulf %104, %23 : vector<32x2xf32>
    %158 = arith.addf %156, %157 : vector<32x2xf32>
    %159 = arith.mulf %107, %26 : vector<32x2xf32>
    %160 = arith.addf %158, %159 : vector<32x2xf32>
    %161 = arith.addf %160, %110 : vector<32x2xf32>
    %162 = arith.mulf %101, %23 : vector<32x2xf32>
    %163 = arith.mulf %104, %26 : vector<32x2xf32>
    %164 = arith.addf %162, %163 : vector<32x2xf32>
    %165 = arith.mulf %107, %29 : vector<32x2xf32>
    %166 = arith.addf %164, %165 : vector<32x2xf32>
    %167 = arith.addf %166, %110 : vector<32x2xf32>
    %168 = arith.maximumf %161, %167 : vector<32x2xf32>
    %cst_10 = arith.constant 0.000000e+00 : f32
    %169 = vector.broadcast %cst_10 : f32 to vector<32x2xf32>
    %170 = arith.maximumf %168, %169 : vector<32x2xf32>
    %171 = arith.mulf %101, %26 : vector<32x2xf32>
    %172 = arith.mulf %104, %29 : vector<32x2xf32>
    %173 = arith.addf %171, %172 : vector<32x2xf32>
    %174 = arith.mulf %107, %32 : vector<32x2xf32>
    %175 = arith.addf %173, %174 : vector<32x2xf32>
    %176 = arith.addf %175, %110 : vector<32x2xf32>
    %177 = arith.mulf %101, %29 : vector<32x2xf32>
    %178 = arith.mulf %104, %32 : vector<32x2xf32>
    %179 = arith.addf %177, %178 : vector<32x2xf32>
    %180 = arith.mulf %107, %35 : vector<32x2xf32>
    %181 = arith.addf %179, %180 : vector<32x2xf32>
    %182 = arith.addf %181, %110 : vector<32x2xf32>
    %183 = arith.maximumf %176, %182 : vector<32x2xf32>
    %cst_11 = arith.constant 0.000000e+00 : f32
    %184 = vector.broadcast %cst_11 : f32 to vector<32x2xf32>
    %185 = arith.maximumf %183, %184 : vector<32x2xf32>
    %186 = arith.mulf %101, %32 : vector<32x2xf32>
    %187 = arith.mulf %104, %35 : vector<32x2xf32>
    %188 = arith.addf %186, %187 : vector<32x2xf32>
    %189 = arith.mulf %107, %38 : vector<32x2xf32>
    %190 = arith.addf %188, %189 : vector<32x2xf32>
    %191 = arith.addf %190, %110 : vector<32x2xf32>
    %192 = arith.mulf %101, %35 : vector<32x2xf32>
    %193 = arith.mulf %104, %38 : vector<32x2xf32>
    %194 = arith.addf %192, %193 : vector<32x2xf32>
    %195 = arith.mulf %107, %41 : vector<32x2xf32>
    %196 = arith.addf %194, %195 : vector<32x2xf32>
    %197 = arith.addf %196, %110 : vector<32x2xf32>
    %198 = arith.maximumf %191, %197 : vector<32x2xf32>
    %cst_12 = arith.constant 0.000000e+00 : f32
    %199 = vector.broadcast %cst_12 : f32 to vector<32x2xf32>
    %200 = arith.maximumf %198, %199 : vector<32x2xf32>
    %201 = arith.mulf %101, %38 : vector<32x2xf32>
    %202 = arith.mulf %104, %41 : vector<32x2xf32>
    %203 = arith.addf %201, %202 : vector<32x2xf32>
    %204 = arith.mulf %107, %44 : vector<32x2xf32>
    %205 = arith.addf %203, %204 : vector<32x2xf32>
    %206 = arith.addf %205, %110 : vector<32x2xf32>
    %207 = arith.mulf %101, %41 : vector<32x2xf32>
    %208 = arith.mulf %104, %44 : vector<32x2xf32>
    %209 = arith.addf %207, %208 : vector<32x2xf32>
    %210 = arith.mulf %107, %47 : vector<32x2xf32>
    %211 = arith.addf %209, %210 : vector<32x2xf32>
    %212 = arith.addf %211, %110 : vector<32x2xf32>
    %213 = arith.maximumf %206, %212 : vector<32x2xf32>
    %cst_13 = arith.constant 0.000000e+00 : f32
    %214 = vector.broadcast %cst_13 : f32 to vector<32x2xf32>
    %215 = arith.maximumf %213, %214 : vector<32x2xf32>
    %216 = arith.mulf %101, %44 : vector<32x2xf32>
    %217 = arith.mulf %104, %47 : vector<32x2xf32>
    %218 = arith.addf %216, %217 : vector<32x2xf32>
    %219 = arith.mulf %107, %50 : vector<32x2xf32>
    %220 = arith.addf %218, %219 : vector<32x2xf32>
    %221 = arith.addf %220, %110 : vector<32x2xf32>
    %222 = arith.mulf %101, %47 : vector<32x2xf32>
    %223 = arith.mulf %104, %50 : vector<32x2xf32>
    %224 = arith.addf %222, %223 : vector<32x2xf32>
    %225 = arith.mulf %107, %53 : vector<32x2xf32>
    %226 = arith.addf %224, %225 : vector<32x2xf32>
    %227 = arith.addf %226, %110 : vector<32x2xf32>
    %228 = arith.maximumf %221, %227 : vector<32x2xf32>
    %cst_14 = arith.constant 0.000000e+00 : f32
    %229 = vector.broadcast %cst_14 : f32 to vector<32x2xf32>
    %230 = arith.maximumf %228, %229 : vector<32x2xf32>
    %231 = arith.mulf %101, %50 : vector<32x2xf32>
    %232 = arith.mulf %104, %53 : vector<32x2xf32>
    %233 = arith.addf %231, %232 : vector<32x2xf32>
    %234 = arith.mulf %107, %56 : vector<32x2xf32>
    %235 = arith.addf %233, %234 : vector<32x2xf32>
    %236 = arith.addf %235, %110 : vector<32x2xf32>
    %237 = arith.mulf %101, %53 : vector<32x2xf32>
    %238 = arith.mulf %104, %56 : vector<32x2xf32>
    %239 = arith.addf %237, %238 : vector<32x2xf32>
    %240 = arith.mulf %107, %59 : vector<32x2xf32>
    %241 = arith.addf %239, %240 : vector<32x2xf32>
    %242 = arith.addf %241, %110 : vector<32x2xf32>
    %243 = arith.maximumf %236, %242 : vector<32x2xf32>
    %cst_15 = arith.constant 0.000000e+00 : f32
    %244 = vector.broadcast %cst_15 : f32 to vector<32x2xf32>
    %245 = arith.maximumf %243, %244 : vector<32x2xf32>
    %246 = arith.mulf %101, %56 : vector<32x2xf32>
    %247 = arith.mulf %104, %59 : vector<32x2xf32>
    %248 = arith.addf %246, %247 : vector<32x2xf32>
    %249 = arith.mulf %107, %62 : vector<32x2xf32>
    %250 = arith.addf %248, %249 : vector<32x2xf32>
    %251 = arith.addf %250, %110 : vector<32x2xf32>
    %252 = arith.mulf %101, %59 : vector<32x2xf32>
    %253 = arith.mulf %104, %62 : vector<32x2xf32>
    %254 = arith.addf %252, %253 : vector<32x2xf32>
    %255 = arith.mulf %107, %65 : vector<32x2xf32>
    %256 = arith.addf %254, %255 : vector<32x2xf32>
    %257 = arith.addf %256, %110 : vector<32x2xf32>
    %258 = arith.maximumf %251, %257 : vector<32x2xf32>
    %cst_16 = arith.constant 0.000000e+00 : f32
    %259 = vector.broadcast %cst_16 : f32 to vector<32x2xf32>
    %260 = arith.maximumf %258, %259 : vector<32x2xf32>
    %261 = arith.mulf %101, %62 : vector<32x2xf32>
    %262 = arith.mulf %104, %65 : vector<32x2xf32>
    %263 = arith.addf %261, %262 : vector<32x2xf32>
    %264 = arith.mulf %107, %68 : vector<32x2xf32>
    %265 = arith.addf %263, %264 : vector<32x2xf32>
    %266 = arith.addf %265, %110 : vector<32x2xf32>
    %267 = arith.mulf %101, %65 : vector<32x2xf32>
    %268 = arith.mulf %104, %68 : vector<32x2xf32>
    %269 = arith.addf %267, %268 : vector<32x2xf32>
    %270 = arith.mulf %107, %71 : vector<32x2xf32>
    %271 = arith.addf %269, %270 : vector<32x2xf32>
    %272 = arith.addf %271, %110 : vector<32x2xf32>
    %273 = arith.maximumf %266, %272 : vector<32x2xf32>
    %cst_17 = arith.constant 0.000000e+00 : f32
    %274 = vector.broadcast %cst_17 : f32 to vector<32x2xf32>
    %275 = arith.maximumf %273, %274 : vector<32x2xf32>
    %276 = arith.mulf %101, %68 : vector<32x2xf32>
    %277 = arith.mulf %104, %71 : vector<32x2xf32>
    %278 = arith.addf %276, %277 : vector<32x2xf32>
    %279 = arith.mulf %107, %74 : vector<32x2xf32>
    %280 = arith.addf %278, %279 : vector<32x2xf32>
    %281 = arith.addf %280, %110 : vector<32x2xf32>
    %282 = arith.mulf %101, %71 : vector<32x2xf32>
    %283 = arith.mulf %104, %74 : vector<32x2xf32>
    %284 = arith.addf %282, %283 : vector<32x2xf32>
    %285 = arith.mulf %107, %77 : vector<32x2xf32>
    %286 = arith.addf %284, %285 : vector<32x2xf32>
    %287 = arith.addf %286, %110 : vector<32x2xf32>
    %288 = arith.maximumf %281, %287 : vector<32x2xf32>
    %cst_18 = arith.constant 0.000000e+00 : f32
    %289 = vector.broadcast %cst_18 : f32 to vector<32x2xf32>
    %290 = arith.maximumf %288, %289 : vector<32x2xf32>
    %291 = arith.mulf %101, %74 : vector<32x2xf32>
    %292 = arith.mulf %104, %77 : vector<32x2xf32>
    %293 = arith.addf %291, %292 : vector<32x2xf32>
    %294 = arith.mulf %107, %80 : vector<32x2xf32>
    %295 = arith.addf %293, %294 : vector<32x2xf32>
    %296 = arith.addf %295, %110 : vector<32x2xf32>
    %297 = arith.mulf %101, %77 : vector<32x2xf32>
    %298 = arith.mulf %104, %80 : vector<32x2xf32>
    %299 = arith.addf %297, %298 : vector<32x2xf32>
    %300 = arith.mulf %107, %83 : vector<32x2xf32>
    %301 = arith.addf %299, %300 : vector<32x2xf32>
    %302 = arith.addf %301, %110 : vector<32x2xf32>
    %303 = arith.maximumf %296, %302 : vector<32x2xf32>
    %cst_19 = arith.constant 0.000000e+00 : f32
    %304 = vector.broadcast %cst_19 : f32 to vector<32x2xf32>
    %305 = arith.maximumf %303, %304 : vector<32x2xf32>
    %306 = arith.mulf %101, %80 : vector<32x2xf32>
    %307 = arith.mulf %104, %83 : vector<32x2xf32>
    %308 = arith.addf %306, %307 : vector<32x2xf32>
    %309 = arith.mulf %107, %86 : vector<32x2xf32>
    %310 = arith.addf %308, %309 : vector<32x2xf32>
    %311 = arith.addf %310, %110 : vector<32x2xf32>
    %312 = arith.mulf %101, %83 : vector<32x2xf32>
    %313 = arith.mulf %104, %86 : vector<32x2xf32>
    %314 = arith.addf %312, %313 : vector<32x2xf32>
    %315 = arith.mulf %107, %89 : vector<32x2xf32>
    %316 = arith.addf %314, %315 : vector<32x2xf32>
    %317 = arith.addf %316, %110 : vector<32x2xf32>
    %318 = arith.maximumf %311, %317 : vector<32x2xf32>
    %cst_20 = arith.constant 0.000000e+00 : f32
    %319 = vector.broadcast %cst_20 : f32 to vector<32x2xf32>
    %320 = arith.maximumf %318, %319 : vector<32x2xf32>
    %321 = arith.mulf %101, %86 : vector<32x2xf32>
    %322 = arith.mulf %104, %89 : vector<32x2xf32>
    %323 = arith.addf %321, %322 : vector<32x2xf32>
    %324 = arith.mulf %107, %92 : vector<32x2xf32>
    %325 = arith.addf %323, %324 : vector<32x2xf32>
    %326 = arith.addf %325, %110 : vector<32x2xf32>
    %327 = arith.mulf %101, %89 : vector<32x2xf32>
    %328 = arith.mulf %104, %92 : vector<32x2xf32>
    %329 = arith.addf %327, %328 : vector<32x2xf32>
    %330 = arith.mulf %107, %95 : vector<32x2xf32>
    %331 = arith.addf %329, %330 : vector<32x2xf32>
    %332 = arith.addf %331, %110 : vector<32x2xf32>
    %333 = arith.maximumf %326, %332 : vector<32x2xf32>
    %cst_21 = arith.constant 0.000000e+00 : f32
    %334 = vector.broadcast %cst_21 : f32 to vector<32x2xf32>
    %335 = arith.maximumf %333, %334 : vector<32x2xf32>
    %336 = arith.mulf %101, %92 : vector<32x2xf32>
    %337 = arith.mulf %104, %95 : vector<32x2xf32>
    %338 = arith.addf %336, %337 : vector<32x2xf32>
    %339 = arith.mulf %107, %98 : vector<32x2xf32>
    %340 = arith.addf %338, %339 : vector<32x2xf32>
    %341 = arith.addf %340, %110 : vector<32x2xf32>
    %342 = arith.mulf %101, %95 : vector<32x2xf32>
    %343 = arith.mulf %104, %98 : vector<32x2xf32>
    %344 = arith.addf %342, %343 : vector<32x2xf32>
    %345 = arith.mulf %107, %2 : vector<32x2xf32>
    %346 = arith.addf %344, %345 : vector<32x2xf32>
    %347 = arith.addf %346, %110 : vector<32x2xf32>
    %348 = arith.maximumf %341, %347 : vector<32x2xf32>
    %cst_22 = arith.constant 0.000000e+00 : f32
    %349 = vector.broadcast %cst_22 : f32 to vector<32x2xf32>
    %350 = arith.maximumf %348, %349 : vector<32x2xf32>
    %cst_23 = arith.constant 0.000000e+00 : f32
    %351 = vector.broadcast %cst_23 : f32 to vector<32x2xf32>
    %c0_24 = arith.constant 0 : index
    %c0_25 = arith.constant 0 : index
    %352 = vector.load %arg4[%c0_24, %c0_25] : memref<64x96xf32, #tpu.memory_space<vmem>>, vector<64x96xf32>
    %c0_26 = arith.constant 0 : index
    %c0_27 = arith.constant 0 : index
    %353 = vector.load %arg5[%c0_26, %c0_27] : memref<64x1xf32, #tpu.memory_space<vmem>>, vector<64x1xf32>
    %354 = vector.shape_cast %353 : vector<64x1xf32> to vector<64x1xf32>
    %355 = vector.broadcast %354 : vector<64x1xf32> to vector<64x2xf32>
    %c0_28 = arith.constant 0 : index
    %c0_29 = arith.constant 0 : index
    %c0_30 = arith.constant 0 : index
    %356 = vector.load %arg6[%c0_28, %c0_29, %c0_30] : memref<8x128x64xf32, #tpu.memory_space<vmem>>, vector<8x128x64xf32>
    %357 = tpu.concatenate %351, %125, %140 in 0 : vector<32x2xf32>, vector<32x2xf32>, vector<32x2xf32> -> vector<96x2xf32>
    %cst_31 = arith.constant dense<0.000000e+00> : vector<64x2xf32>
    %358 = tpu.matmul %352, %357, %cst_31 {dimension_numbers = #tpu.dot_dimension_numbers<[1], [0], [0], [1], [0, 0, 1, 1], [], []>} : vector<64x96xf32>, vector<96x2xf32>, vector<64x2xf32> -> vector<64x2xf32>
    %359 = arith.addf %358, %355 : vector<64x2xf32>
    %cst_32 = arith.constant 0.000000e+00 : f32
    %360 = vector.broadcast %cst_32 : f32 to vector<64x2xf32>
    %361 = arith.maximumf %359, %360 : vector<64x2xf32>
    %362 = tpu.concatenate %125, %140, %155 in 0 : vector<32x2xf32>, vector<32x2xf32>, vector<32x2xf32> -> vector<96x2xf32>
    %cst_33 = arith.constant dense<0.000000e+00> : vector<64x2xf32>
    %363 = tpu.matmul %352, %362, %cst_33 {dimension_numbers = #tpu.dot_dimension_numbers<[1], [0], [0], [1], [0, 0, 1, 1], [], []>} : vector<64x96xf32>, vector<96x2xf32>, vector<64x2xf32> -> vector<64x2xf32>
    %364 = arith.addf %363, %355 : vector<64x2xf32>
    %cst_34 = arith.constant 0.000000e+00 : f32
    %365 = vector.broadcast %cst_34 : f32 to vector<64x2xf32>
    %366 = arith.maximumf %364, %365 : vector<64x2xf32>
    %367 = arith.maximumf %361, %366 : vector<64x2xf32>
    %368 = vector.extract_strided_slice %356 {offsets = [0, 0, 0], sizes = [1, 128, 64], strides = [1, 1, 1]} : vector<8x128x64xf32> to vector<1x128x64xf32>
    %369 = vector.shape_cast %368 : vector<1x128x64xf32> to vector<128x64xf32>
    %cst_35 = arith.constant dense<0.000000e+00> : vector<128x2xf32>
    %370 = tpu.matmul %369, %367, %cst_35 {dimension_numbers = #tpu.dot_dimension_numbers<[1], [0], [0], [1], [0, 0, 1, 1], [], []>} : vector<128x64xf32>, vector<64x2xf32>, vector<128x2xf32> -> vector<128x2xf32>
    %371 = tpu.concatenate %140, %155, %170 in 0 : vector<32x2xf32>, vector<32x2xf32>, vector<32x2xf32> -> vector<96x2xf32>
    %cst_36 = arith.constant dense<0.000000e+00> : vector<64x2xf32>
    %372 = tpu.matmul %352, %371, %cst_36 {dimension_numbers = #tpu.dot_dimension_numbers<[1], [0], [0], [1], [0, 0, 1, 1], [], []>} : vector<64x96xf32>, vector<96x2xf32>, vector<64x2xf32> -> vector<64x2xf32>
    %373 = arith.addf %372, %355 : vector<64x2xf32>
    %cst_37 = arith.constant 0.000000e+00 : f32
    %374 = vector.broadcast %cst_37 : f32 to vector<64x2xf32>
    %375 = arith.maximumf %373, %374 : vector<64x2xf32>
    %376 = tpu.concatenate %155, %170, %185 in 0 : vector<32x2xf32>, vector<32x2xf32>, vector<32x2xf32> -> vector<96x2xf32>
    %cst_38 = arith.constant dense<0.000000e+00> : vector<64x2xf32>
    %377 = tpu.matmul %352, %376, %cst_38 {dimension_numbers = #tpu.dot_dimension_numbers<[1], [0], [0], [1], [0, 0, 1, 1], [], []>} : vector<64x96xf32>, vector<96x2xf32>, vector<64x2xf32> -> vector<64x2xf32>
    %378 = arith.addf %377, %355 : vector<64x2xf32>
    %cst_39 = arith.constant 0.000000e+00 : f32
    %379 = vector.broadcast %cst_39 : f32 to vector<64x2xf32>
    %380 = arith.maximumf %378, %379 : vector<64x2xf32>
    %381 = arith.maximumf %375, %380 : vector<64x2xf32>
    %382 = vector.extract_strided_slice %356 {offsets = [1, 0, 0], sizes = [1, 128, 64], strides = [1, 1, 1]} : vector<8x128x64xf32> to vector<1x128x64xf32>
    %383 = vector.shape_cast %382 : vector<1x128x64xf32> to vector<128x64xf32>
    %cst_40 = arith.constant dense<0.000000e+00> : vector<128x2xf32>
    %384 = tpu.matmul %383, %381, %cst_40 {dimension_numbers = #tpu.dot_dimension_numbers<[1], [0], [0], [1], [0, 0, 1, 1], [], []>} : vector<128x64xf32>, vector<64x2xf32>, vector<128x2xf32> -> vector<128x2xf32>
    %385 = arith.addf %370, %384 : vector<128x2xf32>
    %386 = tpu.concatenate %170, %185, %200 in 0 : vector<32x2xf32>, vector<32x2xf32>, vector<32x2xf32> -> vector<96x2xf32>
    %cst_41 = arith.constant dense<0.000000e+00> : vector<64x2xf32>
    %387 = tpu.matmul %352, %386, %cst_41 {dimension_numbers = #tpu.dot_dimension_numbers<[1], [0], [0], [1], [0, 0, 1, 1], [], []>} : vector<64x96xf32>, vector<96x2xf32>, vector<64x2xf32> -> vector<64x2xf32>
    %388 = arith.addf %387, %355 : vector<64x2xf32>
    %cst_42 = arith.constant 0.000000e+00 : f32
    %389 = vector.broadcast %cst_42 : f32 to vector<64x2xf32>
    %390 = arith.maximumf %388, %389 : vector<64x2xf32>
    %391 = tpu.concatenate %185, %200, %215 in 0 : vector<32x2xf32>, vector<32x2xf32>, vector<32x2xf32> -> vector<96x2xf32>
    %cst_43 = arith.constant dense<0.000000e+00> : vector<64x2xf32>
    %392 = tpu.matmul %352, %391, %cst_43 {dimension_numbers = #tpu.dot_dimension_numbers<[1], [0], [0], [1], [0, 0, 1, 1], [], []>} : vector<64x96xf32>, vector<96x2xf32>, vector<64x2xf32> -> vector<64x2xf32>
    %393 = arith.addf %392, %355 : vector<64x2xf32>
    %cst_44 = arith.constant 0.000000e+00 : f32
    %394 = vector.broadcast %cst_44 : f32 to vector<64x2xf32>
    %395 = arith.maximumf %393, %394 : vector<64x2xf32>
    %396 = arith.maximumf %390, %395 : vector<64x2xf32>
    %397 = vector.extract_strided_slice %356 {offsets = [2, 0, 0], sizes = [1, 128, 64], strides = [1, 1, 1]} : vector<8x128x64xf32> to vector<1x128x64xf32>
    %398 = vector.shape_cast %397 : vector<1x128x64xf32> to vector<128x64xf32>
    %cst_45 = arith.constant dense<0.000000e+00> : vector<128x2xf32>
    %399 = tpu.matmul %398, %396, %cst_45 {dimension_numbers = #tpu.dot_dimension_numbers<[1], [0], [0], [1], [0, 0, 1, 1], [], []>} : vector<128x64xf32>, vector<64x2xf32>, vector<128x2xf32> -> vector<128x2xf32>
    %400 = arith.addf %385, %399 : vector<128x2xf32>
    %401 = tpu.concatenate %200, %215, %230 in 0 : vector<32x2xf32>, vector<32x2xf32>, vector<32x2xf32> -> vector<96x2xf32>
    %cst_46 = arith.constant dense<0.000000e+00> : vector<64x2xf32>
    %402 = tpu.matmul %352, %401, %cst_46 {dimension_numbers = #tpu.dot_dimension_numbers<[1], [0], [0], [1], [0, 0, 1, 1], [], []>} : vector<64x96xf32>, vector<96x2xf32>, vector<64x2xf32> -> vector<64x2xf32>
    %403 = arith.addf %402, %355 : vector<64x2xf32>
    %cst_47 = arith.constant 0.000000e+00 : f32
    %404 = vector.broadcast %cst_47 : f32 to vector<64x2xf32>
    %405 = arith.maximumf %403, %404 : vector<64x2xf32>
    %406 = tpu.concatenate %215, %230, %245 in 0 : vector<32x2xf32>, vector<32x2xf32>, vector<32x2xf32> -> vector<96x2xf32>
    %cst_48 = arith.constant dense<0.000000e+00> : vector<64x2xf32>
    %407 = tpu.matmul %352, %406, %cst_48 {dimension_numbers = #tpu.dot_dimension_numbers<[1], [0], [0], [1], [0, 0, 1, 1], [], []>} : vector<64x96xf32>, vector<96x2xf32>, vector<64x2xf32> -> vector<64x2xf32>
    %408 = arith.addf %407, %355 : vector<64x2xf32>
    %cst_49 = arith.constant 0.000000e+00 : f32
    %409 = vector.broadcast %cst_49 : f32 to vector<64x2xf32>
    %410 = arith.maximumf %408, %409 : vector<64x2xf32>
    %411 = arith.maximumf %405, %410 : vector<64x2xf32>
    %412 = vector.extract_strided_slice %356 {offsets = [3, 0, 0], sizes = [1, 128, 64], strides = [1, 1, 1]} : vector<8x128x64xf32> to vector<1x128x64xf32>
    %413 = vector.shape_cast %412 : vector<1x128x64xf32> to vector<128x64xf32>
    %cst_50 = arith.constant dense<0.000000e+00> : vector<128x2xf32>
    %414 = tpu.matmul %413, %411, %cst_50 {dimension_numbers = #tpu.dot_dimension_numbers<[1], [0], [0], [1], [0, 0, 1, 1], [], []>} : vector<128x64xf32>, vector<64x2xf32>, vector<128x2xf32> -> vector<128x2xf32>
    %415 = arith.addf %400, %414 : vector<128x2xf32>
    %416 = tpu.concatenate %230, %245, %260 in 0 : vector<32x2xf32>, vector<32x2xf32>, vector<32x2xf32> -> vector<96x2xf32>
    %cst_51 = arith.constant dense<0.000000e+00> : vector<64x2xf32>
    %417 = tpu.matmul %352, %416, %cst_51 {dimension_numbers = #tpu.dot_dimension_numbers<[1], [0], [0], [1], [0, 0, 1, 1], [], []>} : vector<64x96xf32>, vector<96x2xf32>, vector<64x2xf32> -> vector<64x2xf32>
    %418 = arith.addf %417, %355 : vector<64x2xf32>
    %cst_52 = arith.constant 0.000000e+00 : f32
    %419 = vector.broadcast %cst_52 : f32 to vector<64x2xf32>
    %420 = arith.maximumf %418, %419 : vector<64x2xf32>
    %421 = tpu.concatenate %245, %260, %275 in 0 : vector<32x2xf32>, vector<32x2xf32>, vector<32x2xf32> -> vector<96x2xf32>
    %cst_53 = arith.constant dense<0.000000e+00> : vector<64x2xf32>
    %422 = tpu.matmul %352, %421, %cst_53 {dimension_numbers = #tpu.dot_dimension_numbers<[1], [0], [0], [1], [0, 0, 1, 1], [], []>} : vector<64x96xf32>, vector<96x2xf32>, vector<64x2xf32> -> vector<64x2xf32>
    %423 = arith.addf %422, %355 : vector<64x2xf32>
    %cst_54 = arith.constant 0.000000e+00 : f32
    %424 = vector.broadcast %cst_54 : f32 to vector<64x2xf32>
    %425 = arith.maximumf %423, %424 : vector<64x2xf32>
    %426 = arith.maximumf %420, %425 : vector<64x2xf32>
    %427 = vector.extract_strided_slice %356 {offsets = [4, 0, 0], sizes = [1, 128, 64], strides = [1, 1, 1]} : vector<8x128x64xf32> to vector<1x128x64xf32>
    %428 = vector.shape_cast %427 : vector<1x128x64xf32> to vector<128x64xf32>
    %cst_55 = arith.constant dense<0.000000e+00> : vector<128x2xf32>
    %429 = tpu.matmul %428, %426, %cst_55 {dimension_numbers = #tpu.dot_dimension_numbers<[1], [0], [0], [1], [0, 0, 1, 1], [], []>} : vector<128x64xf32>, vector<64x2xf32>, vector<128x2xf32> -> vector<128x2xf32>
    %430 = arith.addf %415, %429 : vector<128x2xf32>
    %431 = tpu.concatenate %260, %275, %290 in 0 : vector<32x2xf32>, vector<32x2xf32>, vector<32x2xf32> -> vector<96x2xf32>
    %cst_56 = arith.constant dense<0.000000e+00> : vector<64x2xf32>
    %432 = tpu.matmul %352, %431, %cst_56 {dimension_numbers = #tpu.dot_dimension_numbers<[1], [0], [0], [1], [0, 0, 1, 1], [], []>} : vector<64x96xf32>, vector<96x2xf32>, vector<64x2xf32> -> vector<64x2xf32>
    %433 = arith.addf %432, %355 : vector<64x2xf32>
    %cst_57 = arith.constant 0.000000e+00 : f32
    %434 = vector.broadcast %cst_57 : f32 to vector<64x2xf32>
    %435 = arith.maximumf %433, %434 : vector<64x2xf32>
    %436 = tpu.concatenate %275, %290, %305 in 0 : vector<32x2xf32>, vector<32x2xf32>, vector<32x2xf32> -> vector<96x2xf32>
    %cst_58 = arith.constant dense<0.000000e+00> : vector<64x2xf32>
    %437 = tpu.matmul %352, %436, %cst_58 {dimension_numbers = #tpu.dot_dimension_numbers<[1], [0], [0], [1], [0, 0, 1, 1], [], []>} : vector<64x96xf32>, vector<96x2xf32>, vector<64x2xf32> -> vector<64x2xf32>
    %438 = arith.addf %437, %355 : vector<64x2xf32>
    %cst_59 = arith.constant 0.000000e+00 : f32
    %439 = vector.broadcast %cst_59 : f32 to vector<64x2xf32>
    %440 = arith.maximumf %438, %439 : vector<64x2xf32>
    %441 = arith.maximumf %435, %440 : vector<64x2xf32>
    %442 = vector.extract_strided_slice %356 {offsets = [5, 0, 0], sizes = [1, 128, 64], strides = [1, 1, 1]} : vector<8x128x64xf32> to vector<1x128x64xf32>
    %443 = vector.shape_cast %442 : vector<1x128x64xf32> to vector<128x64xf32>
    %cst_60 = arith.constant dense<0.000000e+00> : vector<128x2xf32>
    %444 = tpu.matmul %443, %441, %cst_60 {dimension_numbers = #tpu.dot_dimension_numbers<[1], [0], [0], [1], [0, 0, 1, 1], [], []>} : vector<128x64xf32>, vector<64x2xf32>, vector<128x2xf32> -> vector<128x2xf32>
    %445 = arith.addf %430, %444 : vector<128x2xf32>
    %446 = tpu.concatenate %290, %305, %320 in 0 : vector<32x2xf32>, vector<32x2xf32>, vector<32x2xf32> -> vector<96x2xf32>
    %cst_61 = arith.constant dense<0.000000e+00> : vector<64x2xf32>
    %447 = tpu.matmul %352, %446, %cst_61 {dimension_numbers = #tpu.dot_dimension_numbers<[1], [0], [0], [1], [0, 0, 1, 1], [], []>} : vector<64x96xf32>, vector<96x2xf32>, vector<64x2xf32> -> vector<64x2xf32>
    %448 = arith.addf %447, %355 : vector<64x2xf32>
    %cst_62 = arith.constant 0.000000e+00 : f32
    %449 = vector.broadcast %cst_62 : f32 to vector<64x2xf32>
    %450 = arith.maximumf %448, %449 : vector<64x2xf32>
    %451 = tpu.concatenate %305, %320, %335 in 0 : vector<32x2xf32>, vector<32x2xf32>, vector<32x2xf32> -> vector<96x2xf32>
    %cst_63 = arith.constant dense<0.000000e+00> : vector<64x2xf32>
    %452 = tpu.matmul %352, %451, %cst_63 {dimension_numbers = #tpu.dot_dimension_numbers<[1], [0], [0], [1], [0, 0, 1, 1], [], []>} : vector<64x96xf32>, vector<96x2xf32>, vector<64x2xf32> -> vector<64x2xf32>
    %453 = arith.addf %452, %355 : vector<64x2xf32>
    %cst_64 = arith.constant 0.000000e+00 : f32
    %454 = vector.broadcast %cst_64 : f32 to vector<64x2xf32>
    %455 = arith.maximumf %453, %454 : vector<64x2xf32>
    %456 = arith.maximumf %450, %455 : vector<64x2xf32>
    %457 = vector.extract_strided_slice %356 {offsets = [6, 0, 0], sizes = [1, 128, 64], strides = [1, 1, 1]} : vector<8x128x64xf32> to vector<1x128x64xf32>
    %458 = vector.shape_cast %457 : vector<1x128x64xf32> to vector<128x64xf32>
    %cst_65 = arith.constant dense<0.000000e+00> : vector<128x2xf32>
    %459 = tpu.matmul %458, %456, %cst_65 {dimension_numbers = #tpu.dot_dimension_numbers<[1], [0], [0], [1], [0, 0, 1, 1], [], []>} : vector<128x64xf32>, vector<64x2xf32>, vector<128x2xf32> -> vector<128x2xf32>
    %460 = arith.addf %445, %459 : vector<128x2xf32>
    %461 = tpu.concatenate %320, %335, %350 in 0 : vector<32x2xf32>, vector<32x2xf32>, vector<32x2xf32> -> vector<96x2xf32>
    %cst_66 = arith.constant dense<0.000000e+00> : vector<64x2xf32>
    %462 = tpu.matmul %352, %461, %cst_66 {dimension_numbers = #tpu.dot_dimension_numbers<[1], [0], [0], [1], [0, 0, 1, 1], [], []>} : vector<64x96xf32>, vector<96x2xf32>, vector<64x2xf32> -> vector<64x2xf32>
    %463 = arith.addf %462, %355 : vector<64x2xf32>
    %cst_67 = arith.constant 0.000000e+00 : f32
    %464 = vector.broadcast %cst_67 : f32 to vector<64x2xf32>
    %465 = arith.maximumf %463, %464 : vector<64x2xf32>
    %466 = tpu.concatenate %335, %350, %351 in 0 : vector<32x2xf32>, vector<32x2xf32>, vector<32x2xf32> -> vector<96x2xf32>
    %cst_68 = arith.constant dense<0.000000e+00> : vector<64x2xf32>
    %467 = tpu.matmul %352, %466, %cst_68 {dimension_numbers = #tpu.dot_dimension_numbers<[1], [0], [0], [1], [0, 0, 1, 1], [], []>} : vector<64x96xf32>, vector<96x2xf32>, vector<64x2xf32> -> vector<64x2xf32>
    %468 = arith.addf %467, %355 : vector<64x2xf32>
    %cst_69 = arith.constant 0.000000e+00 : f32
    %469 = vector.broadcast %cst_69 : f32 to vector<64x2xf32>
    %470 = arith.maximumf %468, %469 : vector<64x2xf32>
    %471 = arith.maximumf %465, %470 : vector<64x2xf32>
    %472 = vector.extract_strided_slice %356 {offsets = [7, 0, 0], sizes = [1, 128, 64], strides = [1, 1, 1]} : vector<8x128x64xf32> to vector<1x128x64xf32>
    %473 = vector.shape_cast %472 : vector<1x128x64xf32> to vector<128x64xf32>
    %cst_70 = arith.constant dense<0.000000e+00> : vector<128x2xf32>
    %474 = tpu.matmul %473, %471, %cst_70 {dimension_numbers = #tpu.dot_dimension_numbers<[1], [0], [0], [1], [0, 0, 1, 1], [], []>} : vector<128x64xf32>, vector<64x2xf32>, vector<128x2xf32> -> vector<128x2xf32>
    %475 = arith.addf %460, %474 : vector<128x2xf32>
    %c0_71 = arith.constant 0 : index
    %c0_72 = arith.constant 0 : index
    %476 = vector.load %arg7[%c0_71, %c0_72] : memref<128x1xf32, #tpu.memory_space<vmem>>, vector<128x1xf32>
    %477 = vector.broadcast %476 : vector<128x1xf32> to vector<128x2xf32>
    %478 = arith.addf %475, %477 : vector<128x2xf32>
    %479 = tpu.transpose %478, [1, 0] : vector<128x2xf32> -> vector<2x128xf32>
    %c0_73 = arith.constant 0 : index
    %c0_74 = arith.constant 0 : index
    %480 = vector.load %arg8[%c0_73, %c0_74] : memref<2x128xf32, #tpu.memory_space<vmem>>, vector<2x128xf32>
    tpu.vector_store %arg8[%c0_73, %c0_74], %479 {strides = array<i32>} : memref<2x128xf32, #tpu.memory_space<vmem>>, vector<2x128xf32>,
    return
  }
  func.func @transform_0(%arg0: i32) -> (i32, i32) {
    %c0_i32 = arith.constant 0 : i32
    %c0_i32_0 = arith.constant 0 : i32
    return %arg0, %c0_i32 : i32, i32
  }
  func.func @transform_1(%arg0: i32) -> (i32, i32) {
    %c0_i32 = arith.constant 0 : i32
    %c0_i32_0 = arith.constant 0 : i32
    %c0_i32_1 = arith.constant 0 : i32
    return %c0_i32, %c0_i32_0 : i32, i32
  }
  func.func @transform_2(%arg0: i32) -> (i32, i32) {
    %c0_i32 = arith.constant 0 : i32
    %c0_i32_0 = arith.constant 0 : i32
    %c0_i32_1 = arith.constant 0 : i32
    return %c0_i32, %c0_i32_0 : i32, i32
  }
  func.func @transform_3(%arg0: i32) -> (i32, i32) {
    %c0_i32 = arith.constant 0 : i32
    %c0_i32_0 = arith.constant 0 : i32
    %c0_i32_1 = arith.constant 0 : i32
    return %c0_i32, %c0_i32_0 : i32, i32
  }
  func.func @transform_4(%arg0: i32) -> (i32, i32) {
    %c0_i32 = arith.constant 0 : i32
    %c0_i32_0 = arith.constant 0 : i32
    %c0_i32_1 = arith.constant 0 : i32
    return %c0_i32, %c0_i32_0 : i32, i32
  }
  func.func @transform_5(%arg0: i32) -> (i32, i32, i32) {
    %c0_i32 = arith.constant 0 : i32
    %c0_i32_0 = arith.constant 0 : i32
    %c0_i32_1 = arith.constant 0 : i32
    %c0_i32_2 = arith.constant 0 : i32
    return %c0_i32, %c0_i32_0, %c0_i32_1 : i32, i32, i32
  }
  func.func @transform_6(%arg0: i32) -> (i32, i32) {
    %c0_i32 = arith.constant 0 : i32
    %c0_i32_0 = arith.constant 0 : i32
    %c0_i32_1 = arith.constant 0 : i32
    return %c0_i32, %c0_i32_0 : i32, i32
  }
  func.func @transform_7(%arg0: i32) -> (i32, i32) {
    %c0_i32 = arith.constant 0 : i32
    %c0_i32_0 = arith.constant 0 : i32
    return %arg0, %c0_i32 : i32, i32
  }
}

</mosaic_0001>

<llo_original>
// kernel: tpu_custom_call.1
$region0: #{tpu_custom_call.1}
  #allocation0 [shape = 'u32[]', space=smem, size = 0x4, offset = 0x4, fixed_abs, tag = 'smem constant byte address 0x4 - core index']
  #allocation1 [shape = 'u32[72,128]{1,0:T(1,128)}', space=vmem, size = 0x9000, scoped, tag = 'internal scratch']
  %s0 = inlined_call_operand.vmem [shape: f32[2,32], index: 0, kind: input, shape index: {}]
  %s1 = inlined_call_operand.vmem [shape: f32[32,3], index: 1, kind: input, shape index: {}]
  %s2 = inlined_call_operand.vmem [shape: f32[32,1], index: 2, kind: input, shape index: {}]
  %s3 = inlined_call_operand.vmem [shape: f32[64,96], index: 3, kind: input, shape index: {}]
  %s4 = inlined_call_operand.vmem [shape: f32[64,1], index: 4, kind: input, shape index: {}]
  %s5 = inlined_call_operand.vmem [shape: f32[8,128,64], index: 5, kind: input, shape index: {}]
  %s6 = inlined_call_operand.vmem [shape: f32[128,1], index: 6, kind: input, shape index: {}]
  %s7 = inlined_call_operand.hbm [shape: f32[2,128], index: 7, kind: output, shape index: {}]
  %s8 = sld [smem:[#allocation0]]
  $region38: #{tpu_custom_call.1} parent=0
    _
  %s10 = ssub.s32 1, %s8
  %s11 = scalar_select 0, %s10, %s8
  $region1: #{tpu_custom_call.1} parent=0
    #allocation2 [shape = 'u8[1024]{0}', space=vmem, size = 0x400, scoped, tag = 'output window, operand 0, single buffered']
    #allocation3 [shape = 's32[1]{0}', space=sflag, size = 0x4, scoped, tag = 'scoped memory for tpu_custom_call.1']
    %12 = vsyncpa [#allocation3], 0
    // Predicated region
    $region2: #{tpu_custom_call.1} parent=1 // pred_check
      _
    $region3: #{tpu_custom_call.1} parent=1 // pred_check_branch
      %14 = sbr.rel (0) target = $region5
    $region4: #{tpu_custom_call.1} parent=1 // pred_region
      _
    $region5: #{tpu_custom_call.1} parent=1 // pred_fallthru
      _
    // Predicated region
    $region6: #{tpu_custom_call.1} parent=1 // pred_check
      _
    $region7: #{tpu_custom_call.1} parent=1 // pred_check_branch
      %16 = sbr.rel (0) target = $region9
    $region8: #{tpu_custom_call.1} parent=1 // pred_region
      _
    $region9: #{tpu_custom_call.1} parent=1 // pred_fallthru
      _
    // Predicated region
    $region10: #{tpu_custom_call.1} parent=1 // pred_check
      _
    $region11: #{tpu_custom_call.1} parent=1 // pred_check_branch
      %18 = sbr.rel (0) target = $region13
    $region12: #{tpu_custom_call.1} parent=1 // pred_region
      _
    $region13: #{tpu_custom_call.1} parent=1 // pred_fallthru
      _
    // Predicated region
    $region14: #{tpu_custom_call.1} parent=1 // pred_check
      _
    $region15: #{tpu_custom_call.1} parent=1 // pred_check_branch
      %20 = sbr.rel (0) target = $region17
    $region16: #{tpu_custom_call.1} parent=1 // pred_region
      _
    $region17: #{tpu_custom_call.1} parent=1 // pred_fallthru
      _
    // Predicated region
    $region18: #{tpu_custom_call.1} parent=1 // pred_check
      _
    $region19: #{tpu_custom_call.1} parent=1 // pred_check_branch
      %22 = sbr.rel (0) target = $region21
    $region20: #{tpu_custom_call.1} parent=1 // pred_region
      _
    $region21: #{tpu_custom_call.1} parent=1 // pred_fallthru
      _
    // Predicated region
    $region22: #{tpu_custom_call.1} parent=1 // pred_check
      _
    $region23: #{tpu_custom_call.1} parent=1 // pred_check_branch
      %24 = sbr.rel (0) target = $region25
    $region24: #{tpu_custom_call.1} parent=1 // pred_region
      _
    $region25: #{tpu_custom_call.1} parent=1 // pred_fallthru
      _
    // Predicated region
    $region26: #{tpu_custom_call.1} parent=1 // pred_check
      _
    $region27: #{tpu_custom_call.1} parent=1 // pred_check_branch
      %26 = sbr.rel (0) target = $region29
    $region28: #{tpu_custom_call.1} parent=1 // pred_region
      _
    $region29: #{tpu_custom_call.1} parent=1 // pred_fallthru
      _
    %v27 = vld [vmem:[%s0] sm:$0x3]
    %28 = vxpose.xlu0.b32.start [1/16] %v27, 128
    %29 = vxpose.xlu0.b32.cont [2/16] 0.0, 128
    %30 = vxpose.xlu0.b32.cont [3/16] 0.0, 128
    %31 = vxpose.xlu0.b32.cont [4/16] 0.0, 128
    %32 = vxpose.xlu0.b32.cont [5/16] 0.0, 128
    %33 = vxpose.xlu0.b32.cont [6/16] 0.0, 128
    %34 = vxpose.xlu0.b32.cont [7/16] 0.0, 128
    %35 = vxpose.xlu0.b32.cont [8/16] 0.0, 128
    %36 = vxpose.xlu0.b32.cont [9/16] 0.0, 128
    %37 = vxpose.xlu0.b32.cont [10/16] 0.0, 128
    %38 = vxpose.xlu0.b32.cont [11/16] 0.0, 128
    %39 = vxpose.xlu0.b32.cont [12/16] 0.0, 128
    %40 = vxpose.xlu0.b32.cont [13/16] 0.0, 128
    %41 = vxpose.xlu0.b32.cont [14/16] 0.0, 128
    %42 = vxpose.xlu0.b32.cont [15/16] 0.0, 128
    %43 = vxpose.xlu0.b32.end [16/16] 0.0, 128
    %v44 = vpop.trf.xlu0
    %v45 = vpop.trf.xlu0
    %v46 = vpop.trf.xlu0
    %v47 = vpop.trf.xlu0
    %v48 = vpop.trf.xlu0
    %v49 = vpop.trf.xlu0
    %v50 = vpop.trf.xlu0
    %v51 = vpop.trf.xlu0
    %v52 = vpop.trf.xlu0
    %v53 = vpop.trf.xlu0
    %v54 = vpop.trf.xlu0
    %v55 = vpop.trf.xlu0
    %v56 = vpop.trf.xlu0
    %v57 = vpop.trf.xlu0
    %v58 = vpop.trf.xlu0
    %v59 = vpop.trf.xlu0
    %v60 = vperm.slane %v44, 0
    %v61 = vperm.slane %v44, 1
    %v62 = vperm.slane %v44, 2
    %v63 = vperm.slane %v44, 3
    %v64 = vperm.slane %v44, 4
    %v65 = vperm.slane %v44, 5
    %v66 = vperm.slane %v44, 6
    %v67 = vperm.slane %v44, 7
    %v68 = vperm.slane %v45, 0
    %v69 = vperm.slane %v45, 1
    %v70 = vperm.slane %v45, 2
    %v71 = vperm.slane %v45, 3
    %v72 = vperm.slane %v45, 4
    %v73 = vperm.slane %v45, 5
    %v74 = vperm.slane %v45, 6
    %v75 = vperm.slane %v45, 7
    %v76 = vperm.slane %v46, 0
    %v77 = vperm.slane %v46, 1
    %v78 = vperm.slane %v46, 2
    %v79 = vperm.slane %v46, 3
    %v80 = vperm.slane %v46, 4
    %v81 = vperm.slane %v46, 5
    %v82 = vperm.slane %v46, 6
    %v83 = vperm.slane %v46, 7
    %v84 = vperm.slane %v47, 0
    %v85 = vperm.slane %v47, 1
    %v86 = vperm.slane %v47, 2
    %v87 = vperm.slane %v47, 3
    %v88 = vperm.slane %v47, 4
    %v89 = vperm.slane %v47, 5
    %v90 = vperm.slane %v47, 6
    %v91 = vperm.slane %v47, 7
    %v92 = vld [vmem:[%s1] sm:$0xff]
    %v93 = vld [vmem:[%s1 + $0x8] sm:$0xff]
    %v94 = vld [vmem:[%s1 + $0x10] sm:$0xff]
    %v95 = vld [vmem:[%s1 + $0x18] sm:$0xff]
    %97 = vset.pattern.permute.xlu0 0
    %98 = vperm.xlu0 %97, %v92
    %v99 = vpop.permute.xlu0 %98
    %102 = vset.pattern.permute.xlu0 0
    %103 = vperm.xlu0 %102, %v93
    %v104 = vpop.permute.xlu0 %103
    %107 = vset.pattern.permute.xlu0 0
    %108 = vperm.xlu0 %107, %v94
    %v109 = vpop.permute.xlu0 %108
    %112 = vset.pattern.permute.xlu0 0
    %113 = vperm.xlu0 %112, %v95
    %v114 = vpop.permute.xlu0 %113
    %116 = vset.pattern.permute.xlu0 1
    %117 = vperm.xlu0 %116, %v92
    %v118 = vpop.permute.xlu0 %117
    %120 = vset.pattern.permute.xlu0 1
    %121 = vperm.xlu0 %120, %v93
    %v122 = vpop.permute.xlu0 %121
    %124 = vset.pattern.permute.xlu0 1
    %125 = vperm.xlu0 %124, %v94
    %v126 = vpop.permute.xlu0 %125
    %128 = vset.pattern.permute.xlu0 1
    %129 = vperm.xlu0 %128, %v95
    %v130 = vpop.permute.xlu0 %129
    %132 = vset.pattern.permute.xlu0 2
    %133 = vperm.xlu0 %132, %v92
    %v134 = vpop.permute.xlu0 %133
    %136 = vset.pattern.permute.xlu0 2
    %137 = vperm.xlu0 %136, %v93
    %v138 = vpop.permute.xlu0 %137
    %140 = vset.pattern.permute.xlu0 2
    %141 = vperm.xlu0 %140, %v94
    %v142 = vpop.permute.xlu0 %141
    %144 = vset.pattern.permute.xlu0 2
    %145 = vperm.xlu0 %144, %v95
    %v146 = vpop.permute.xlu0 %145
    %v148 = vld [vmem:[%s2] sm:$0xff]
    %v149 = vld [vmem:[%s2 + $0x8] sm:$0xff]
    %v150 = vld [vmem:[%s2 + $0x10] sm:$0xff]
    %v151 = vld [vmem:[%s2 + $0x18] sm:$0xff]
    %153 = vset.pattern.permute.xlu0 0
    %154 = vperm.xlu0 %153, %v148
    %v155 = vpop.permute.xlu0 %154
    %158 = vset.pattern.permute.xlu0 0
    %159 = vperm.xlu0 %158, %v149
    %v160 = vpop.permute.xlu0 %159
    %163 = vset.pattern.permute.xlu0 0
    %164 = vperm.xlu0 %163, %v150
    %v165 = vpop.permute.xlu0 %164
    %168 = vset.pattern.permute.xlu0 0
    %169 = vperm.xlu0 %168, %v151
    %v170 = vpop.permute.xlu0 %169
    %v172 = vmul.f32 %v99, 0.0
    %v173 = vmul.f32 %v104, 0.0
    %v174 = vmul.f32 %v109, 0.0
    %v175 = vmul.f32 %v114, 0.0
    %v176 = vmul.f32 %v118, %v60
    %v177 = vmul.f32 %v122, %v60
    %v178 = vmul.f32 %v126, %v60
    %v179 = vmul.f32 %v130, %v60
    %v180 = vadd.f32 %v172, %v176
    %v181 = vadd.f32 %v173, %v177
    %v182 = vadd.f32 %v174, %v178
    %v183 = vadd.f32 %v175, %v179
    %v184 = vmul.f32 %v134, %v61
    %v185 = vmul.f32 %v138, %v61
    %v186 = vmul.f32 %v142, %v61
    %v187 = vmul.f32 %v146, %v61
    %v188 = vadd.f32 %v180, %v184
    %v189 = vadd.f32 %v181, %v185
    %v190 = vadd.f32 %v182, %v186
    %v191 = vadd.f32 %v183, %v187
    %v192 = vadd.f32 %v188, %v155
    %v193 = vadd.f32 %v189, %v160
    %v194 = vadd.f32 %v190, %v165
    %v195 = vadd.f32 %v191, %v170
    %v196 = vmul.f32 %v99, %v60
    %v197 = vmul.f32 %v104, %v60
    %v198 = vmul.f32 %v109, %v60
    %v199 = vmul.f32 %v114, %v60
    %v200 = vmul.f32 %v118, %v61
    %v201 = vmul.f32 %v122, %v61
    %v202 = vmul.f32 %v126, %v61
    %v203 = vmul.f32 %v130, %v61
    %v204 = vadd.f32 %v196, %v200
    %v205 = vadd.f32 %v197, %v201
    %v206 = vadd.f32 %v198, %v202
    %v207 = vadd.f32 %v199, %v203
    %v208 = vmul.f32 %v134, %v62
    %v209 = vmul.f32 %v138, %v62
    %v210 = vmul.f32 %v142, %v62
    %v211 = vmul.f32 %v146, %v62
    %v212 = vadd.f32 %v204, %v208
    %v213 = vadd.f32 %v205, %v209
    %v214 = vadd.f32 %v206, %v210
    %v215 = vadd.f32 %v207, %v211
    %v216 = vadd.f32 %v212, %v155
    %v217 = vadd.f32 %v213, %v160
    %v218 = vadd.f32 %v214, %v165
    %v219 = vadd.f32 %v215, %v170
    %v220 = vmax.f32 %v192, %v216
    %v221 = vmax.f32 %v193, %v217
    %v222 = vmax.f32 %v194, %v218
    %v223 = vmax.f32 %v195, %v219
    %v224 = vmax.f32 %v220, 0.0
    %v225 = vmax.f32 %v221, 0.0
    %v226 = vmax.f32 %v222, 0.0
    %v227 = vmax.f32 %v223, 0.0
    %v228 = vmul.f32 %v99, %v61
    %v229 = vmul.f32 %v104, %v61
    %v230 = vmul.f32 %v109, %v61
    %v231 = vmul.f32 %v114, %v61
    %v232 = vmul.f32 %v118, %v62
    %v233 = vmul.f32 %v122, %v62
    %v234 = vmul.f32 %v126, %v62
    %v235 = vmul.f32 %v130, %v62
    %v236 = vadd.f32 %v228, %v232
    %v237 = vadd.f32 %v229, %v233
    %v238 = vadd.f32 %v230, %v234
    %v239 = vadd.f32 %v231, %v235
    %v240 = vmul.f32 %v134, %v63
    %v241 = vmul.f32 %v138, %v63
    %v242 = vmul.f32 %v142, %v63
    %v243 = vmul.f32 %v146, %v63
    %v244 = vadd.f32 %v236, %v240
    %v245 = vadd.f32 %v237, %v241
    %v246 = vadd.f32 %v238, %v242
    %v247 = vadd.f32 %v239, %v243
    %v248 = vadd.f32 %v244, %v155
    %v249 = vadd.f32 %v245, %v160
    %v250 = vadd.f32 %v246, %v165
    %v251 = vadd.f32 %v247, %v170
    %v252 = vmul.f32 %v99, %v62
    %v253 = vmul.f32 %v104, %v62
    %v254 = vmul.f32 %v109, %v62
    %v255 = vmul.f32 %v114, %v62
    %v256 = vmul.f32 %v118, %v63
    %v257 = vmul.f32 %v122, %v63
    %v258 = vmul.f32 %v126, %v63
    %v259 = vmul.f32 %v130, %v63
    %v260 = vadd.f32 %v252, %v256
    %v261 = vadd.f32 %v253, %v257
    %v262 = vadd.f32 %v254, %v258
    %v263 = vadd.f32 %v255, %v259
    %v264 = vmul.f32 %v134, %v64
    %v265 = vmul.f32 %v138, %v64
    %v266 = vmul.f32 %v142, %v64
    %v267 = vmul.f32 %v146, %v64
    %v268 = vadd.f32 %v260, %v264
    %v269 = vadd.f32 %v261, %v265
    %v270 = vadd.f32 %v262, %v266
    %v271 = vadd.f32 %v263, %v267
    %v272 = vadd.f32 %v268, %v155
    %v273 = vadd.f32 %v269, %v160
    %v274 = vadd.f32 %v270, %v165
    %v275 = vadd.f32 %v271, %v170
    %v276 = vmax.f32 %v248, %v272
    %v277 = vmax.f32 %v249, %v273
    %v278 = vmax.f32 %v250, %v274
    %v279 = vmax.f32 %v251, %v275
    %v280 = vmax.f32 %v276, 0.0
    %v281 = vmax.f32 %v277, 0.0
    %v282 = vmax.f32 %v278, 0.0
    %v283 = vmax.f32 %v279, 0.0
    %v284 = vmul.f32 %v99, %v63
    %v285 = vmul.f32 %v104, %v63
    %v286 = vmul.f32 %v109, %v63
    %v287 = vmul.f32 %v114, %v63
    %v288 = vmul.f32 %v118, %v64
    %v289 = vmul.f32 %v122, %v64
    %v290 = vmul.f32 %v126, %v64
    %v291 = vmul.f32 %v130, %v64
    %v292 = vadd.f32 %v284, %v288
    %v293 = vadd.f32 %v285, %v289
    %v294 = vadd.f32 %v286, %v290
    %v295 = vadd.f32 %v287, %v291
    %v296 = vmul.f32 %v134, %v65
    %v297 = vmul.f32 %v138, %v65
    %v298 = vmul.f32 %v142, %v65
    %v299 = vmul.f32 %v146, %v65
    %v300 = vadd.f32 %v292, %v296
    %v301 = vadd.f32 %v293, %v297
    %v302 = vadd.f32 %v294, %v298
    %v303 = vadd.f32 %v295, %v299
    %v304 = vadd.f32 %v300, %v155
    %v305 = vadd.f32 %v301, %v160
    %v306 = vadd.f32 %v302, %v165
    %v307 = vadd.f32 %v303, %v170
    %v308 = vmul.f32 %v99, %v64
    %v309 = vmul.f32 %v104, %v64
    %v310 = vmul.f32 %v109, %v64
    %v311 = vmul.f32 %v114, %v64
    %v312 = vmul.f32 %v118, %v65
    %v313 = vmul.f32 %v122, %v65
    %v314 = vmul.f32 %v126, %v65
    %v315 = vmul.f32 %v130, %v65
    %v316 = vadd.f32 %v308, %v312
    %v317 = vadd.f32 %v309, %v313
    %v318 = vadd.f32 %v310, %v314
    %v319 = vadd.f32 %v311, %v315
    %v320 = vmul.f32 %v134, %v66
    %v321 = vmul.f32 %v138, %v66
    %v322 = vmul.f32 %v142, %v66
    %v323 = vmul.f32 %v146, %v66
    %v324 = vadd.f32 %v316, %v320
    %v325 = vadd.f32 %v317, %v321
    %v326 = vadd.f32 %v318, %v322
    %v327 = vadd.f32 %v319, %v323
    %v328 = vadd.f32 %v324, %v155
    %v329 = vadd.f32 %v325, %v160
    %v330 = vadd.f32 %v326, %v165
    %v331 = vadd.f32 %v327, %v170
    %v332 = vmax.f32 %v304, %v328
    %v333 = vmax.f32 %v305, %v329
    %v334 = vmax.f32 %v306, %v330
    %v335 = vmax.f32 %v307, %v331
    %v336 = vmax.f32 %v332, 0.0
    %v337 = vmax.f32 %v333, 0.0
    %v338 = vmax.f32 %v334, 0.0
    %v339 = vmax.f32 %v335, 0.0
    %v340 = vmul.f32 %v99, %v65
    %v341 = vmul.f32 %v104, %v65
    %v342 = vmul.f32 %v109, %v65
    %v343 = vmul.f32 %v114, %v65
    %v344 = vmul.f32 %v118, %v66
    %v345 = vmul.f32 %v122, %v66
    %v346 = vmul.f32 %v126, %v66
    %v347 = vmul.f32 %v130, %v66
    %v348 = vadd.f32 %v340, %v344
    %v349 = vadd.f32 %v341, %v345
    %v350 = vadd.f32 %v342, %v346
    %v351 = vadd.f32 %v343, %v347
    %v352 = vmul.f32 %v134, %v67
    %v353 = vmul.f32 %v138, %v67
    %v354 = vmul.f32 %v142, %v67
    %v355 = vmul.f32 %v146, %v67
    %v356 = vadd.f32 %v348, %v352
    %v357 = vadd.f32 %v349, %v353
    %v358 = vadd.f32 %v350, %v354
    %v359 = vadd.f32 %v351, %v355
    %v360 = vadd.f32 %v356, %v155
    %v361 = vadd.f32 %v357, %v160
    %v362 = vadd.f32 %v358, %v165
    %v363 = vadd.f32 %v359, %v170
    %v364 = vmul.f32 %v99, %v66
    %v365 = vmul.f32 %v104, %v66
    %v366 = vmul.f32 %v109, %v66
    %v367 = vmul.f32 %v114, %v66
    %v368 = vmul.f32 %v118, %v67
    %v369 = vmul.f32 %v122, %v67
    %v370 = vmul.f32 %v126, %v67
    %v371 = vmul.f32 %v130, %v67
    %v372 = vadd.f32 %v364, %v368
    %v373 = vadd.f32 %v365, %v369
    %v374 = vadd.f32 %v366, %v370
    %v375 = vadd.f32 %v367, %v371
    %v376 = vmul.f32 %v134, %v68
    %v377 = vmul.f32 %v138, %v68
    %v378 = vmul.f32 %v142, %v68
    %v379 = vmul.f32 %v146, %v68
    %v380 = vadd.f32 %v372, %v376
    %v381 = vadd.f32 %v373, %v377
    %v382 = vadd.f32 %v374, %v378
    %v383 = vadd.f32 %v375, %v379
    %v384 = vadd.f32 %v380, %v155
    %v385 = vadd.f32 %v381, %v160
    %v386 = vadd.f32 %v382, %v165
    %v387 = vadd.f32 %v383, %v170
    %v388 = vmax.f32 %v360, %v384
    %v389 = vmax.f32 %v361, %v385
    %v390 = vmax.f32 %v362, %v386
    %v391 = vmax.f32 %v363, %v387
    %v392 = vmax.f32 %v388, 0.0
    %v393 = vmax.f32 %v389, 0.0
    %v394 = vmax.f32 %v390, 0.0
    %v395 = vmax.f32 %v391, 0.0
    %v396 = vmul.f32 %v99, %v67
    %v397 = vmul.f32 %v104, %v67
    %v398 = vmul.f32 %v109, %v67
    %v399 = vmul.f32 %v114, %v67
    %v400 = vmul.f32 %v118, %v68
    %v401 = vmul.f32 %v122, %v68
    %v402 = vmul.f32 %v126, %v68
    %v403 = vmul.f32 %v130, %v68
    %v404 = vadd.f32 %v396, %v400
    %v405 = vadd.f32 %v397, %v401
    %v406 = vadd.f32 %v398, %v402
    %v407 = vadd.f32 %v399, %v403
    %v408 = vmul.f32 %v134, %v69
    %v409 = vmul.f32 %v138, %v69
    %v410 = vmul.f32 %v142, %v69
    %v411 = vmul.f32 %v146, %v69
    %v412 = vadd.f32 %v404, %v408
    %v413 = vadd.f32 %v405, %v409
    %v414 = vadd.f32 %v406, %v410
    %v415 = vadd.f32 %v407, %v411
    %v416 = vadd.f32 %v412, %v155
    %v417 = vadd.f32 %v413, %v160
    %v418 = vadd.f32 %v414, %v165
    %v419 = vadd.f32 %v415, %v170
    %v420 = vmul.f32 %v99, %v68
    %v421 = vmul.f32 %v104, %v68
    %v422 = vmul.f32 %v109, %v68
    %v423 = vmul.f32 %v114, %v68
    %v424 = vmul.f32 %v118, %v69
    %v425 = vmul.f32 %v122, %v69
    %v426 = vmul.f32 %v126, %v69
    %v427 = vmul.f32 %v130, %v69
    %v428 = vadd.f32 %v420, %v424
    %v429 = vadd.f32 %v421, %v425
    %v430 = vadd.f32 %v422, %v426
    %v431 = vadd.f32 %v423, %v427
    %v432 = vmul.f32 %v134, %v70
    %v433 = vmul.f32 %v138, %v70
    %v434 = vmul.f32 %v142, %v70
    %v435 = vmul.f32 %v146, %v70
    %v436 = vadd.f32 %v428, %v432
    %v437 = vadd.f32 %v429, %v433
    %v438 = vadd.f32 %v430, %v434
    %v439 = vadd.f32 %v431, %v435
    %v440 = vadd.f32 %v436, %v155
    %v441 = vadd.f32 %v437, %v160
    %v442 = vadd.f32 %v438, %v165
    %v443 = vadd.f32 %v439, %v170
    %v444 = vmax.f32 %v416, %v440
    %v445 = vmax.f32 %v417, %v441
    %v446 = vmax.f32 %v418, %v442
    %v447 = vmax.f32 %v419, %v443
    %v448 = vmax.f32 %v444, 0.0
    %v449 = vmax.f32 %v445, 0.0
    %v450 = vmax.f32 %v446, 0.0
    %v451 = vmax.f32 %v447, 0.0
    %v452 = vmul.f32 %v99, %v69
    %v453 = vmul.f32 %v104, %v69
    %v454 = vmul.f32 %v109, %v69
    %v455 = vmul.f32 %v114, %v69
    %v456 = vmul.f32 %v118, %v70
    %v457 = vmul.f32 %v122, %v70
    %v458 = vmul.f32 %v126, %v70
    %v459 = vmul.f32 %v130, %v70
    %v460 = vadd.f32 %v452, %v456
    %v461 = vadd.f32 %v453, %v457
    %v462 = vadd.f32 %v454, %v458
    %v463 = vadd.f32 %v455, %v459
    %v464 = vmul.f32 %v134, %v71
    %v465 = vmul.f32 %v138, %v71
    %v466 = vmul.f32 %v142, %v71
    %v467 = vmul.f32 %v146, %v71
    %v468 = vadd.f32 %v460, %v464
    %v469 = vadd.f32 %v461, %v465
    %v470 = vadd.f32 %v462, %v466
    %v471 = vadd.f32 %v463, %v467
    %v472 = vadd.f32 %v468, %v155
    %v473 = vadd.f32 %v469, %v160
    %v474 = vadd.f32 %v470, %v165
    %v475 = vadd.f32 %v471, %v170
    %v476 = vmul.f32 %v99, %v70
    %v477 = vmul.f32 %v104, %v70
    %v478 = vmul.f32 %v109, %v70
    %v479 = vmul.f32 %v114, %v70
    %v480 = vmul.f32 %v118, %v71
    %v481 = vmul.f32 %v122, %v71
    %v482 = vmul.f32 %v126, %v71
    %v483 = vmul.f32 %v130, %v71
    %v484 = vadd.f32 %v476, %v480
    %v485 = vadd.f32 %v477, %v481
    %v486 = vadd.f32 %v478, %v482
    %v487 = vadd.f32 %v479, %v483
    %v488 = vmul.f32 %v134, %v72
    %v489 = vmul.f32 %v138, %v72
    %v490 = vmul.f32 %v142, %v72
    %v491 = vmul.f32 %v146, %v72
    %v492 = vadd.f32 %v484, %v488
    %v493 = vadd.f32 %v485, %v489
    %v494 = vadd.f32 %v486, %v490
    %v495 = vadd.f32 %v487, %v491
    %v496 = vadd.f32 %v492, %v155
    %v497 = vadd.f32 %v493, %v160
    %v498 = vadd.f32 %v494, %v165
    %v499 = vadd.f32 %v495, %v170
    %v500 = vmax.f32 %v472, %v496
    %v501 = vmax.f32 %v473, %v497
    %v502 = vmax.f32 %v474, %v498
    %v503 = vmax.f32 %v475, %v499
    %v504 = vmax.f32 %v500, 0.0
    %v505 = vmax.f32 %v501, 0.0
    %v506 = vmax.f32 %v502, 0.0
    %v507 = vmax.f32 %v503, 0.0
    %v508 = vmul.f32 %v99, %v71
    %v509 = vmul.f32 %v104, %v71
    %v510 = vmul.f32 %v109, %v71
    %v511 = vmul.f32 %v114, %v71
    %v512 = vmul.f32 %v118, %v72
    %v513 = vmul.f32 %v122, %v72
    %v514 = vmul.f32 %v126, %v72
    %v515 = vmul.f32 %v130, %v72
    %v516 = vadd.f32 %v508, %v512
    %v517 = vadd.f32 %v509, %v513
    %v518 = vadd.f32 %v510, %v514
    %v519 = vadd.f32 %v511, %v515
    %v520 = vmul.f32 %v134, %v73
    %v521 = vmul.f32 %v138, %v73
    %v522 = vmul.f32 %v142, %v73
    %v523 = vmul.f32 %v146, %v73
    %v524 = vadd.f32 %v516, %v520
    %v525 = vadd.f32 %v517, %v521
    %v526 = vadd.f32 %v518, %v522
    %v527 = vadd.f32 %v519, %v523
    %v528 = vadd.f32 %v524, %v155
    %v529 = vadd.f32 %v525, %v160
    %v530 = vadd.f32 %v526, %v165
    %v531 = vadd.f32 %v527, %v170
    %v532 = vmul.f32 %v99, %v72
    %v533 = vmul.f32 %v104, %v72
    %v534 = vmul.f32 %v109, %v72
    %v535 = vmul.f32 %v114, %v72
    %v536 = vmul.f32 %v118, %v73
    %v537 = vmul.f32 %v122, %v73
    %v538 = vmul.f32 %v126, %v73
    %v539 = vmul.f32 %v130, %v73
    %v540 = vadd.f32 %v532, %v536
    %v541 = vadd.f32 %v533, %v537
    %v542 = vadd.f32 %v534, %v538
    %v543 = vadd.f32 %v535, %v539
    %v544 = vmul.f32 %v134, %v74
    %v545 = vmul.f32 %v138, %v74
    %v546 = vmul.f32 %v142, %v74
    %v547 = vmul.f32 %v146, %v74
    %v548 = vadd.f32 %v540, %v544
    %v549 = vadd.f32 %v541, %v545
    %v550 = vadd.f32 %v542, %v546
    %v551 = vadd.f32 %v543, %v547
    %v552 = vadd.f32 %v548, %v155
    %v553 = vadd.f32 %v549, %v160
    %v554 = vadd.f32 %v550, %v165
    %v555 = vadd.f32 %v551, %v170
    %v556 = vmax.f32 %v528, %v552
    %v557 = vmax.f32 %v529, %v553
    %v558 = vmax.f32 %v530, %v554
    %v559 = vmax.f32 %v531, %v555
    %v560 = vmax.f32 %v556, 0.0
    %v561 = vmax.f32 %v557, 0.0
    %v562 = vmax.f32 %v558, 0.0
    %v563 = vmax.f32 %v559, 0.0
    %v564 = vmul.f32 %v99, %v73
    %v565 = vmul.f32 %v104, %v73
    %v566 = vmul.f32 %v109, %v73
    %v567 = vmul.f32 %v114, %v73
    %v568 = vmul.f32 %v118, %v74
    %v569 = vmul.f32 %v122, %v74
    %v570 = vmul.f32 %v126, %v74
    %v571 = vmul.f32 %v130, %v74
    %v572 = vadd.f32 %v564, %v568
    %v573 = vadd.f32 %v565, %v569
    %v574 = vadd.f32 %v566, %v570
    %v575 = vadd.f32 %v567, %v571
    %v576 = vmul.f32 %v134, %v75
    %v577 = vmul.f32 %v138, %v75
    %v578 = vmul.f32 %v142, %v75
    %v579 = vmul.f32 %v146, %v75
    %v580 = vadd.f32 %v572, %v576
    %v581 = vadd.f32 %v573, %v577
    %v582 = vadd.f32 %v574, %v578
    %v583 = vadd.f32 %v575, %v579
    %v584 = vadd.f32 %v580, %v155
    %v585 = vadd.f32 %v581, %v160
    %v586 = vadd.f32 %v582, %v165
    %v587 = vadd.f32 %v583, %v170
    %v588 = vmul.f32 %v99, %v74
    %v589 = vmul.f32 %v104, %v74
    %v590 = vmul.f32 %v109, %v74
    %v591 = vmul.f32 %v114, %v74
    %v592 = vmul.f32 %v118, %v75
    %v593 = vmul.f32 %v122, %v75
    %v594 = vmul.f32 %v126, %v75
    %v595 = vmul.f32 %v130, %v75
    %v596 = vadd.f32 %v588, %v592
    %v597 = vadd.f32 %v589, %v593
    %v598 = vadd.f32 %v590, %v594
    %v599 = vadd.f32 %v591, %v595
    %v600 = vmul.f32 %v134, %v76
    %v601 = vmul.f32 %v138, %v76
    %v602 = vmul.f32 %v142, %v76
    %v603 = vmul.f32 %v146, %v76
    %v604 = vadd.f32 %v596, %v600
    %v605 = vadd.f32 %v597, %v601
    %v606 = vadd.f32 %v598, %v602
    %v607 = vadd.f32 %v599, %v603
    %v608 = vadd.f32 %v604, %v155
    %v609 = vadd.f32 %v605, %v160
    %v610 = vadd.f32 %v606, %v165
    %v611 = vadd.f32 %v607, %v170
    %v612 = vmax.f32 %v584, %v608
    %v613 = vmax.f32 %v585, %v609
    %v614 = vmax.f32 %v586, %v610
    %v615 = vmax.f32 %v587, %v611
    %v616 = vmax.f32 %v612, 0.0
    %v617 = vmax.f32 %v613, 0.0
    %v618 = vmax.f32 %v614, 0.0
    %v619 = vmax.f32 %v615, 0.0
    %v620 = vmul.f32 %v99, %v75
    %v621 = vmul.f32 %v104, %v75
    %v622 = vmul.f32 %v109, %v75
    %v623 = vmul.f32 %v114, %v75
    %v624 = vmul.f32 %v118, %v76
    %v625 = vmul.f32 %v122, %v76
    %v626 = vmul.f32 %v126, %v76
    %v627 = vmul.f32 %v130, %v76
    %v628 = vadd.f32 %v620, %v624
    %v629 = vadd.f32 %v621, %v625
    %v630 = vadd.f32 %v622, %v626
    %v631 = vadd.f32 %v623, %v627
    %v632 = vmul.f32 %v134, %v77
    %v633 = vmul.f32 %v138, %v77
    %v634 = vmul.f32 %v142, %v77
    %v635 = vmul.f32 %v146, %v77
    %v636 = vadd.f32 %v628, %v632
    %v637 = vadd.f32 %v629, %v633
    %v638 = vadd.f32 %v630, %v634
    %v639 = vadd.f32 %v631, %v635
    %v640 = vadd.f32 %v636, %v155
    %v641 = vadd.f32 %v637, %v160
    %v642 = vadd.f32 %v638, %v165
    %v643 = vadd.f32 %v639, %v170
    %v644 = vmul.f32 %v99, %v76
    %v645 = vmul.f32 %v104, %v76
    %v646 = vmul.f32 %v109, %v76
    %v647 = vmul.f32 %v114, %v76
    %v648 = vmul.f32 %v118, %v77
    %v649 = vmul.f32 %v122, %v77
    %v650 = vmul.f32 %v126, %v77
    %v651 = vmul.f32 %v130, %v77
    %v652 = vadd.f32 %v644, %v648
    %v653 = vadd.f32 %v645, %v649
    %v654 = vadd.f32 %v646, %v650
    %v655 = vadd.f32 %v647, %v651
    %v656 = vmul.f32 %v134, %v78
    %v657 = vmul.f32 %v138, %v78
    %v658 = vmul.f32 %v142, %v78
    %v659 = vmul.f32 %v146, %v78
    %v660 = vadd.f32 %v652, %v656
    %v661 = vadd.f32 %v653, %v657
    %v662 = vadd.f32 %v654, %v658
    %v663 = vadd.f32 %v655, %v659
    %v664 = vadd.f32 %v660, %v155
    %v665 = vadd.f32 %v661, %v160
    %v666 = vadd.f32 %v662, %v165
    %v667 = vadd.f32 %v663, %v170
    %v668 = vmax.f32 %v640, %v664
    %v669 = vmax.f32 %v641, %v665
    %v670 = vmax.f32 %v642, %v666
    %v671 = vmax.f32 %v643, %v667
    %v672 = vmax.f32 %v668, 0.0
    %v673 = vmax.f32 %v669, 0.0
    %v674 = vmax.f32 %v670, 0.0
    %v675 = vmax.f32 %v671, 0.0
    %v676 = vmul.f32 %v99, %v77
    %v677 = vmul.f32 %v104, %v77
    %v678 = vmul.f32 %v109, %v77
    %v679 = vmul.f32 %v114, %v77
    %v680 = vmul.f32 %v118, %v78
    %v681 = vmul.f32 %v122, %v78
    %v682 = vmul.f32 %v126, %v78
    %v683 = vmul.f32 %v130, %v78
    %v684 = vadd.f32 %v676, %v680
    %v685 = vadd.f32 %v677, %v681
    %v686 = vadd.f32 %v678, %v682
    %v687 = vadd.f32 %v679, %v683
    %v688 = vmul.f32 %v134, %v79
    %v689 = vmul.f32 %v138, %v79
    %v690 = vmul.f32 %v142, %v79
    %v691 = vmul.f32 %v146, %v79
    %v692 = vadd.f32 %v684, %v688
    %v693 = vadd.f32 %v685, %v689
    %v694 = vadd.f32 %v686, %v690
    %v695 = vadd.f32 %v687, %v691
    %v696 = vadd.f32 %v692, %v155
    %v697 = vadd.f32 %v693, %v160
    %v698 = vadd.f32 %v694, %v165
    %v699 = vadd.f32 %v695, %v170
    %v700 = vmul.f32 %v99, %v78
    %v701 = vmul.f32 %v104, %v78
    %v702 = vmul.f32 %v109, %v78
    %v703 = vmul.f32 %v114, %v78
    %v704 = vmul.f32 %v118, %v79
    %v705 = vmul.f32 %v122, %v79
    %v706 = vmul.f32 %v126, %v79
    %v707 = vmul.f32 %v130, %v79
    %v708 = vadd.f32 %v700, %v704
    %v709 = vadd.f32 %v701, %v705
    %v710 = vadd.f32 %v702, %v706
    %v711 = vadd.f32 %v703, %v707
    %v712 = vmul.f32 %v134, %v80
    %v713 = vmul.f32 %v138, %v80
    %v714 = vmul.f32 %v142, %v80
    %v715 = vmul.f32 %v146, %v80
    %v716 = vadd.f32 %v708, %v712
    %v717 = vadd.f32 %v709, %v713
    %v718 = vadd.f32 %v710, %v714
    %v719 = vadd.f32 %v711, %v715
    %v720 = vadd.f32 %v716, %v155
    %v721 = vadd.f32 %v717, %v160
    %v722 = vadd.f32 %v718, %v165
    %v723 = vadd.f32 %v719, %v170
    %v724 = vmax.f32 %v696, %v720
    %v725 = vmax.f32 %v697, %v721
    %v726 = vmax.f32 %v698, %v722
    %v727 = vmax.f32 %v699, %v723
    %v728 = vmax.f32 %v724, 0.0
    %v729 = vmax.f32 %v725, 0.0
    %v730 = vmax.f32 %v726, 0.0
    %v731 = vmax.f32 %v727, 0.0
    %v732 = vmul.f32 %v99, %v79
    %v733 = vmul.f32 %v104, %v79
    %v734 = vmul.f32 %v109, %v79
    %v735 = vmul.f32 %v114, %v79
    %v736 = vmul.f32 %v118, %v80
    %v737 = vmul.f32 %v122, %v80
    %v738 = vmul.f32 %v126, %v80
    %v739 = vmul.f32 %v130, %v80
    %v740 = vadd.f32 %v732, %v736
    %v741 = vadd.f32 %v733, %v737
    %v742 = vadd.f32 %v734, %v738
    %v743 = vadd.f32 %v735, %v739
    %v744 = vmul.f32 %v134, %v81
    %v745 = vmul.f32 %v138, %v81
    %v746 = vmul.f32 %v142, %v81
    %v747 = vmul.f32 %v146, %v81
    %v748 = vadd.f32 %v740, %v744
    %v749 = vadd.f32 %v741, %v745
    %v750 = vadd.f32 %v742, %v746
    %v751 = vadd.f32 %v743, %v747
    %v752 = vadd.f32 %v748, %v155
    %v753 = vadd.f32 %v749, %v160
    %v754 = vadd.f32 %v750, %v165
    %v755 = vadd.f32 %v751, %v170
    %v756 = vmul.f32 %v99, %v80
    %v757 = vmul.f32 %v104, %v80
    %v758 = vmul.f32 %v109, %v80
    %v759 = vmul.f32 %v114, %v80
    %v760 = vmul.f32 %v118, %v81
    %v761 = vmul.f32 %v122, %v81
    %v762 = vmul.f32 %v126, %v81
    %v763 = vmul.f32 %v130, %v81
    %v764 = vadd.f32 %v756, %v760
    %v765 = vadd.f32 %v757, %v761
    %v766 = vadd.f32 %v758, %v762
    %v767 = vadd.f32 %v759, %v763
    %v768 = vmul.f32 %v134, %v82
    %v769 = vmul.f32 %v138, %v82
    %v770 = vmul.f32 %v142, %v82
    %v771 = vmul.f32 %v146, %v82
    %v772 = vadd.f32 %v764, %v768
    %v773 = vadd.f32 %v765, %v769
    %v774 = vadd.f32 %v766, %v770
    %v775 = vadd.f32 %v767, %v771
    %v776 = vadd.f32 %v772, %v155
    %v777 = vadd.f32 %v773, %v160
    %v778 = vadd.f32 %v774, %v165
    %v779 = vadd.f32 %v775, %v170
    %v780 = vmax.f32 %v752, %v776
    %v781 = vmax.f32 %v753, %v777
    %v782 = vmax.f32 %v754, %v778
    %v783 = vmax.f32 %v755, %v779
    %v784 = vmax.f32 %v780, 0.0
    %v785 = vmax.f32 %v781, 0.0
    %v786 = vmax.f32 %v782, 0.0
    %v787 = vmax.f32 %v783, 0.0
    %v788 = vmul.f32 %v99, %v81
    %v789 = vmul.f32 %v104, %v81
    %v790 = vmul.f32 %v109, %v81
    %v791 = vmul.f32 %v114, %v81
    %v792 = vmul.f32 %v118, %v82
    %v793 = vmul.f32 %v122, %v82
    %v794 = vmul.f32 %v126, %v82
    %v795 = vmul.f32 %v130, %v82
    %v796 = vadd.f32 %v788, %v792
    %v797 = vadd.f32 %v789, %v793
    %v798 = vadd.f32 %v790, %v794
    %v799 = vadd.f32 %v791, %v795
    %v800 = vmul.f32 %v134, %v83
    %v801 = vmul.f32 %v138, %v83
    %v802 = vmul.f32 %v142, %v83
    %v803 = vmul.f32 %v146, %v83
    %v804 = vadd.f32 %v796, %v800
    %v805 = vadd.f32 %v797, %v801
    %v806 = vadd.f32 %v798, %v802
    %v807 = vadd.f32 %v799, %v803
    %v808 = vadd.f32 %v804, %v155
    %v809 = vadd.f32 %v805, %v160
    %v810 = vadd.f32 %v806, %v165
    %v811 = vadd.f32 %v807, %v170
    %v812 = vmul.f32 %v99, %v82
    %v813 = vmul.f32 %v104, %v82
    %v814 = vmul.f32 %v109, %v82
    %v815 = vmul.f32 %v114, %v82
    %v816 = vmul.f32 %v118, %v83
    %v817 = vmul.f32 %v122, %v83
    %v818 = vmul.f32 %v126, %v83
    %v819 = vmul.f32 %v130, %v83
    %v820 = vadd.f32 %v812, %v816
    %v821 = vadd.f32 %v813, %v817
    %v822 = vadd.f32 %v814, %v818
    %v823 = vadd.f32 %v815, %v819
    %v824 = vmul.f32 %v134, %v84
    %v825 = vmul.f32 %v138, %v84
    %v826 = vmul.f32 %v142, %v84
    %v827 = vmul.f32 %v146, %v84
    %v828 = vadd.f32 %v820, %v824
    %v829 = vadd.f32 %v821, %v825
    %v830 = vadd.f32 %v822, %v826
    %v831 = vadd.f32 %v823, %v827
    %v832 = vadd.f32 %v828, %v155
    %v833 = vadd.f32 %v829, %v160
    %v834 = vadd.f32 %v830, %v165
    %v835 = vadd.f32 %v831, %v170
    %v836 = vmax.f32 %v808, %v832
    %v837 = vmax.f32 %v809, %v833
    %v838 = vmax.f32 %v810, %v834
    %v839 = vmax.f32 %v811, %v835
    %v840 = vmax.f32 %v836, 0.0
    %v841 = vmax.f32 %v837, 0.0
    %v842 = vmax.f32 %v838, 0.0
    %v843 = vmax.f32 %v839, 0.0
    %v844 = vmul.f32 %v99, %v83
    %v845 = vmul.f32 %v104, %v83
    %v846 = vmul.f32 %v109, %v83
    %v847 = vmul.f32 %v114, %v83
    %v848 = vmul.f32 %v118, %v84
    %v849 = vmul.f32 %v122, %v84
    %v850 = vmul.f32 %v126, %v84
    %v851 = vmul.f32 %v130, %v84
    %v852 = vadd.f32 %v844, %v848
    %v853 = vadd.f32 %v845, %v849
    %v854 = vadd.f32 %v846, %v850
    %v855 = vadd.f32 %v847, %v851
    %v856 = vmul.f32 %v134, %v85
    %v857 = vmul.f32 %v138, %v85
    %v858 = vmul.f32 %v142, %v85
    %v859 = vmul.f32 %v146, %v85
    %v860 = vadd.f32 %v852, %v856
    %v861 = vadd.f32 %v853, %v857
    %v862 = vadd.f32 %v854, %v858
    %v863 = vadd.f32 %v855, %v859
    %v864 = vadd.f32 %v860, %v155
    %v865 = vadd.f32 %v861, %v160
    %v866 = vadd.f32 %v862, %v165
    %v867 = vadd.f32 %v863, %v170
    %v868 = vmul.f32 %v99, %v84
    %v869 = vmul.f32 %v104, %v84
    %v870 = vmul.f32 %v109, %v84
    %v871 = vmul.f32 %v114, %v84
    %v872 = vmul.f32 %v118, %v85
    %v873 = vmul.f32 %v122, %v85
    %v874 = vmul.f32 %v126, %v85
    %v875 = vmul.f32 %v130, %v85
    %v876 = vadd.f32 %v868, %v872
    %v877 = vadd.f32 %v869, %v873
    %v878 = vadd.f32 %v870, %v874
    %v879 = vadd.f32 %v871, %v875
    %v880 = vmul.f32 %v134, %v86
    %v881 = vmul.f32 %v138, %v86
    %v882 = vmul.f32 %v142, %v86
    %v883 = vmul.f32 %v146, %v86
    %v884 = vadd.f32 %v876, %v880
    %v885 = vadd.f32 %v877, %v881
    %v886 = vadd.f32 %v878, %v882
    %v887 = vadd.f32 %v879, %v883
    %v888 = vadd.f32 %v884, %v155
    %v889 = vadd.f32 %v885, %v160
    %v890 = vadd.f32 %v886, %v165
    %v891 = vadd.f32 %v887, %v170
    %v892 = vmax.f32 %v864, %v888
    %v893 = vmax.f32 %v865, %v889
    %v894 = vmax.f32 %v866, %v890
    %v895 = vmax.f32 %v867, %v891
    %v896 = vmax.f32 %v892, 0.0
    %v897 = vmax.f32 %v893, 0.0
    %v898 = vmax.f32 %v894, 0.0
    %v899 = vmax.f32 %v895, 0.0
    %v900 = vmul.f32 %v99, %v85
    %v901 = vmul.f32 %v104, %v85
    %v902 = vmul.f32 %v109, %v85
    %v903 = vmul.f32 %v114, %v85
    %v904 = vmul.f32 %v118, %v86
    %v905 = vmul.f32 %v122, %v86
    %v906 = vmul.f32 %v126, %v86
    %v907 = vmul.f32 %v130, %v86
    %v908 = vadd.f32 %v900, %v904
    %v909 = vadd.f32 %v901, %v905
    %v910 = vadd.f32 %v902, %v906
    %v911 = vadd.f32 %v903, %v907
    %v912 = vmul.f32 %v134, %v87
    %v913 = vmul.f32 %v138, %v87
    %v914 = vmul.f32 %v142, %v87
    %v915 = vmul.f32 %v146, %v87
    %v916 = vadd.f32 %v908, %v912
    %v917 = vadd.f32 %v909, %v913
    %v918 = vadd.f32 %v910, %v914
    %v919 = vadd.f32 %v911, %v915
    %v920 = vadd.f32 %v916, %v155
    %v921 = vadd.f32 %v917, %v160
    %v922 = vadd.f32 %v918, %v165
    %v923 = vadd.f32 %v919, %v170
    %v924 = vmul.f32 %v99, %v86
    %v925 = vmul.f32 %v104, %v86
    %v926 = vmul.f32 %v109, %v86
    %v927 = vmul.f32 %v114, %v86
    %v928 = vmul.f32 %v118, %v87
    %v929 = vmul.f32 %v122, %v87
    %v930 = vmul.f32 %v126, %v87
    %v931 = vmul.f32 %v130, %v87
    %v932 = vadd.f32 %v924, %v928
    %v933 = vadd.f32 %v925, %v929
    %v934 = vadd.f32 %v926, %v930
    %v935 = vadd.f32 %v927, %v931
    %v936 = vmul.f32 %v134, %v88
    %v937 = vmul.f32 %v138, %v88
    %v938 = vmul.f32 %v142, %v88
    %v939 = vmul.f32 %v146, %v88
    %v940 = vadd.f32 %v932, %v936
    %v941 = vadd.f32 %v933, %v937
    %v942 = vadd.f32 %v934, %v938
    %v943 = vadd.f32 %v935, %v939
    %v944 = vadd.f32 %v940, %v155
    %v945 = vadd.f32 %v941, %v160
    %v946 = vadd.f32 %v942, %v165
    %v947 = vadd.f32 %v943, %v170
    %v948 = vmax.f32 %v920, %v944
    %v949 = vmax.f32 %v921, %v945
    %v950 = vmax.f32 %v922, %v946
    %v951 = vmax.f32 %v923, %v947
    %v952 = vmax.f32 %v948, 0.0
    %v953 = vmax.f32 %v949, 0.0
    %v954 = vmax.f32 %v950, 0.0
    %v955 = vmax.f32 %v951, 0.0
    %v956 = vmul.f32 %v99, %v87
    %v957 = vmul.f32 %v104, %v87
    %v958 = vmul.f32 %v109, %v87
    %v959 = vmul.f32 %v114, %v87
    %v960 = vmul.f32 %v118, %v88
    %v961 = vmul.f32 %v122, %v88
    %v962 = vmul.f32 %v126, %v88
    %v963 = vmul.f32 %v130, %v88
    %v964 = vadd.f32 %v956, %v960
    %v965 = vadd.f32 %v957, %v961
    %v966 = vadd.f32 %v958, %v962
    %v967 = vadd.f32 %v959, %v963
    %v968 = vmul.f32 %v134, %v89
    %v969 = vmul.f32 %v138, %v89
    %v970 = vmul.f32 %v142, %v89
    %v971 = vmul.f32 %v146, %v89
    %v972 = vadd.f32 %v964, %v968
    %v973 = vadd.f32 %v965, %v969
    %v974 = vadd.f32 %v966, %v970
    %v975 = vadd.f32 %v967, %v971
    %v976 = vadd.f32 %v972, %v155
    %v977 = vadd.f32 %v973, %v160
    %v978 = vadd.f32 %v974, %v165
    %v979 = vadd.f32 %v975, %v170
    %v980 = vmul.f32 %v99, %v88
    %v981 = vmul.f32 %v104, %v88
    %v982 = vmul.f32 %v109, %v88
    %v983 = vmul.f32 %v114, %v88
    %v984 = vmul.f32 %v118, %v89
    %v985 = vmul.f32 %v122, %v89
    %v986 = vmul.f32 %v126, %v89
    %v987 = vmul.f32 %v130, %v89
    %v988 = vadd.f32 %v980, %v984
    %v989 = vadd.f32 %v981, %v985
    %v990 = vadd.f32 %v982, %v986
    %v991 = vadd.f32 %v983, %v987
    %v992 = vmul.f32 %v134, %v90
    %v993 = vmul.f32 %v138, %v90
    %v994 = vmul.f32 %v142, %v90
    %v995 = vmul.f32 %v146, %v90
    %v996 = vadd.f32 %v988, %v992
    %v997 = vadd.f32 %v989, %v993
    %v998 = vadd.f32 %v990, %v994
    %v999 = vadd.f32 %v991, %v995
    %v1000 = vadd.f32 %v996, %v155
    %v1001 = vadd.f32 %v997, %v160
    %v1002 = vadd.f32 %v998, %v165
    %v1003 = vadd.f32 %v999, %v170
    %v1004 = vmax.f32 %v976, %v1000
    %v1005 = vmax.f32 %v977, %v1001
    %v1006 = vmax.f32 %v978, %v1002
    %v1007 = vmax.f32 %v979, %v1003
    %v1008 = vmax.f32 %v1004, 0.0
    %v1009 = vmax.f32 %v1005, 0.0
    %v1010 = vmax.f32 %v1006, 0.0
    %v1011 = vmax.f32 %v1007, 0.0
    %v1012 = vmul.f32 %v99, %v89
    %v1013 = vmul.f32 %v104, %v89
    %v1014 = vmul.f32 %v109, %v89
    %v1015 = vmul.f32 %v114, %v89
    %v1016 = vmul.f32 %v118, %v90
    %v1017 = vmul.f32 %v122, %v90
    %v1018 = vmul.f32 %v126, %v90
    %v1019 = vmul.f32 %v130, %v90
    %v1020 = vadd.f32 %v1012, %v1016
    %v1021 = vadd.f32 %v1013, %v1017
    %v1022 = vadd.f32 %v1014, %v1018
    %v1023 = vadd.f32 %v1015, %v1019
    %v1024 = vmul.f32 %v134, %v91
    %v1025 = vmul.f32 %v138, %v91
    %v1026 = vmul.f32 %v142, %v91
    %v1027 = vmul.f32 %v146, %v91
    %v1028 = vadd.f32 %v1020, %v1024
    %v1029 = vadd.f32 %v1021, %v1025
    %v1030 = vadd.f32 %v1022, %v1026
    %v1031 = vadd.f32 %v1023, %v1027
    %v1032 = vadd.f32 %v1028, %v155
    %v1033 = vadd.f32 %v1029, %v160
    %v1034 = vadd.f32 %v1030, %v165
    %v1035 = vadd.f32 %v1031, %v170
    %v1036 = vmul.f32 %v99, %v90
    %v1037 = vmul.f32 %v104, %v90
    %v1038 = vmul.f32 %v109, %v90
    %v1039 = vmul.f32 %v114, %v90
    %v1040 = vmul.f32 %v118, %v91
    %v1041 = vmul.f32 %v122, %v91
    %v1042 = vmul.f32 %v126, %v91
    %v1043 = vmul.f32 %v130, %v91
    %v1044 = vadd.f32 %v1036, %v1040
    %v1045 = vadd.f32 %v1037, %v1041
    %v1046 = vadd.f32 %v1038, %v1042
    %v1047 = vadd.f32 %v1039, %v1043
    %v1048 = vmul.f32 %v134, 0.0
    %v1049 = vmul.f32 %v138, 0.0
    %v1050 = vmul.f32 %v142, 0.0
    %v1051 = vmul.f32 %v146, 0.0
    %v1052 = vadd.f32 %v1044, %v1048
    %v1053 = vadd.f32 %v1045, %v1049
    %v1054 = vadd.f32 %v1046, %v1050
    %v1055 = vadd.f32 %v1047, %v1051
    %v1056 = vadd.f32 %v1052, %v155
    %v1057 = vadd.f32 %v1053, %v160
    %v1058 = vadd.f32 %v1054, %v165
    %v1059 = vadd.f32 %v1055, %v170
    %v1060 = vmax.f32 %v1032, %v1056
    %v1061 = vmax.f32 %v1033, %v1057
    %v1062 = vmax.f32 %v1034, %v1058
    %v1063 = vmax.f32 %v1035, %v1059
    %v1064 = vmax.f32 %v1060, 0.0
    %v1065 = vmax.f32 %v1061, 0.0
    %v1066 = vmax.f32 %v1062, 0.0
    %v1067 = vmax.f32 %v1063, 0.0
    %v1068 = vld [vmem:[%s3] sm:$0xff]
    %v1069 = vld [vmem:[%s3 + $0x8] sm:$0xff]
    %v1070 = vld [vmem:[%s3 + $0x10] sm:$0xff]
    %v1071 = vld [vmem:[%s3 + $0x18] sm:$0xff]
    %v1072 = vld [vmem:[%s3 + $0x20] sm:$0xff]
    %v1073 = vld [vmem:[%s3 + $0x28] sm:$0xff]
    %v1074 = vld [vmem:[%s3 + $0x30] sm:$0xff]
    %v1075 = vld [vmem:[%s3 + $0x38] sm:$0xff]
    %v1076 = vld [vmem:[%s4] sm:$0xff]
    %v1077 = vld [vmem:[%s4 + $0x8] sm:$0xff]
    %v1078 = vld [vmem:[%s4 + $0x10] sm:$0xff]
    %v1079 = vld [vmem:[%s4 + $0x18] sm:$0xff]
    %v1080 = vld [vmem:[%s4 + $0x20] sm:$0xff]
    %v1081 = vld [vmem:[%s4 + $0x28] sm:$0xff]
    %v1082 = vld [vmem:[%s4 + $0x30] sm:$0xff]
    %v1083 = vld [vmem:[%s4 + $0x38] sm:$0xff]
    %1085 = vset.pattern.permute.xlu0 0
    %1086 = vperm.xlu0 %1085, %v1076
    %v1087 = vpop.permute.xlu0 %1086
    %1090 = vset.pattern.permute.xlu0 0
    %1091 = vperm.xlu0 %1090, %v1077
    %v1092 = vpop.permute.xlu0 %1091
    %1095 = vset.pattern.permute.xlu0 0
    %1096 = vperm.xlu0 %1095, %v1078
    %v1097 = vpop.permute.xlu0 %1096
    %1100 = vset.pattern.permute.xlu0 0
    %1101 = vperm.xlu0 %1100, %v1079
    %v1102 = vpop.permute.xlu0 %1101
    %1105 = vset.pattern.permute.xlu0 0
    %1106 = vperm.xlu0 %1105, %v1080
    %v1107 = vpop.permute.xlu0 %1106
    %1110 = vset.pattern.permute.xlu0 0
    %1111 = vperm.xlu0 %1110, %v1081
    %v1112 = vpop.permute.xlu0 %1111
    %1115 = vset.pattern.permute.xlu0 0
    %1116 = vperm.xlu0 %1115, %v1082
    %v1117 = vpop.permute.xlu0 %1116
    %1120 = vset.pattern.permute.xlu0 0
    %1121 = vperm.xlu0 %1120, %v1083
    %v1122 = vpop.permute.xlu0 %1121
    %v1124 = vld [vmem:[%s5] sm:$0xff]
    %v1125 = vld [vmem:[%s5 + $0x8] sm:$0xff]
    %v1126 = vld [vmem:[%s5 + $0x10] sm:$0xff]
    %v1127 = vld [vmem:[%s5 + $0x18] sm:$0xff]
    %v1128 = vld [vmem:[%s5 + $0x20] sm:$0xff]
    %v1129 = vld [vmem:[%s5 + $0x28] sm:$0xff]
    %v1130 = vld [vmem:[%s5 + $0x30] sm:$0xff]
    %v1131 = vld [vmem:[%s5 + $0x38] sm:$0xff]
    %v1132 = vld [vmem:[%s5 + $0x40] sm:$0xff]
    %v1133 = vld [vmem:[%s5 + $0x48] sm:$0xff]
    %v1134 = vld [vmem:[%s5 + $0x50] sm:$0xff]
    %v1135 = vld [vmem:[%s5 + $0x58] sm:$0xff]
    %v1136 = vld [vmem:[%s5 + $0x60] sm:$0xff]
    %v1137 = vld [vmem:[%s5 + $0x68] sm:$0xff]
    %v1138 = vld [vmem:[%s5 + $0x70] sm:$0xff]
    %v1139 = vld [vmem:[%s5 + $0x78] sm:$0xff]
    %v1140 = vld [vmem:[%s5 + $0x80] sm:$0xff]
    %v1141 = vld [vmem:[%s5 + $0x88] sm:$0xff]
    %v1142 = vld [vmem:[%s5 + $0x90] sm:$0xff]
    %v1143 = vld [vmem:[%s5 + $0x98] sm:$0xff]
    %v1144 = vld [vmem:[%s5 + $0xa0] sm:$0xff]
    %v1145 = vld [vmem:[%s5 + $0xa8] sm:$0xff]
    %v1146 = vld [vmem:[%s5 + $0xb0] sm:$0xff]
    %v1147 = vld [vmem:[%s5 + $0xb8] sm:$0xff]
    %v1148 = vld [vmem:[%s5 + $0xc0] sm:$0xff]
    %v1149 = vld [vmem:[%s5 + $0xc8] sm:$0xff]
    %v1150 = vld [vmem:[%s5 + $0xd0] sm:$0xff]
    %v1151 = vld [vmem:[%s5 + $0xd8] sm:$0xff]
    %v1152 = vld [vmem:[%s5 + $0xe0] sm:$0xff]
    %v1153 = vld [vmem:[%s5 + $0xe8] sm:$0xff]
    %v1154 = vld [vmem:[%s5 + $0xf0] sm:$0xff]
    %v1155 = vld [vmem:[%s5 + $0xf8] sm:$0xff]
    %v1156 = vld [vmem:[%s5 + $0x100] sm:$0xff]
    %v1157 = vld [vmem:[%s5 + $0x108] sm:$0xff]
    %v1158 = vld [vmem:[%s5 + $0x110] sm:$0xff]
    %v1159 = vld [vmem:[%s5 + $0x118] sm:$0xff]
    %v1160 = vld [vmem:[%s5 + $0x120] sm:$0xff]
    %v1161 = vld [vmem:[%s5 + $0x128] sm:$0xff]
    %v1162 = vld [vmem:[%s5 + $0x130] sm:$0xff]
    %v1163 = vld [vmem:[%s5 + $0x138] sm:$0xff]
    %v1164 = vld [vmem:[%s5 + $0x140] sm:$0xff]
    %v1165 = vld [vmem:[%s5 + $0x148] sm:$0xff]
    %v1166 = vld [vmem:[%s5 + $0x150] sm:$0xff]
    %v1167 = vld [vmem:[%s5 + $0x158] sm:$0xff]
    %v1168 = vld [vmem:[%s5 + $0x160] sm:$0xff]
    %v1169 = vld [vmem:[%s5 + $0x168] sm:$0xff]
    %v1170 = vld [vmem:[%s5 + $0x170] sm:$0xff]
    %v1171 = vld [vmem:[%s5 + $0x178] sm:$0xff]
    %v1172 = vld [vmem:[%s5 + $0x180] sm:$0xff]
    %v1173 = vld [vmem:[%s5 + $0x188] sm:$0xff]
    %v1174 = vld [vmem:[%s5 + $0x190] sm:$0xff]
    %v1175 = vld [vmem:[%s5 + $0x198] sm:$0xff]
    %v1176 = vld [vmem:[%s5 + $0x1a0] sm:$0xff]
    %v1177 = vld [vmem:[%s5 + $0x1a8] sm:$0xff]
    %v1178 = vld [vmem:[%s5 + $0x1b0] sm:$0xff]
    %v1179 = vld [vmem:[%s5 + $0x1b8] sm:$0xff]
    %v1180 = vld [vmem:[%s5 + $0x1c0] sm:$0xff]
    %v1181 = vld [vmem:[%s5 + $0x1c8] sm:$0xff]
    %v1182 = vld [vmem:[%s5 + $0x1d0] sm:$0xff]
    %v1183 = vld [vmem:[%s5 + $0x1d8] sm:$0xff]
    %v1184 = vld [vmem:[%s5 + $0x1e0] sm:$0xff]
    %v1185 = vld [vmem:[%s5 + $0x1e8] sm:$0xff]
    %v1186 = vld [vmem:[%s5 + $0x1f0] sm:$0xff]
    %v1187 = vld [vmem:[%s5 + $0x1f8] sm:$0xff]
    %v1188 = vld [vmem:[%s5 + $0x200] sm:$0xff]
    %v1189 = vld [vmem:[%s5 + $0x208] sm:$0xff]
    %v1190 = vld [vmem:[%s5 + $0x210] sm:$0xff]
    %v1191 = vld [vmem:[%s5 + $0x218] sm:$0xff]
    %v1192 = vld [vmem:[%s5 + $0x220] sm:$0xff]
    %v1193 = vld [vmem:[%s5 + $0x228] sm:$0xff]
    %v1194 = vld [vmem:[%s5 + $0x230] sm:$0xff]
    %v1195 = vld [vmem:[%s5 + $0x238] sm:$0xff]
    %v1196 = vld [vmem:[%s5 + $0x240] sm:$0xff]
    %v1197 = vld [vmem:[%s5 + $0x248] sm:$0xff]
    %v1198 = vld [vmem:[%s5 + $0x250] sm:$0xff]
    %v1199 = vld [vmem:[%s5 + $0x258] sm:$0xff]
    %v1200 = vld [vmem:[%s5 + $0x260] sm:$0xff]
    %v1201 = vld [vmem:[%s5 + $0x268] sm:$0xff]
    %v1202 = vld [vmem:[%s5 + $0x270] sm:$0xff]
    %v1203 = vld [vmem:[%s5 + $0x278] sm:$0xff]
    %v1204 = vld [vmem:[%s5 + $0x280] sm:$0xff]
    %v1205 = vld [vmem:[%s5 + $0x288] sm:$0xff]
    %v1206 = vld [vmem:[%s5 + $0x290] sm:$0xff]
    %v1207 = vld [vmem:[%s5 + $0x298] sm:$0xff]
    %v1208 = vld [vmem:[%s5 + $0x2a0] sm:$0xff]
    %v1209 = vld [vmem:[%s5 + $0x2a8] sm:$0xff]
    %v1210 = vld [vmem:[%s5 + $0x2b0] sm:$0xff]
    %v1211 = vld [vmem:[%s5 + $0x2b8] sm:$0xff]
    %v1212 = vld [vmem:[%s5 + $0x2c0] sm:$0xff]
    %v1213 = vld [vmem:[%s5 + $0x2c8] sm:$0xff]
    %v1214 = vld [vmem:[%s5 + $0x2d0] sm:$0xff]
    %v1215 = vld [vmem:[%s5 + $0x2d8] sm:$0xff]
    %v1216 = vld [vmem:[%s5 + $0x2e0] sm:$0xff]
    %v1217 = vld [vmem:[%s5 + $0x2e8] sm:$0xff]
    %v1218 = vld [vmem:[%s5 + $0x2f0] sm:$0xff]
    %v1219 = vld [vmem:[%s5 + $0x2f8] sm:$0xff]
    %v1220 = vld [vmem:[%s5 + $0x300] sm:$0xff]
    %v1221 = vld [vmem:[%s5 + $0x308] sm:$0xff]
    %v1222 = vld [vmem:[%s5 + $0x310] sm:$0xff]
    %v1223 = vld [vmem:[%s5 + $0x318] sm:$0xff]
    %v1224 = vld [vmem:[%s5 + $0x320] sm:$0xff]
    %v1225 = vld [vmem:[%s5 + $0x328] sm:$0xff]
    %v1226 = vld [vmem:[%s5 + $0x330] sm:$0xff]
    %v1227 = vld [vmem:[%s5 + $0x338] sm:$0xff]
    %v1228 = vld [vmem:[%s5 + $0x340] sm:$0xff]
    %v1229 = vld [vmem:[%s5 + $0x348] sm:$0xff]
    %v1230 = vld [vmem:[%s5 + $0x350] sm:$0xff]
    %v1231 = vld [vmem:[%s5 + $0x358] sm:$0xff]
    %v1232 = vld [vmem:[%s5 + $0x360] sm:$0xff]
    %v1233 = vld [vmem:[%s5 + $0x368] sm:$0xff]
    %v1234 = vld [vmem:[%s5 + $0x370] sm:$0xff]
    %v1235 = vld [vmem:[%s5 + $0x378] sm:$0xff]
    %v1236 = vld [vmem:[%s5 + $0x380] sm:$0xff]
    %v1237 = vld [vmem:[%s5 + $0x388] sm:$0xff]
    %v1238 = vld [vmem:[%s5 + $0x390] sm:$0xff]
    %v1239 = vld [vmem:[%s5 + $0x398] sm:$0xff]
    %v1240 = vld [vmem:[%s5 + $0x3a0] sm:$0xff]
    %v1241 = vld [vmem:[%s5 + $0x3a8] sm:$0xff]
    %v1242 = vld [vmem:[%s5 + $0x3b0] sm:$0xff]
    %v1243 = vld [vmem:[%s5 + $0x3b8] sm:$0xff]
    %v1244 = vld [vmem:[%s5 + $0x3c0] sm:$0xff]
    %v1245 = vld [vmem:[%s5 + $0x3c8] sm:$0xff]
    %v1246 = vld [vmem:[%s5 + $0x3d0] sm:$0xff]
    %v1247 = vld [vmem:[%s5 + $0x3d8] sm:$0xff]
    %v1248 = vld [vmem:[%s5 + $0x3e0] sm:$0xff]
    %v1249 = vld [vmem:[%s5 + $0x3e8] sm:$0xff]
    %v1250 = vld [vmem:[%s5 + $0x3f0] sm:$0xff]
    %v1251 = vld [vmem:[%s5 + $0x3f8] sm:$0xff]
    %vm1252 = vcmask 785408
    %v1254 = vsel %vm1252, %v1068, 0
    %v1257 = vsel %vm1252, %v1069, 0
    %v1260 = vsel %vm1252, %v1070, 0
    %v1263 = vsel %vm1252, %v1071, 0
    %v1266 = vsel %vm1252, %v1072, 0
    %v1269 = vsel %vm1252, %v1073, 0
    %v1272 = vsel %vm1252, %v1074, 0
    %v1275 = vsel %vm1252, %v1075, 0
    %1277 = vmatpush.msra.mxu0 0.0
    %1278 = vmatpush.msra.mxu0 0.0
    %1279 = vmatpush.msra.mxu0 0.0
    %1280 = vmatpush.msra.mxu0 0.0
    %1281 = vmatpush.msra.mxu0 %v283
    %1282 = vmatpush.msra.mxu0 %v282
    %1283 = vmatpush.msra.mxu0 %v281
    %1284 = vmatpush.msra.mxu0 %v280
    %1285 = vmatpush.msra.mxu0 %v227
    %1286 = vmatpush.msra.mxu0 %v226
    %1287 = vmatpush.msra.mxu0 %v225
    %1288 = vmatpush.msra.mxu0 %v224
    %1289 = vmatpush.msra.mxu0 0.0
    %1290 = vmatpush.msra.mxu0 0.0
    %1291 = vmatpush.msra.mxu0 0.0
    %1292 = vmatpush.msra.mxu0 0.0
    %1293 = vmatmul.f32.gmra.mxu0 %v1254
    %v1294 = vpop.f32.mrf.mxu0
    %v1295 = vadd.f32 %v1087, %v1294
    %1296 = vmatmul.f32.gmra.mxu0 %v1257
    %v1297 = vpop.f32.mrf.mxu0
    %v1298 = vadd.f32 %v1092, %v1297
    %1299 = vmatmul.f32.gmra.mxu0 %v1260
    %v1300 = vpop.f32.mrf.mxu0
    %v1301 = vadd.f32 %v1097, %v1300
    %1302 = vmatmul.f32.gmra.mxu0 %v1263
    %v1303 = vpop.f32.mrf.mxu0
    %v1304 = vadd.f32 %v1102, %v1303
    %1305 = vmatmul.f32.gmra.mxu0 %v1266
    %v1306 = vpop.f32.mrf.mxu0
    %v1307 = vadd.f32 %v1107, %v1306
    %1308 = vmatmul.f32.gmra.mxu0 %v1269
    %v1309 = vpop.f32.mrf.mxu0
    %v1310 = vadd.f32 %v1112, %v1309
    %1311 = vmatmul.f32.gmra.mxu0 %v1272
    %v1312 = vpop.f32.mrf.mxu0
    %v1313 = vadd.f32 %v1117, %v1312
    %1314 = vmatmul.f32.gmra.mxu0 %v1275
    %v1315 = vpop.f32.mrf.mxu0
    %v1316 = vadd.f32 %v1122, %v1315
    %1317 = vdwg.mxu0
    %v1318 = vmax.f32 %v1295, 0.0
    %v1319 = vmax.f32 %v1298, 0.0
    %v1320 = vmax.f32 %v1301, 0.0
    %v1321 = vmax.f32 %v1304, 0.0
    %v1322 = vmax.f32 %v1307, 0.0
    %v1323 = vmax.f32 %v1310, 0.0
    %v1324 = vmax.f32 %v1313, 0.0
    %v1325 = vmax.f32 %v1316, 0.0
    %1326 = vmatpush.msra.mxu0 0.0
    %1327 = vmatpush.msra.mxu0 0.0
    %1328 = vmatpush.msra.mxu0 0.0
    %1329 = vmatpush.msra.mxu0 0.0
    %1330 = vmatpush.msra.mxu0 %v339
    %1331 = vmatpush.msra.mxu0 %v338
    %1332 = vmatpush.msra.mxu0 %v337
    %1333 = vmatpush.msra.mxu0 %v336
    %1334 = vmatpush.msra.mxu0 %v283
    %1335 = vmatpush.msra.mxu0 %v282
    %1336 = vmatpush.msra.mxu0 %v281
    %1337 = vmatpush.msra.mxu0 %v280
    %1338 = vmatpush.msra.mxu0 %v227
    %1339 = vmatpush.msra.mxu0 %v226
    %1340 = vmatpush.msra.mxu0 %v225
    %1341 = vmatpush.msra.mxu0 %v224
    %1342 = vmatmul.f32.gmra.mxu0 %v1254
    %v1343 = vpop.f32.mrf.mxu0
    %v1344 = vadd.f32 %v1087, %v1343
    %1345 = vmatmul.f32.gmra.mxu0 %v1257
    %v1346 = vpop.f32.mrf.mxu0
    %v1347 = vadd.f32 %v1092, %v1346
    %1348 = vmatmul.f32.gmra.mxu0 %v1260
    %v1349 = vpop.f32.mrf.mxu0
    %v1350 = vadd.f32 %v1097, %v1349
    %1351 = vmatmul.f32.gmra.mxu0 %v1263
    %v1352 = vpop.f32.mrf.mxu0
    %v1353 = vadd.f32 %v1102, %v1352
    %1354 = vmatmul.f32.gmra.mxu0 %v1266
    %v1355 = vpop.f32.mrf.mxu0
    %v1356 = vadd.f32 %v1107, %v1355
    %1357 = vmatmul.f32.gmra.mxu0 %v1269
    %v1358 = vpop.f32.mrf.mxu0
    %v1359 = vadd.f32 %v1112, %v1358
    %1360 = vmatmul.f32.gmra.mxu0 %v1272
    %v1361 = vpop.f32.mrf.mxu0
    %v1362 = vadd.f32 %v1117, %v1361
    %1363 = vmatmul.f32.gmra.mxu0 %v1275
    %v1364 = vpop.f32.mrf.mxu0
    %v1365 = vadd.f32 %v1122, %v1364
    %1366 = vdwg.mxu0
    %v1367 = vmax.f32 %v1344, 0.0
    %v1368 = vmax.f32 %v1347, 0.0
    %v1369 = vmax.f32 %v1350, 0.0
    %v1370 = vmax.f32 %v1353, 0.0
    %v1371 = vmax.f32 %v1356, 0.0
    %v1372 = vmax.f32 %v1359, 0.0
    %v1373 = vmax.f32 %v1362, 0.0
    %v1374 = vmax.f32 %v1365, 0.0
    %v1375 = vmax.f32 %v1318, %v1367
    %v1376 = vmax.f32 %v1319, %v1368
    %v1377 = vmax.f32 %v1320, %v1369
    %v1378 = vmax.f32 %v1321, %v1370
    %v1379 = vmax.f32 %v1322, %v1371
    %v1380 = vmax.f32 %v1323, %v1372
    %v1381 = vmax.f32 %v1324, %v1373
    %v1382 = vmax.f32 %v1325, %v1374
    %1383 = vmatpush.msra.mxu0 0.0
    %1384 = vmatpush.msra.mxu0 0.0
    %1385 = vmatpush.msra.mxu0 0.0
    %1386 = vmatpush.msra.mxu0 0.0
    %1387 = vmatpush.msra.mxu0 %v395
    %1388 = vmatpush.msra.mxu0 %v394
    %1389 = vmatpush.msra.mxu0 %v393
    %1390 = vmatpush.msra.mxu0 %v392
    %1391 = vmatpush.msra.mxu0 %v339
    %1392 = vmatpush.msra.mxu0 %v338
    %1393 = vmatpush.msra.mxu0 %v337
    %1394 = vmatpush.msra.mxu0 %v336
    %1395 = vmatpush.msra.mxu0 %v283
    %1396 = vmatpush.msra.mxu0 %v282
    %1397 = vmatpush.msra.mxu0 %v281
    %1398 = vmatpush.msra.mxu0 %v280
    %1399 = vmatmul.f32.gmra.mxu0 %v1254
    %v1400 = vpop.f32.mrf.mxu0
    %v1401 = vadd.f32 %v1087, %v1400
    %1402 = vmatmul.f32.gmra.mxu0 %v1257
    %v1403 = vpop.f32.mrf.mxu0
    %v1404 = vadd.f32 %v1092, %v1403
    %1405 = vmatmul.f32.gmra.mxu0 %v1260
    %v1406 = vpop.f32.mrf.mxu0
    %v1407 = vadd.f32 %v1097, %v1406
    %1408 = vmatmul.f32.gmra.mxu0 %v1263
    %v1409 = vpop.f32.mrf.mxu0
    %v1410 = vadd.f32 %v1102, %v1409
    %1411 = vmatmul.f32.gmra.mxu0 %v1266
    %v1412 = vpop.f32.mrf.mxu0
    %v1413 = vadd.f32 %v1107, %v1412
    %1414 = vmatmul.f32.gmra.mxu0 %v1269
    %v1415 = vpop.f32.mrf.mxu0
    %v1416 = vadd.f32 %v1112, %v1415
    %1417 = vmatmul.f32.gmra.mxu0 %v1272
    %v1418 = vpop.f32.mrf.mxu0
    %v1419 = vadd.f32 %v1117, %v1418
    %1420 = vmatmul.f32.gmra.mxu0 %v1275
    %v1421 = vpop.f32.mrf.mxu0
    %v1422 = vadd.f32 %v1122, %v1421
    %1423 = vdwg.mxu0
    %v1424 = vmax.f32 %v1401, 0.0
    %v1425 = vmax.f32 %v1404, 0.0
    %v1426 = vmax.f32 %v1407, 0.0
    %v1427 = vmax.f32 %v1410, 0.0
    %v1428 = vmax.f32 %v1413, 0.0
    %v1429 = vmax.f32 %v1416, 0.0
    %v1430 = vmax.f32 %v1419, 0.0
    %v1431 = vmax.f32 %v1422, 0.0
    %1432 = vmatpush.msra.mxu0 0.0
    %1433 = vmatpush.msra.mxu0 0.0
    %1434 = vmatpush.msra.mxu0 0.0
    %1435 = vmatpush.msra.mxu0 0.0
    %1436 = vmatpush.msra.mxu0 %v451
    %1437 = vmatpush.msra.mxu0 %v450
    %1438 = vmatpush.msra.mxu0 %v449
    %1439 = vmatpush.msra.mxu0 %v448
    %1440 = vmatpush.msra.mxu0 %v395
    %1441 = vmatpush.msra.mxu0 %v394
    %1442 = vmatpush.msra.mxu0 %v393
    %1443 = vmatpush.msra.mxu0 %v392
    %1444 = vmatpush.msra.mxu0 %v339
    %1445 = vmatpush.msra.mxu0 %v338
    %1446 = vmatpush.msra.mxu0 %v337
    %1447 = vmatpush.msra.mxu0 %v336
    %1448 = vmatmul.f32.gmra.mxu0 %v1254
    %v1449 = vpop.f32.mrf.mxu0
    %v1450 = vadd.f32 %v1087, %v1449
    %1451 = vmatmul.f32.gmra.mxu0 %v1257
    %v1452 = vpop.f32.mrf.mxu0
    %v1453 = vadd.f32 %v1092, %v1452
    %1454 = vmatmul.f32.gmra.mxu0 %v1260
    %v1455 = vpop.f32.mrf.mxu0
    %v1456 = vadd.f32 %v1097, %v1455
    %1457 = vmatmul.f32.gmra.mxu0 %v1263
    %v1458 = vpop.f32.mrf.mxu0
    %v1459 = vadd.f32 %v1102, %v1458
    %1460 = vmatmul.f32.gmra.mxu0 %v1266
    %v1461 = vpop.f32.mrf.mxu0
    %v1462 = vadd.f32 %v1107, %v1461
    %1463 = vmatmul.f32.gmra.mxu0 %v1269
    %v1464 = vpop.f32.mrf.mxu0
    %v1465 = vadd.f32 %v1112, %v1464
    %1466 = vmatmul.f32.gmra.mxu0 %v1272
    %v1467 = vpop.f32.mrf.mxu0
    %v1468 = vadd.f32 %v1117, %v1467
    %1469 = vmatmul.f32.gmra.mxu0 %v1275
    %v1470 = vpop.f32.mrf.mxu0
    %v1471 = vadd.f32 %v1122, %v1470
    %1472 = vdwg.mxu0
    %v1473 = vmax.f32 %v1450, 0.0
    %v1474 = vmax.f32 %v1453, 0.0
    %v1475 = vmax.f32 %v1456, 0.0
    %v1476 = vmax.f32 %v1459, 0.0
    %v1477 = vmax.f32 %v1462, 0.0
    %v1478 = vmax.f32 %v1465, 0.0
    %v1479 = vmax.f32 %v1468, 0.0
    %v1480 = vmax.f32 %v1471, 0.0
    %v1481 = vmax.f32 %v1424, %v1473
    %v1482 = vmax.f32 %v1425, %v1474
    %v1483 = vmax.f32 %v1426, %v1475
    %v1484 = vmax.f32 %v1427, %v1476
    %v1485 = vmax.f32 %v1428, %v1477
    %v1486 = vmax.f32 %v1429, %v1478
    %v1487 = vmax.f32 %v1430, %v1479
    %v1488 = vmax.f32 %v1431, %v1480
    %vm1489 = vcmask 523264
    %v1491 = vsel %vm1489, %v1140, 0
    %v1494 = vsel %vm1489, %v1141, 0
    %v1497 = vsel %vm1489, %v1142, 0
    %v1500 = vsel %vm1489, %v1143, 0
    %v1503 = vsel %vm1489, %v1144, 0
    %v1506 = vsel %vm1489, %v1145, 0
    %v1509 = vsel %vm1489, %v1146, 0
    %v1512 = vsel %vm1489, %v1147, 0
    %v1515 = vsel %vm1489, %v1148, 0
    %v1518 = vsel %vm1489, %v1149, 0
    %v1521 = vsel %vm1489, %v1150, 0
    %v1524 = vsel %vm1489, %v1151, 0
    %v1527 = vsel %vm1489, %v1152, 0
    %v1530 = vsel %vm1489, %v1153, 0
    %v1533 = vsel %vm1489, %v1154, 0
    %v1536 = vsel %vm1489, %v1155, 0
    %1538 = vmatpush.msra.mxu0 0.0
    %1539 = vmatpush.msra.mxu0 0.0
    %1540 = vmatpush.msra.mxu0 0.0
    %1541 = vmatpush.msra.mxu0 0.0
    %1542 = vmatpush.msra.mxu0 0.0
    %1543 = vmatpush.msra.mxu0 0.0
    %1544 = vmatpush.msra.mxu0 0.0
    %1545 = vmatpush.msra.mxu0 0.0
    %1546 = vmatpush.msra.mxu0 %v1488
    %1547 = vmatpush.msra.mxu0 %v1487
    %1548 = vmatpush.msra.mxu0 %v1486
    %1549 = vmatpush.msra.mxu0 %v1485
    %1550 = vmatpush.msra.mxu0 %v1484
    %1551 = vmatpush.msra.mxu0 %v1483
    %1552 = vmatpush.msra.mxu0 %v1482
    %1553 = vmatpush.msra.mxu0 %v1481
    %1554 = vmatmul.f32.gmra.mxu0 %v1491
    %v1555 = vpop.f32.mrf.mxu0
    %v1556 = vadd.f32 0.0, %v1555
    %1557 = vmatmul.f32.gmra.mxu0 %v1494
    %v1558 = vpop.f32.mrf.mxu0
    %v1559 = vadd.f32 0.0, %v1558
    %1560 = vmatmul.f32.gmra.mxu0 %v1497
    %v1561 = vpop.f32.mrf.mxu0
    %v1562 = vadd.f32 0.0, %v1561
    %1563 = vmatmul.f32.gmra.mxu0 %v1500
    %v1564 = vpop.f32.mrf.mxu0
    %v1565 = vadd.f32 0.0, %v1564
    %1566 = vmatmul.f32.gmra.mxu0 %v1503
    %v1567 = vpop.f32.mrf.mxu0
    %v1568 = vadd.f32 0.0, %v1567
    %1569 = vmatmul.f32.gmra.mxu0 %v1506
    %v1570 = vpop.f32.mrf.mxu0
    %v1571 = vadd.f32 0.0, %v1570
    %1572 = vmatmul.f32.gmra.mxu0 %v1509
    %v1573 = vpop.f32.mrf.mxu0
    %v1574 = vadd.f32 0.0, %v1573
    %1575 = vmatmul.f32.gmra.mxu0 %v1512
    %v1576 = vpop.f32.mrf.mxu0
    %v1577 = vadd.f32 0.0, %v1576
    %1578 = vmatmul.f32.gmra.mxu0 %v1515
    %v1579 = vpop.f32.mrf.mxu0
    %v1580 = vadd.f32 0.0, %v1579
    %1581 = vmatmul.f32.gmra.mxu0 %v1518
    %v1582 = vpop.f32.mrf.mxu0
    %v1583 = vadd.f32 0.0, %v1582
    %1584 = vmatmul.f32.gmra.mxu0 %v1521
    %v1585 = vpop.f32.mrf.mxu0
    %v1586 = vadd.f32 0.0, %v1585
    %1587 = vmatmul.f32.gmra.mxu0 %v1524
    %v1588 = vpop.f32.mrf.mxu0
    %v1589 = vadd.f32 0.0, %v1588
    %1590 = vmatmul.f32.gmra.mxu0 %v1527
    %v1591 = vpop.f32.mrf.mxu0
    %v1592 = vadd.f32 0.0, %v1591
    %1593 = vmatmul.f32.gmra.mxu0 %v1530
    %v1594 = vpop.f32.mrf.mxu0
    %v1595 = vadd.f32 0.0, %v1594
    %1596 = vmatmul.f32.gmra.mxu0 %v1533
    %v1597 = vpop.f32.mrf.mxu0
    %v1598 = vadd.f32 0.0, %v1597
    %1599 = vmatmul.f32.gmra.mxu0 %v1536
    %v1600 = vpop.f32.mrf.mxu0
    %v1601 = vadd.f32 0.0, %v1600
    %1602 = vdwg.mxu0
    %v1604 = vsel %vm1489, %v1124, 0
    %v1607 = vsel %vm1489, %v1125, 0
    %v1610 = vsel %vm1489, %v1126, 0
    %v1613 = vsel %vm1489, %v1127, 0
    %v1616 = vsel %vm1489, %v1128, 0
    %v1619 = vsel %vm1489, %v1129, 0
    %v1622 = vsel %vm1489, %v1130, 0
    %v1625 = vsel %vm1489, %v1131, 0
    %v1628 = vsel %vm1489, %v1132, 0
    %v1631 = vsel %vm1489, %v1133, 0
    %v1634 = vsel %vm1489, %v1134, 0
    %v1637 = vsel %vm1489, %v1135, 0
    %v1640 = vsel %vm1489, %v1136, 0
    %v1643 = vsel %vm1489, %v1137, 0
    %v1646 = vsel %vm1489, %v1138, 0
    %v1649 = vsel %vm1489, %v1139, 0
    %1651 = vmatpush.msra.mxu0 0.0
    %1652 = vmatpush.msra.mxu0 0.0
    %1653 = vmatpush.msra.mxu0 0.0
    %1654 = vmatpush.msra.mxu0 0.0
    %1655 = vmatpush.msra.mxu0 0.0
    %1656 = vmatpush.msra.mxu0 0.0
    %1657 = vmatpush.msra.mxu0 0.0
    %1658 = vmatpush.msra.mxu0 0.0
    %1659 = vmatpush.msra.mxu0 %v1382
    %1660 = vmatpush.msra.mxu0 %v1381
    %1661 = vmatpush.msra.mxu0 %v1380
    %1662 = vmatpush.msra.mxu0 %v1379
    %1663 = vmatpush.msra.mxu0 %v1378
    %1664 = vmatpush.msra.mxu0 %v1377
    %1665 = vmatpush.msra.mxu0 %v1376
    %1666 = vmatpush.msra.mxu0 %v1375
    %1667 = vmatmul.f32.gmra.mxu0 %v1604
    %v1668 = vpop.f32.mrf.mxu0
    %v1669 = vadd.f32 %v1556, %v1668
    %1670 = vmatmul.f32.gmra.mxu0 %v1607
    %v1671 = vpop.f32.mrf.mxu0
    %v1672 = vadd.f32 %v1559, %v1671
    %1673 = vmatmul.f32.gmra.mxu0 %v1610
    %v1674 = vpop.f32.mrf.mxu0
    %v1675 = vadd.f32 %v1562, %v1674
    %1676 = vmatmul.f32.gmra.mxu0 %v1613
    %v1677 = vpop.f32.mrf.mxu0
    %v1678 = vadd.f32 %v1565, %v1677
    %1679 = vmatmul.f32.gmra.mxu0 %v1616
    %v1680 = vpop.f32.mrf.mxu0
    %v1681 = vadd.f32 %v1568, %v1680
    %1682 = vmatmul.f32.gmra.mxu0 %v1619
    %v1683 = vpop.f32.mrf.mxu0
    %v1684 = vadd.f32 %v1571, %v1683
    %1685 = vmatmul.f32.gmra.mxu0 %v1622
    %v1686 = vpop.f32.mrf.mxu0
    %v1687 = vadd.f32 %v1574, %v1686
    %1688 = vmatmul.f32.gmra.mxu0 %v1625
    %v1689 = vpop.f32.mrf.mxu0
    %v1690 = vadd.f32 %v1577, %v1689
    %1691 = vmatmul.f32.gmra.mxu0 %v1628
    %v1692 = vpop.f32.mrf.mxu0
    %v1693 = vadd.f32 %v1580, %v1692
    %1694 = vmatmul.f32.gmra.mxu0 %v1631
    %v1695 = vpop.f32.mrf.mxu0
    %v1696 = vadd.f32 %v1583, %v1695
    %1697 = vmatmul.f32.gmra.mxu0 %v1634
    %v1698 = vpop.f32.mrf.mxu0
    %v1699 = vadd.f32 %v1586, %v1698
    %1700 = vmatmul.f32.gmra.mxu0 %v1637
    %v1701 = vpop.f32.mrf.mxu0
    %v1702 = vadd.f32 %v1589, %v1701
    %1703 = vmatmul.f32.gmra.mxu0 %v1640
    %v1704 = vpop.f32.mrf.mxu0
    %v1705 = vadd.f32 %v1592, %v1704
    %1706 = vmatmul.f32.gmra.mxu0 %v1643
    %v1707 = vpop.f32.mrf.mxu0
    %v1708 = vadd.f32 %v1595, %v1707
    %1709 = vmatmul.f32.gmra.mxu0 %v1646
    %v1710 = vpop.f32.mrf.mxu0
    %v1711 = vadd.f32 %v1598, %v1710
    %1712 = vmatmul.f32.gmra.mxu0 %v1649
    %v1713 = vpop.f32.mrf.mxu0
    %v1714 = vadd.f32 %v1601, %v1713
    %1715 = vdwg.mxu0
    %1716 = vmatpush.msra.mxu0 0.0
    %1717 = vmatpush.msra.mxu0 0.0
    %1718 = vmatpush.msra.mxu0 0.0
    %1719 = vmatpush.msra.mxu0 0.0
    %1720 = vmatpush.msra.mxu0 %v507
    %1721 = vmatpush.msra.mxu0 %v506
    %1722 = vmatpush.msra.mxu0 %v505
    %1723 = vmatpush.msra.mxu0 %v504
    %1724 = vmatpush.msra.mxu0 %v451
    %1725 = vmatpush.msra.mxu0 %v450
    %1726 = vmatpush.msra.mxu0 %v449
    %1727 = vmatpush.msra.mxu0 %v448
    %1728 = vmatpush.msra.mxu0 %v395
    %1729 = vmatpush.msra.mxu0 %v394
    %1730 = vmatpush.msra.mxu0 %v393
    %1731 = vmatpush.msra.mxu0 %v392
    %1732 = vmatmul.f32.gmra.mxu0 %v1254
    %v1733 = vpop.f32.mrf.mxu0
    %v1734 = vadd.f32 %v1087, %v1733
    %1735 = vmatmul.f32.gmra.mxu0 %v1257
    %v1736 = vpop.f32.mrf.mxu0
    %v1737 = vadd.f32 %v1092, %v1736
    %1738 = vmatmul.f32.gmra.mxu0 %v1260
    %v1739 = vpop.f32.mrf.mxu0
    %v1740 = vadd.f32 %v1097, %v1739
    %1741 = vmatmul.f32.gmra.mxu0 %v1263
    %v1742 = vpop.f32.mrf.mxu0
    %v1743 = vadd.f32 %v1102, %v1742
    %1744 = vmatmul.f32.gmra.mxu0 %v1266
    %v1745 = vpop.f32.mrf.mxu0
    %v1746 = vadd.f32 %v1107, %v1745
    %1747 = vmatmul.f32.gmra.mxu0 %v1269
    %v1748 = vpop.f32.mrf.mxu0
    %v1749 = vadd.f32 %v1112, %v1748
    %1750 = vmatmul.f32.gmra.mxu0 %v1272
    %v1751 = vpop.f32.mrf.mxu0
    %v1752 = vadd.f32 %v1117, %v1751
    %1753 = vmatmul.f32.gmra.mxu0 %v1275
    %v1754 = vpop.f32.mrf.mxu0
    %v1755 = vadd.f32 %v1122, %v1754
    %1756 = vdwg.mxu0
    %v1757 = vmax.f32 %v1734, 0.0
    %v1758 = vmax.f32 %v1737, 0.0
    %v1759 = vmax.f32 %v1740, 0.0
    %v1760 = vmax.f32 %v1743, 0.0
    %v1761 = vmax.f32 %v1746, 0.0
    %v1762 = vmax.f32 %v1749, 0.0
    %v1763 = vmax.f32 %v1752, 0.0
    %v1764 = vmax.f32 %v1755, 0.0
    %1765 = vmatpush.msra.mxu0 0.0
    %1766 = vmatpush.msra.mxu0 0.0
    %1767 = vmatpush.msra.mxu0 0.0
    %1768 = vmatpush.msra.mxu0 0.0
    %1769 = vmatpush.msra.mxu0 %v563
    %1770 = vmatpush.msra.mxu0 %v562
    %1771 = vmatpush.msra.mxu0 %v561
    %1772 = vmatpush.msra.mxu0 %v560
    %1773 = vmatpush.msra.mxu0 %v507
    %1774 = vmatpush.msra.mxu0 %v506
    %1775 = vmatpush.msra.mxu0 %v505
    %1776 = vmatpush.msra.mxu0 %v504
    %1777 = vmatpush.msra.mxu0 %v451
    %1778 = vmatpush.msra.mxu0 %v450
    %1779 = vmatpush.msra.mxu0 %v449
    %1780 = vmatpush.msra.mxu0 %v448
    %1781 = vmatmul.f32.gmra.mxu0 %v1254
    %v1782 = vpop.f32.mrf.mxu0
    %v1783 = vadd.f32 %v1087, %v1782
    %1784 = vmatmul.f32.gmra.mxu0 %v1257
    %v1785 = vpop.f32.mrf.mxu0
    %v1786 = vadd.f32 %v1092, %v1785
    %1787 = vmatmul.f32.gmra.mxu0 %v1260
    %v1788 = vpop.f32.mrf.mxu0
    %v1789 = vadd.f32 %v1097, %v1788
    %1790 = vmatmul.f32.gmra.mxu0 %v1263
    %v1791 = vpop.f32.mrf.mxu0
    %v1792 = vadd.f32 %v1102, %v1791
    %1793 = vmatmul.f32.gmra.mxu0 %v1266
    %v1794 = vpop.f32.mrf.mxu0
    %v1795 = vadd.f32 %v1107, %v1794
    %1796 = vmatmul.f32.gmra.mxu0 %v1269
    %v1797 = vpop.f32.mrf.mxu0
    %v1798 = vadd.f32 %v1112, %v1797
    %1799 = vmatmul.f32.gmra.mxu0 %v1272
    %v1800 = vpop.f32.mrf.mxu0
    %v1801 = vadd.f32 %v1117, %v1800
    %1802 = vmatmul.f32.gmra.mxu0 %v1275
    %v1803 = vpop.f32.mrf.mxu0
    %v1804 = vadd.f32 %v1122, %v1803
    %1805 = vdwg.mxu0
    %v1806 = vmax.f32 %v1783, 0.0
    %v1807 = vmax.f32 %v1786, 0.0
    %v1808 = vmax.f32 %v1789, 0.0
    %v1809 = vmax.f32 %v1792, 0.0
    %v1810 = vmax.f32 %v1795, 0.0
    %v1811 = vmax.f32 %v1798, 0.0
    %v1812 = vmax.f32 %v1801, 0.0
    %v1813 = vmax.f32 %v1804, 0.0
    %v1814 = vmax.f32 %v1757, %v1806
    %v1815 = vmax.f32 %v1758, %v1807
    %v1816 = vmax.f32 %v1759, %v1808
    %v1817 = vmax.f32 %v1760, %v1809
    %v1818 = vmax.f32 %v1761, %v1810
    %v1819 = vmax.f32 %v1762, %v1811
    %v1820 = vmax.f32 %v1763, %v1812
    %v1821 = vmax.f32 %v1764, %v1813
    %v1823 = vsel %vm1489, %v1156, 0
    %v1826 = vsel %vm1489, %v1157, 0
    %v1829 = vsel %vm1489, %v1158, 0
    %v1832 = vsel %vm1489, %v1159, 0
    %v1835 = vsel %vm1489, %v1160, 0
    %v1838 = vsel %vm1489, %v1161, 0
    %v1841 = vsel %vm1489, %v1162, 0
    %v1844 = vsel %vm1489, %v1163, 0
    %v1847 = vsel %vm1489, %v1164, 0
    %v1850 = vsel %vm1489, %v1165, 0
    %v1853 = vsel %vm1489, %v1166, 0
    %v1856 = vsel %vm1489, %v1167, 0
    %v1859 = vsel %vm1489, %v1168, 0
    %v1862 = vsel %vm1489, %v1169, 0
    %v1865 = vsel %vm1489, %v1170, 0
    %v1868 = vsel %vm1489, %v1171, 0
    %1870 = vmatpush.msra.mxu0 0.0
    %1871 = vmatpush.msra.mxu0 0.0
    %1872 = vmatpush.msra.mxu0 0.0
    %1873 = vmatpush.msra.mxu0 0.0
    %1874 = vmatpush.msra.mxu0 0.0
    %1875 = vmatpush.msra.mxu0 0.0
    %1876 = vmatpush.msra.mxu0 0.0
    %1877 = vmatpush.msra.mxu0 0.0
    %1878 = vmatpush.msra.mxu0 %v1821
    %1879 = vmatpush.msra.mxu0 %v1820
    %1880 = vmatpush.msra.mxu0 %v1819
    %1881 = vmatpush.msra.mxu0 %v1818
    %1882 = vmatpush.msra.mxu0 %v1817
    %1883 = vmatpush.msra.mxu0 %v1816
    %1884 = vmatpush.msra.mxu0 %v1815
    %1885 = vmatpush.msra.mxu0 %v1814
    %1886 = vmatmul.f32.gmra.mxu0 %v1823
    %v1887 = vpop.f32.mrf.mxu0
    %v1888 = vadd.f32 0.0, %v1887
    %1889 = vmatmul.f32.gmra.mxu0 %v1826
    %v1890 = vpop.f32.mrf.mxu0
    %v1891 = vadd.f32 0.0, %v1890
    %1892 = vmatmul.f32.gmra.mxu0 %v1829
    %v1893 = vpop.f32.mrf.mxu0
    %v1894 = vadd.f32 0.0, %v1893
    %1895 = vmatmul.f32.gmra.mxu0 %v1832
    %v1896 = vpop.f32.mrf.mxu0
    %v1897 = vadd.f32 0.0, %v1896
    %1898 = vmatmul.f32.gmra.mxu0 %v1835
    %v1899 = vpop.f32.mrf.mxu0
    %v1900 = vadd.f32 0.0, %v1899
    %1901 = vmatmul.f32.gmra.mxu0 %v1838
    %v1902 = vpop.f32.mrf.mxu0
    %v1903 = vadd.f32 0.0, %v1902
    %1904 = vmatmul.f32.gmra.mxu0 %v1841
    %v1905 = vpop.f32.mrf.mxu0
    %v1906 = vadd.f32 0.0, %v1905
    %1907 = vmatmul.f32.gmra.mxu0 %v1844
    %v1908 = vpop.f32.mrf.mxu0
    %v1909 = vadd.f32 0.0, %v1908
    %1910 = vmatmul.f32.gmra.mxu0 %v1847
    %v1911 = vpop.f32.mrf.mxu0
    %v1912 = vadd.f32 0.0, %v1911
    %1913 = vmatmul.f32.gmra.mxu0 %v1850
    %v1914 = vpop.f32.mrf.mxu0
    %v1915 = vadd.f32 0.0, %v1914
    %1916 = vmatmul.f32.gmra.mxu0 %v1853
    %v1917 = vpop.f32.mrf.mxu0
    %v1918 = vadd.f32 0.0, %v1917
    %1919 = vmatmul.f32.gmra.mxu0 %v1856
    %v1920 = vpop.f32.mrf.mxu0
    %v1921 = vadd.f32 0.0, %v1920
    %1922 = vmatmul.f32.gmra.mxu0 %v1859
    %v1923 = vpop.f32.mrf.mxu0
    %v1924 = vadd.f32 0.0, %v1923
    %1925 = vmatmul.f32.gmra.mxu0 %v1862
    %v1926 = vpop.f32.mrf.mxu0
    %v1927 = vadd.f32 0.0, %v1926
    %1928 = vmatmul.f32.gmra.mxu0 %v1865
    %v1929 = vpop.f32.mrf.mxu0
    %v1930 = vadd.f32 0.0, %v1929
    %1931 = vmatmul.f32.gmra.mxu0 %v1868
    %v1932 = vpop.f32.mrf.mxu0
    %v1933 = vadd.f32 0.0, %v1932
    %1934 = vdwg.mxu0
    %v1935 = vadd.f32 %v1669, %v1888
    %v1936 = vadd.f32 %v1672, %v1891
    %v1937 = vadd.f32 %v1675, %v1894
    %v1938 = vadd.f32 %v1678, %v1897
    %v1939 = vadd.f32 %v1681, %v1900
    %v1940 = vadd.f32 %v1684, %v1903
    %v1941 = vadd.f32 %v1687, %v1906
    %v1942 = vadd.f32 %v1690, %v1909
    %v1943 = vadd.f32 %v1693, %v1912
    %v1944 = vadd.f32 %v1696, %v1915
    %v1945 = vadd.f32 %v1699, %v1918
    %v1946 = vadd.f32 %v1702, %v1921
    %v1947 = vadd.f32 %v1705, %v1924
    %v1948 = vadd.f32 %v1708, %v1927
    %v1949 = vadd.f32 %v1711, %v1930
    %v1950 = vadd.f32 %v1714, %v1933
    %1951 = vmatpush.msra.mxu0 0.0
    %1952 = vmatpush.msra.mxu0 0.0
    %1953 = vmatpush.msra.mxu0 0.0
    %1954 = vmatpush.msra.mxu0 0.0
    %1955 = vmatpush.msra.mxu0 %v619
    %1956 = vmatpush.msra.mxu0 %v618
    %1957 = vmatpush.msra.mxu0 %v617
    %1958 = vmatpush.msra.mxu0 %v616
    %1959 = vmatpush.msra.mxu0 %v563
    %1960 = vmatpush.msra.mxu0 %v562
    %1961 = vmatpush.msra.mxu0 %v561
    %1962 = vmatpush.msra.mxu0 %v560
    %1963 = vmatpush.msra.mxu0 %v507
    %1964 = vmatpush.msra.mxu0 %v506
    %1965 = vmatpush.msra.mxu0 %v505
    %1966 = vmatpush.msra.mxu0 %v504
    %1967 = vmatmul.f32.gmra.mxu0 %v1254
    %v1968 = vpop.f32.mrf.mxu0
    %v1969 = vadd.f32 %v1087, %v1968
    %1970 = vmatmul.f32.gmra.mxu0 %v1257
    %v1971 = vpop.f32.mrf.mxu0
    %v1972 = vadd.f32 %v1092, %v1971
    %1973 = vmatmul.f32.gmra.mxu0 %v1260
    %v1974 = vpop.f32.mrf.mxu0
    %v1975 = vadd.f32 %v1097, %v1974
    %1976 = vmatmul.f32.gmra.mxu0 %v1263
    %v1977 = vpop.f32.mrf.mxu0
    %v1978 = vadd.f32 %v1102, %v1977
    %1979 = vmatmul.f32.gmra.mxu0 %v1266
    %v1980 = vpop.f32.mrf.mxu0
    %v1981 = vadd.f32 %v1107, %v1980
    %1982 = vmatmul.f32.gmra.mxu0 %v1269
    %v1983 = vpop.f32.mrf.mxu0
    %v1984 = vadd.f32 %v1112, %v1983
    %1985 = vmatmul.f32.gmra.mxu0 %v1272
    %v1986 = vpop.f32.mrf.mxu0
    %v1987 = vadd.f32 %v1117, %v1986
    %1988 = vmatmul.f32.gmra.mxu0 %v1275
    %v1989 = vpop.f32.mrf.mxu0
    %v1990 = vadd.f32 %v1122, %v1989
    %1991 = vdwg.mxu0
    %v1992 = vmax.f32 %v1969, 0.0
    %v1993 = vmax.f32 %v1972, 0.0
    %v1994 = vmax.f32 %v1975, 0.0
    %v1995 = vmax.f32 %v1978, 0.0
    %v1996 = vmax.f32 %v1981, 0.0
    %v1997 = vmax.f32 %v1984, 0.0
    %v1998 = vmax.f32 %v1987, 0.0
    %v1999 = vmax.f32 %v1990, 0.0
    %2000 = vmatpush.msra.mxu0 0.0
    %2001 = vmatpush.msra.mxu0 0.0
    %2002 = vmatpush.msra.mxu0 0.0
    %2003 = vmatpush.msra.mxu0 0.0
    %2004 = vmatpush.msra.mxu0 %v675
    %2005 = vmatpush.msra.mxu0 %v674
    %2006 = vmatpush.msra.mxu0 %v673
    %2007 = vmatpush.msra.mxu0 %v672
    %2008 = vmatpush.msra.mxu0 %v619
    %2009 = vmatpush.msra.mxu0 %v618
    %2010 = vmatpush.msra.mxu0 %v617
    %2011 = vmatpush.msra.mxu0 %v616
    %2012 = vmatpush.msra.mxu0 %v563
    %2013 = vmatpush.msra.mxu0 %v562
    %2014 = vmatpush.msra.mxu0 %v561
    %2015 = vmatpush.msra.mxu0 %v560
    %2016 = vmatmul.f32.gmra.mxu0 %v1254
    %v2017 = vpop.f32.mrf.mxu0
    %v2018 = vadd.f32 %v1087, %v2017
    %2019 = vmatmul.f32.gmra.mxu0 %v1257
    %v2020 = vpop.f32.mrf.mxu0
    %v2021 = vadd.f32 %v1092, %v2020
    %2022 = vmatmul.f32.gmra.mxu0 %v1260
    %v2023 = vpop.f32.mrf.mxu0
    %v2024 = vadd.f32 %v1097, %v2023
    %2025 = vmatmul.f32.gmra.mxu0 %v1263
    %v2026 = vpop.f32.mrf.mxu0
    %v2027 = vadd.f32 %v1102, %v2026
    %2028 = vmatmul.f32.gmra.mxu0 %v1266
    %v2029 = vpop.f32.mrf.mxu0
    %v2030 = vadd.f32 %v1107, %v2029
    %2031 = vmatmul.f32.gmra.mxu0 %v1269
    %v2032 = vpop.f32.mrf.mxu0
    %v2033 = vadd.f32 %v1112, %v2032
    %2034 = vmatmul.f32.gmra.mxu0 %v1272
    %v2035 = vpop.f32.mrf.mxu0
    %v2036 = vadd.f32 %v1117, %v2035
    %2037 = vmatmul.f32.gmra.mxu0 %v1275
    %v2038 = vpop.f32.mrf.mxu0
    %v2039 = vadd.f32 %v1122, %v2038
    %2040 = vdwg.mxu0
    %v2041 = vmax.f32 %v2018, 0.0
    %v2042 = vmax.f32 %v2021, 0.0
    %v2043 = vmax.f32 %v2024, 0.0
    %v2044 = vmax.f32 %v2027, 0.0
    %v2045 = vmax.f32 %v2030, 0.0
    %v2046 = vmax.f32 %v2033, 0.0
    %v2047 = vmax.f32 %v2036, 0.0
    %v2048 = vmax.f32 %v2039, 0.0
    %v2049 = vmax.f32 %v1992, %v2041
    %v2050 = vmax.f32 %v1993, %v2042
    %v2051 = vmax.f32 %v1994, %v2043
    %v2052 = vmax.f32 %v1995, %v2044
    %v2053 = vmax.f32 %v1996, %v2045
    %v2054 = vmax.f32 %v1997, %v2046
    %v2055 = vmax.f32 %v1998, %v2047
    %v2056 = vmax.f32 %v1999, %v2048
    %v2058 = vsel %vm1489, %v1172, 0
    %v2061 = vsel %vm1489, %v1173, 0
    %v2064 = vsel %vm1489, %v1174, 0
    %v2067 = vsel %vm1489, %v1175, 0
    %v2070 = vsel %vm1489, %v1176, 0
    %v2073 = vsel %vm1489, %v1177, 0
    %v2076 = vsel %vm1489, %v1178, 0
    %v2079 = vsel %vm1489, %v1179, 0
    %v2082 = vsel %vm1489, %v1180, 0
    %v2085 = vsel %vm1489, %v1181, 0
    %v2088 = vsel %vm1489, %v1182, 0
    %v2091 = vsel %vm1489, %v1183, 0
    %v2094 = vsel %vm1489, %v1184, 0
    %v2097 = vsel %vm1489, %v1185, 0
    %v2100 = vsel %vm1489, %v1186, 0
    %v2103 = vsel %vm1489, %v1187, 0
    %2105 = vmatpush.msra.mxu0 0.0
    %2106 = vmatpush.msra.mxu0 0.0
    %2107 = vmatpush.msra.mxu0 0.0
    %2108 = vmatpush.msra.mxu0 0.0
    %2109 = vmatpush.msra.mxu0 0.0
    %2110 = vmatpush.msra.mxu0 0.0
    %2111 = vmatpush.msra.mxu0 0.0
    %2112 = vmatpush.msra.mxu0 0.0
    %2113 = vmatpush.msra.mxu0 %v2056
    %2114 = vmatpush.msra.mxu0 %v2055
    %2115 = vmatpush.msra.mxu0 %v2054
    %2116 = vmatpush.msra.mxu0 %v2053
    %2117 = vmatpush.msra.mxu0 %v2052
    %2118 = vmatpush.msra.mxu0 %v2051
    %2119 = vmatpush.msra.mxu0 %v2050
    %2120 = vmatpush.msra.mxu0 %v2049
    %2121 = vmatmul.f32.gmra.mxu0 %v2058
    %v2122 = vpop.f32.mrf.mxu0
    %v2123 = vadd.f32 0.0, %v2122
    %2124 = vmatmul.f32.gmra.mxu0 %v2061
    %v2125 = vpop.f32.mrf.mxu0
    %v2126 = vadd.f32 0.0, %v2125
    %2127 = vmatmul.f32.gmra.mxu0 %v2064
    %v2128 = vpop.f32.mrf.mxu0
    %v2129 = vadd.f32 0.0, %v2128
    %2130 = vmatmul.f32.gmra.mxu0 %v2067
    %v2131 = vpop.f32.mrf.mxu0
    %v2132 = vadd.f32 0.0, %v2131
    %2133 = vmatmul.f32.gmra.mxu0 %v2070
    %v2134 = vpop.f32.mrf.mxu0
    %v2135 = vadd.f32 0.0, %v2134
    %2136 = vmatmul.f32.gmra.mxu0 %v2073
    %v2137 = vpop.f32.mrf.mxu0
    %v2138 = vadd.f32 0.0, %v2137
    %2139 = vmatmul.f32.gmra.mxu0 %v2076
    %v2140 = vpop.f32.mrf.mxu0
    %v2141 = vadd.f32 0.0, %v2140
    %2142 = vmatmul.f32.gmra.mxu0 %v2079
    %v2143 = vpop.f32.mrf.mxu0
    %v2144 = vadd.f32 0.0, %v2143
    %2145 = vmatmul.f32.gmra.mxu0 %v2082
    %v2146 = vpop.f32.mrf.mxu0
    %v2147 = vadd.f32 0.0, %v2146
    %2148 = vmatmul.f32.gmra.mxu0 %v2085
    %v2149 = vpop.f32.mrf.mxu0
    %v2150 = vadd.f32 0.0, %v2149
    %2151 = vmatmul.f32.gmra.mxu0 %v2088
    %v2152 = vpop.f32.mrf.mxu0
    %v2153 = vadd.f32 0.0, %v2152
    %2154 = vmatmul.f32.gmra.mxu0 %v2091
    %v2155 = vpop.f32.mrf.mxu0
    %v2156 = vadd.f32 0.0, %v2155
    %2157 = vmatmul.f32.gmra.mxu0 %v2094
    %v2158 = vpop.f32.mrf.mxu0
    %v2159 = vadd.f32 0.0, %v2158
    %2160 = vmatmul.f32.gmra.mxu0 %v2097
    %v2161 = vpop.f32.mrf.mxu0
    %v2162 = vadd.f32 0.0, %v2161
    %2163 = vmatmul.f32.gmra.mxu0 %v2100
    %v2164 = vpop.f32.mrf.mxu0
    %v2165 = vadd.f32 0.0, %v2164
    %2166 = vmatmul.f32.gmra.mxu0 %v2103
    %v2167 = vpop.f32.mrf.mxu0
    %v2168 = vadd.f32 0.0, %v2167
    %2169 = vdwg.mxu0
    %v2170 = vadd.f32 %v1935, %v2123
    %v2171 = vadd.f32 %v1936, %v2126
    %v2172 = vadd.f32 %v1937, %v2129
    %v2173 = vadd.f32 %v1938, %v2132
    %v2174 = vadd.f32 %v1939, %v2135
    %v2175 = vadd.f32 %v1940, %v2138
    %v2176 = vadd.f32 %v1941, %v2141
    %v2177 = vadd.f32 %v1942, %v2144
    %v2178 = vadd.f32 %v1943, %v2147
    %v2179 = vadd.f32 %v1944, %v2150
    %v2180 = vadd.f32 %v1945, %v2153
    %v2181 = vadd.f32 %v1946, %v2156
    %v2182 = vadd.f32 %v1947, %v2159
    %v2183 = vadd.f32 %v1948, %v2162
    %v2184 = vadd.f32 %v1949, %v2165
    %v2185 = vadd.f32 %v1950, %v2168
    %2186 = vmatpush.msra.mxu0 0.0
    %2187 = vmatpush.msra.mxu0 0.0
    %2188 = vmatpush.msra.mxu0 0.0
    %2189 = vmatpush.msra.mxu0 0.0
    %2190 = vmatpush.msra.mxu0 %v731
    %2191 = vmatpush.msra.mxu0 %v730
    %2192 = vmatpush.msra.mxu0 %v729
    %2193 = vmatpush.msra.mxu0 %v728
    %2194 = vmatpush.msra.mxu0 %v675
    %2195 = vmatpush.msra.mxu0 %v674
    %2196 = vmatpush.msra.mxu0 %v673
    %2197 = vmatpush.msra.mxu0 %v672
    %2198 = vmatpush.msra.mxu0 %v619
    %2199 = vmatpush.msra.mxu0 %v618
    %2200 = vmatpush.msra.mxu0 %v617
    %2201 = vmatpush.msra.mxu0 %v616
    %2202 = vmatmul.f32.gmra.mxu0 %v1254
    %v2203 = vpop.f32.mrf.mxu0
    %v2204 = vadd.f32 %v1087, %v2203
    %2205 = vmatmul.f32.gmra.mxu0 %v1257
    %v2206 = vpop.f32.mrf.mxu0
    %v2207 = vadd.f32 %v1092, %v2206
    %2208 = vmatmul.f32.gmra.mxu0 %v1260
    %v2209 = vpop.f32.mrf.mxu0
    %v2210 = vadd.f32 %v1097, %v2209
    %2211 = vmatmul.f32.gmra.mxu0 %v1263
    %v2212 = vpop.f32.mrf.mxu0
    %v2213 = vadd.f32 %v1102, %v2212
    %2214 = vmatmul.f32.gmra.mxu0 %v1266
    %v2215 = vpop.f32.mrf.mxu0
    %v2216 = vadd.f32 %v1107, %v2215
    %2217 = vmatmul.f32.gmra.mxu0 %v1269
    %v2218 = vpop.f32.mrf.mxu0
    %v2219 = vadd.f32 %v1112, %v2218
    %2220 = vmatmul.f32.gmra.mxu0 %v1272
    %v2221 = vpop.f32.mrf.mxu0
    %v2222 = vadd.f32 %v1117, %v2221
    %2223 = vmatmul.f32.gmra.mxu0 %v1275
    %v2224 = vpop.f32.mrf.mxu0
    %v2225 = vadd.f32 %v1122, %v2224
    %2226 = vdwg.mxu0
    %v2227 = vmax.f32 %v2204, 0.0
    %v2228 = vmax.f32 %v2207, 0.0
    %v2229 = vmax.f32 %v2210, 0.0
    %v2230 = vmax.f32 %v2213, 0.0
    %v2231 = vmax.f32 %v2216, 0.0
    %v2232 = vmax.f32 %v2219, 0.0
    %v2233 = vmax.f32 %v2222, 0.0
    %v2234 = vmax.f32 %v2225, 0.0
    %2235 = vmatpush.msra.mxu0 0.0
    %2236 = vmatpush.msra.mxu0 0.0
    %2237 = vmatpush.msra.mxu0 0.0
    %2238 = vmatpush.msra.mxu0 0.0
    %2239 = vmatpush.msra.mxu0 %v787
    %2240 = vmatpush.msra.mxu0 %v786
    %2241 = vmatpush.msra.mxu0 %v785
    %2242 = vmatpush.msra.mxu0 %v784
    %2243 = vmatpush.msra.mxu0 %v731
    %2244 = vmatpush.msra.mxu0 %v730
    %2245 = vmatpush.msra.mxu0 %v729
    %2246 = vmatpush.msra.mxu0 %v728
    %2247 = vmatpush.msra.mxu0 %v675
    %2248 = vmatpush.msra.mxu0 %v674
    %2249 = vmatpush.msra.mxu0 %v673
    %2250 = vmatpush.msra.mxu0 %v672
    %2251 = vmatmul.f32.gmra.mxu0 %v1254
    %v2252 = vpop.f32.mrf.mxu0
    %v2253 = vadd.f32 %v1087, %v2252
    %2254 = vmatmul.f32.gmra.mxu0 %v1257
    %v2255 = vpop.f32.mrf.mxu0
    %v2256 = vadd.f32 %v1092, %v2255
    %2257 = vmatmul.f32.gmra.mxu0 %v1260
    %v2258 = vpop.f32.mrf.mxu0
    %v2259 = vadd.f32 %v1097, %v2258
    %2260 = vmatmul.f32.gmra.mxu0 %v1263
    %v2261 = vpop.f32.mrf.mxu0
    %v2262 = vadd.f32 %v1102, %v2261
    %2263 = vmatmul.f32.gmra.mxu0 %v1266
    %v2264 = vpop.f32.mrf.mxu0
    %v2265 = vadd.f32 %v1107, %v2264
    %2266 = vmatmul.f32.gmra.mxu0 %v1269
    %v2267 = vpop.f32.mrf.mxu0
    %v2268 = vadd.f32 %v1112, %v2267
    %2269 = vmatmul.f32.gmra.mxu0 %v1272
    %v2270 = vpop.f32.mrf.mxu0
    %v2271 = vadd.f32 %v1117, %v2270
    %2272 = vmatmul.f32.gmra.mxu0 %v1275
    %v2273 = vpop.f32.mrf.mxu0
    %v2274 = vadd.f32 %v1122, %v2273
    %2275 = vdwg.mxu0
    %v2276 = vmax.f32 %v2253, 0.0
    %v2277 = vmax.f32 %v2256, 0.0
    %v2278 = vmax.f32 %v2259, 0.0
    %v2279 = vmax.f32 %v2262, 0.0
    %v2280 = vmax.f32 %v2265, 0.0
    %v2281 = vmax.f32 %v2268, 0.0
    %v2282 = vmax.f32 %v2271, 0.0
    %v2283 = vmax.f32 %v2274, 0.0
    %v2284 = vmax.f32 %v2227, %v2276
    %v2285 = vmax.f32 %v2228, %v2277
    %v2286 = vmax.f32 %v2229, %v2278
    %v2287 = vmax.f32 %v2230, %v2279
    %v2288 = vmax.f32 %v2231, %v2280
    %v2289 = vmax.f32 %v2232, %v2281
    %v2290 = vmax.f32 %v2233, %v2282
    %v2291 = vmax.f32 %v2234, %v2283
    %v2293 = vsel %vm1489, %v1188, 0
    %v2296 = vsel %vm1489, %v1189, 0
    %v2299 = vsel %vm1489, %v1190, 0
    %v2302 = vsel %vm1489, %v1191, 0
    %v2305 = vsel %vm1489, %v1192, 0
    %v2308 = vsel %vm1489, %v1193, 0
    %v2311 = vsel %vm1489, %v1194, 0
    %v2314 = vsel %vm1489, %v1195, 0
    %v2317 = vsel %vm1489, %v1196, 0
    %v2320 = vsel %vm1489, %v1197, 0
    %v2323 = vsel %vm1489, %v1198, 0
    %v2326 = vsel %vm1489, %v1199, 0
    %v2329 = vsel %vm1489, %v1200, 0
    %v2332 = vsel %vm1489, %v1201, 0
    %v2335 = vsel %vm1489, %v1202, 0
    %v2338 = vsel %vm1489, %v1203, 0
    %2340 = vmatpush.msra.mxu0 0.0
    %2341 = vmatpush.msra.mxu0 0.0
    %2342 = vmatpush.msra.mxu0 0.0
    %2343 = vmatpush.msra.mxu0 0.0
    %2344 = vmatpush.msra.mxu0 0.0
    %2345 = vmatpush.msra.mxu0 0.0
    %2346 = vmatpush.msra.mxu0 0.0
    %2347 = vmatpush.msra.mxu0 0.0
    %2348 = vmatpush.msra.mxu0 %v2291
    %2349 = vmatpush.msra.mxu0 %v2290
    %2350 = vmatpush.msra.mxu0 %v2289
    %2351 = vmatpush.msra.mxu0 %v2288
    %2352 = vmatpush.msra.mxu0 %v2287
    %2353 = vmatpush.msra.mxu0 %v2286
    %2354 = vmatpush.msra.mxu0 %v2285
    %2355 = vmatpush.msra.mxu0 %v2284
    %2356 = vmatmul.f32.gmra.mxu0 %v2293
    %v2357 = vpop.f32.mrf.mxu0
    %v2358 = vadd.f32 0.0, %v2357
    %2359 = vmatmul.f32.gmra.mxu0 %v2296
    %v2360 = vpop.f32.mrf.mxu0
    %v2361 = vadd.f32 0.0, %v2360
    %2362 = vmatmul.f32.gmra.mxu0 %v2299
    %v2363 = vpop.f32.mrf.mxu0
    %v2364 = vadd.f32 0.0, %v2363
    %2365 = vmatmul.f32.gmra.mxu0 %v2302
    %v2366 = vpop.f32.mrf.mxu0
    %v2367 = vadd.f32 0.0, %v2366
    %2368 = vmatmul.f32.gmra.mxu0 %v2305
    %v2369 = vpop.f32.mrf.mxu0
    %v2370 = vadd.f32 0.0, %v2369
    %2371 = vmatmul.f32.gmra.mxu0 %v2308
    %v2372 = vpop.f32.mrf.mxu0
    %v2373 = vadd.f32 0.0, %v2372
    %2374 = vmatmul.f32.gmra.mxu0 %v2311
    %v2375 = vpop.f32.mrf.mxu0
    %v2376 = vadd.f32 0.0, %v2375
    %2377 = vmatmul.f32.gmra.mxu0 %v2314
    %v2378 = vpop.f32.mrf.mxu0
    %v2379 = vadd.f32 0.0, %v2378
    %2380 = vmatmul.f32.gmra.mxu0 %v2317
    %v2381 = vpop.f32.mrf.mxu0
    %v2382 = vadd.f32 0.0, %v2381
    %2383 = vmatmul.f32.gmra.mxu0 %v2320
    %v2384 = vpop.f32.mrf.mxu0
    %v2385 = vadd.f32 0.0, %v2384
    %2386 = vmatmul.f32.gmra.mxu0 %v2323
    %v2387 = vpop.f32.mrf.mxu0
    %v2388 = vadd.f32 0.0, %v2387
    %2389 = vmatmul.f32.gmra.mxu0 %v2326
    %v2390 = vpop.f32.mrf.mxu0
    %v2391 = vadd.f32 0.0, %v2390
    %2392 = vmatmul.f32.gmra.mxu0 %v2329
    %v2393 = vpop.f32.mrf.mxu0
    %v2394 = vadd.f32 0.0, %v2393
    %2395 = vmatmul.f32.gmra.mxu0 %v2332
    %v2396 = vpop.f32.mrf.mxu0
    %v2397 = vadd.f32 0.0, %v2396
    %2398 = vmatmul.f32.gmra.mxu0 %v2335
    %v2399 = vpop.f32.mrf.mxu0
    %v2400 = vadd.f32 0.0, %v2399
    %2401 = vmatmul.f32.gmra.mxu0 %v2338
    %v2402 = vpop.f32.mrf.mxu0
    %v2403 = vadd.f32 0.0, %v2402
    %2404 = vdwg.mxu0
    %v2405 = vadd.f32 %v2170, %v2358
    %v2406 = vadd.f32 %v2171, %v2361
    %v2407 = vadd.f32 %v2172, %v2364
    %v2408 = vadd.f32 %v2173, %v2367
    %v2409 = vadd.f32 %v2174, %v2370
    %v2410 = vadd.f32 %v2175, %v2373
    %v2411 = vadd.f32 %v2176, %v2376
    %v2412 = vadd.f32 %v2177, %v2379
    %v2413 = vadd.f32 %v2178, %v2382
    %v2414 = vadd.f32 %v2179, %v2385
    %v2415 = vadd.f32 %v2180, %v2388
    %v2416 = vadd.f32 %v2181, %v2391
    %v2417 = vadd.f32 %v2182, %v2394
    %v2418 = vadd.f32 %v2183, %v2397
    %v2419 = vadd.f32 %v2184, %v2400
    %v2420 = vadd.f32 %v2185, %v2403
    %2421 = vmatpush.msra.mxu0 0.0
    %2422 = vmatpush.msra.mxu0 0.0
    %2423 = vmatpush.msra.mxu0 0.0
    %2424 = vmatpush.msra.mxu0 0.0
    %2425 = vmatpush.msra.mxu0 %v843
    %2426 = vmatpush.msra.mxu0 %v842
    %2427 = vmatpush.msra.mxu0 %v841
    %2428 = vmatpush.msra.mxu0 %v840
    %2429 = vmatpush.msra.mxu0 %v787
    %2430 = vmatpush.msra.mxu0 %v786
    %2431 = vmatpush.msra.mxu0 %v785
    %2432 = vmatpush.msra.mxu0 %v784
    %2433 = vmatpush.msra.mxu0 %v731
    %2434 = vmatpush.msra.mxu0 %v730
    %2435 = vmatpush.msra.mxu0 %v729
    %2436 = vmatpush.msra.mxu0 %v728
    %2437 = vmatmul.f32.gmra.mxu0 %v1254
    %v2438 = vpop.f32.mrf.mxu0
    %v2439 = vadd.f32 %v1087, %v2438
    %2440 = vmatmul.f32.gmra.mxu0 %v1257
    %v2441 = vpop.f32.mrf.mxu0
    %v2442 = vadd.f32 %v1092, %v2441
    %2443 = vmatmul.f32.gmra.mxu0 %v1260
    %v2444 = vpop.f32.mrf.mxu0
    %v2445 = vadd.f32 %v1097, %v2444
    %2446 = vmatmul.f32.gmra.mxu0 %v1263
    %v2447 = vpop.f32.mrf.mxu0
    %v2448 = vadd.f32 %v1102, %v2447
    %2449 = vmatmul.f32.gmra.mxu0 %v1266
    %v2450 = vpop.f32.mrf.mxu0
    %v2451 = vadd.f32 %v1107, %v2450
    %2452 = vmatmul.f32.gmra.mxu0 %v1269
    %v2453 = vpop.f32.mrf.mxu0
    %v2454 = vadd.f32 %v1112, %v2453
    %2455 = vmatmul.f32.gmra.mxu0 %v1272
    %v2456 = vpop.f32.mrf.mxu0
    %v2457 = vadd.f32 %v1117, %v2456
    %2458 = vmatmul.f32.gmra.mxu0 %v1275
    %v2459 = vpop.f32.mrf.mxu0
    %v2460 = vadd.f32 %v1122, %v2459
    %2461 = vdwg.mxu0
    %v2462 = vmax.f32 %v2439, 0.0
    %v2463 = vmax.f32 %v2442, 0.0
    %v2464 = vmax.f32 %v2445, 0.0
    %v2465 = vmax.f32 %v2448, 0.0
    %v2466 = vmax.f32 %v2451, 0.0
    %v2467 = vmax.f32 %v2454, 0.0
    %v2468 = vmax.f32 %v2457, 0.0
    %v2469 = vmax.f32 %v2460, 0.0
    %2470 = vmatpush.msra.mxu0 0.0
    %2471 = vmatpush.msra.mxu0 0.0
    %2472 = vmatpush.msra.mxu0 0.0
    %2473 = vmatpush.msra.mxu0 0.0
    %2474 = vmatpush.msra.mxu0 %v899
    %2475 = vmatpush.msra.mxu0 %v898
    %2476 = vmatpush.msra.mxu0 %v897
    %2477 = vmatpush.msra.mxu0 %v896
    %2478 = vmatpush.msra.mxu0 %v843
    %2479 = vmatpush.msra.mxu0 %v842
    %2480 = vmatpush.msra.mxu0 %v841
    %2481 = vmatpush.msra.mxu0 %v840
    %2482 = vmatpush.msra.mxu0 %v787
    %2483 = vmatpush.msra.mxu0 %v786
    %2484 = vmatpush.msra.mxu0 %v785
    %2485 = vmatpush.msra.mxu0 %v784
    %2486 = vmatmul.f32.gmra.mxu0 %v1254
    %v2487 = vpop.f32.mrf.mxu0
    %v2488 = vadd.f32 %v1087, %v2487
    %2489 = vmatmul.f32.gmra.mxu0 %v1257
    %v2490 = vpop.f32.mrf.mxu0
    %v2491 = vadd.f32 %v1092, %v2490
    %2492 = vmatmul.f32.gmra.mxu0 %v1260
    %v2493 = vpop.f32.mrf.mxu0
    %v2494 = vadd.f32 %v1097, %v2493
    %2495 = vmatmul.f32.gmra.mxu0 %v1263
    %v2496 = vpop.f32.mrf.mxu0
    %v2497 = vadd.f32 %v1102, %v2496
    %2498 = vmatmul.f32.gmra.mxu0 %v1266
    %v2499 = vpop.f32.mrf.mxu0
    %v2500 = vadd.f32 %v1107, %v2499
    %2501 = vmatmul.f32.gmra.mxu0 %v1269
    %v2502 = vpop.f32.mrf.mxu0
    %v2503 = vadd.f32 %v1112, %v2502
    %2504 = vmatmul.f32.gmra.mxu0 %v1272
    %v2505 = vpop.f32.mrf.mxu0
    %v2506 = vadd.f32 %v1117, %v2505
    %2507 = vmatmul.f32.gmra.mxu0 %v1275
    %v2508 = vpop.f32.mrf.mxu0
    %v2509 = vadd.f32 %v1122, %v2508
    %2510 = vdwg.mxu0
    %v2511 = vmax.f32 %v2488, 0.0
    %v2512 = vmax.f32 %v2491, 0.0
    %v2513 = vmax.f32 %v2494, 0.0
    %v2514 = vmax.f32 %v2497, 0.0
    %v2515 = vmax.f32 %v2500, 0.0
    %v2516 = vmax.f32 %v2503, 0.0
    %v2517 = vmax.f32 %v2506, 0.0
    %v2518 = vmax.f32 %v2509, 0.0
    %v2519 = vmax.f32 %v2462, %v2511
    %v2520 = vmax.f32 %v2463, %v2512
    %v2521 = vmax.f32 %v2464, %v2513
    %v2522 = vmax.f32 %v2465, %v2514
    %v2523 = vmax.f32 %v2466, %v2515
    %v2524 = vmax.f32 %v2467, %v2516
    %v2525 = vmax.f32 %v2468, %v2517
    %v2526 = vmax.f32 %v2469, %v2518
    %v2528 = vsel %vm1489, %v1204, 0
    %v2531 = vsel %vm1489, %v1205, 0
    %v2534 = vsel %vm1489, %v1206, 0
    %v2537 = vsel %vm1489, %v1207, 0
    %v2540 = vsel %vm1489, %v1208, 0
    %v2543 = vsel %vm1489, %v1209, 0
    %v2546 = vsel %vm1489, %v1210, 0
    %v2549 = vsel %vm1489, %v1211, 0
    %v2552 = vsel %vm1489, %v1212, 0
    %v2555 = vsel %vm1489, %v1213, 0
    %v2558 = vsel %vm1489, %v1214, 0
    %v2561 = vsel %vm1489, %v1215, 0
    %v2564 = vsel %vm1489, %v1216, 0
    %v2567 = vsel %vm1489, %v1217, 0
    %v2570 = vsel %vm1489, %v1218, 0
    %v2573 = vsel %vm1489, %v1219, 0
    %2575 = vmatpush.msra.mxu0 0.0
    %2576 = vmatpush.msra.mxu0 0.0
    %2577 = vmatpush.msra.mxu0 0.0
    %2578 = vmatpush.msra.mxu0 0.0
    %2579 = vmatpush.msra.mxu0 0.0
    %2580 = vmatpush.msra.mxu0 0.0
    %2581 = vmatpush.msra.mxu0 0.0
    %2582 = vmatpush.msra.mxu0 0.0
    %2583 = vmatpush.msra.mxu0 %v2526
    %2584 = vmatpush.msra.mxu0 %v2525
    %2585 = vmatpush.msra.mxu0 %v2524
    %2586 = vmatpush.msra.mxu0 %v2523
    %2587 = vmatpush.msra.mxu0 %v2522
    %2588 = vmatpush.msra.mxu0 %v2521
    %2589 = vmatpush.msra.mxu0 %v2520
    %2590 = vmatpush.msra.mxu0 %v2519
    %2591 = vmatmul.f32.gmra.mxu0 %v2528
    %v2592 = vpop.f32.mrf.mxu0
    %v2593 = vadd.f32 0.0, %v2592
    %2594 = vmatmul.f32.gmra.mxu0 %v2531
    %v2595 = vpop.f32.mrf.mxu0
    %v2596 = vadd.f32 0.0, %v2595
    %2597 = vmatmul.f32.gmra.mxu0 %v2534
    %v2598 = vpop.f32.mrf.mxu0
    %v2599 = vadd.f32 0.0, %v2598
    %2600 = vmatmul.f32.gmra.mxu0 %v2537
    %v2601 = vpop.f32.mrf.mxu0
    %v2602 = vadd.f32 0.0, %v2601
    %2603 = vmatmul.f32.gmra.mxu0 %v2540
    %v2604 = vpop.f32.mrf.mxu0
    %v2605 = vadd.f32 0.0, %v2604
    %2606 = vmatmul.f32.gmra.mxu0 %v2543
    %v2607 = vpop.f32.mrf.mxu0
    %v2608 = vadd.f32 0.0, %v2607
    %2609 = vmatmul.f32.gmra.mxu0 %v2546
    %v2610 = vpop.f32.mrf.mxu0
    %v2611 = vadd.f32 0.0, %v2610
    %2612 = vmatmul.f32.gmra.mxu0 %v2549
    %v2613 = vpop.f32.mrf.mxu0
    %v2614 = vadd.f32 0.0, %v2613
    %2615 = vmatmul.f32.gmra.mxu0 %v2552
    %v2616 = vpop.f32.mrf.mxu0
    %v2617 = vadd.f32 0.0, %v2616
    %2618 = vmatmul.f32.gmra.mxu0 %v2555
    %v2619 = vpop.f32.mrf.mxu0
    %v2620 = vadd.f32 0.0, %v2619
    %2621 = vmatmul.f32.gmra.mxu0 %v2558
    %v2622 = vpop.f32.mrf.mxu0
    %v2623 = vadd.f32 0.0, %v2622
    %2624 = vmatmul.f32.gmra.mxu0 %v2561
    %v2625 = vpop.f32.mrf.mxu0
    %v2626 = vadd.f32 0.0, %v2625
    %2627 = vmatmul.f32.gmra.mxu0 %v2564
    %v2628 = vpop.f32.mrf.mxu0
    %v2629 = vadd.f32 0.0, %v2628
    %2630 = vmatmul.f32.gmra.mxu0 %v2567
    %v2631 = vpop.f32.mrf.mxu0
    %v2632 = vadd.f32 0.0, %v2631
    %2633 = vmatmul.f32.gmra.mxu0 %v2570
    %v2634 = vpop.f32.mrf.mxu0
    %v2635 = vadd.f32 0.0, %v2634
    %2636 = vmatmul.f32.gmra.mxu0 %v2573
    %v2637 = vpop.f32.mrf.mxu0
    %v2638 = vadd.f32 0.0, %v2637
    %2639 = vdwg.mxu0
    %v2640 = vadd.f32 %v2405, %v2593
    %v2641 = vadd.f32 %v2406, %v2596
    %v2642 = vadd.f32 %v2407, %v2599
    %v2643 = vadd.f32 %v2408, %v2602
    %v2644 = vadd.f32 %v2409, %v2605
    %v2645 = vadd.f32 %v2410, %v2608
    %v2646 = vadd.f32 %v2411, %v2611
    %v2647 = vadd.f32 %v2412, %v2614
    %v2648 = vadd.f32 %v2413, %v2617
    %v2649 = vadd.f32 %v2414, %v2620
    %v2650 = vadd.f32 %v2415, %v2623
    %v2651 = vadd.f32 %v2416, %v2626
    %v2652 = vadd.f32 %v2417, %v2629
    %v2653 = vadd.f32 %v2418, %v2632
    %v2654 = vadd.f32 %v2419, %v2635
    %v2655 = vadd.f32 %v2420, %v2638
    %2656 = vmatpush.msra.mxu0 0.0
    %2657 = vmatpush.msra.mxu0 0.0
    %2658 = vmatpush.msra.mxu0 0.0
    %2659 = vmatpush.msra.mxu0 0.0
    %2660 = vmatpush.msra.mxu0 %v955
    %2661 = vmatpush.msra.mxu0 %v954
    %2662 = vmatpush.msra.mxu0 %v953
    %2663 = vmatpush.msra.mxu0 %v952
    %2664 = vmatpush.msra.mxu0 %v899
    %2665 = vmatpush.msra.mxu0 %v898
    %2666 = vmatpush.msra.mxu0 %v897
    %2667 = vmatpush.msra.mxu0 %v896
    %2668 = vmatpush.msra.mxu0 %v843
    %2669 = vmatpush.msra.mxu0 %v842
    %2670 = vmatpush.msra.mxu0 %v841
    %2671 = vmatpush.msra.mxu0 %v840
    %2672 = vmatmul.f32.gmra.mxu0 %v1254
    %v2673 = vpop.f32.mrf.mxu0
    %v2674 = vadd.f32 %v1087, %v2673
    %2675 = vmatmul.f32.gmra.mxu0 %v1257
    %v2676 = vpop.f32.mrf.mxu0
    %v2677 = vadd.f32 %v1092, %v2676
    %2678 = vmatmul.f32.gmra.mxu0 %v1260
    %v2679 = vpop.f32.mrf.mxu0
    %v2680 = vadd.f32 %v1097, %v2679
    %2681 = vmatmul.f32.gmra.mxu0 %v1263
    %v2682 = vpop.f32.mrf.mxu0
    %v2683 = vadd.f32 %v1102, %v2682
    %2684 = vmatmul.f32.gmra.mxu0 %v1266
    %v2685 = vpop.f32.mrf.mxu0
    %v2686 = vadd.f32 %v1107, %v2685
    %2687 = vmatmul.f32.gmra.mxu0 %v1269
    %v2688 = vpop.f32.mrf.mxu0
    %v2689 = vadd.f32 %v1112, %v2688
    %2690 = vmatmul.f32.gmra.mxu0 %v1272
    %v2691 = vpop.f32.mrf.mxu0
    %v2692 = vadd.f32 %v1117, %v2691
    %2693 = vmatmul.f32.gmra.mxu0 %v1275
    %v2694 = vpop.f32.mrf.mxu0
    %v2695 = vadd.f32 %v1122, %v2694
    %2696 = vdwg.mxu0
    %v2697 = vmax.f32 %v2674, 0.0
    %v2698 = vmax.f32 %v2677, 0.0
    %v2699 = vmax.f32 %v2680, 0.0
    %v2700 = vmax.f32 %v2683, 0.0
    %v2701 = vmax.f32 %v2686, 0.0
    %v2702 = vmax.f32 %v2689, 0.0
    %v2703 = vmax.f32 %v2692, 0.0
    %v2704 = vmax.f32 %v2695, 0.0
    %2705 = vmatpush.msra.mxu0 0.0
    %2706 = vmatpush.msra.mxu0 0.0
    %2707 = vmatpush.msra.mxu0 0.0
    %2708 = vmatpush.msra.mxu0 0.0
    %2709 = vmatpush.msra.mxu0 %v1011
    %2710 = vmatpush.msra.mxu0 %v1010
    %2711 = vmatpush.msra.mxu0 %v1009
    %2712 = vmatpush.msra.mxu0 %v1008
    %2713 = vmatpush.msra.mxu0 %v955
    %2714 = vmatpush.msra.mxu0 %v954
    %2715 = vmatpush.msra.mxu0 %v953
    %2716 = vmatpush.msra.mxu0 %v952
    %2717 = vmatpush.msra.mxu0 %v899
    %2718 = vmatpush.msra.mxu0 %v898
    %2719 = vmatpush.msra.mxu0 %v897
    %2720 = vmatpush.msra.mxu0 %v896
    %2721 = vmatmul.f32.gmra.mxu0 %v1254
    %v2722 = vpop.f32.mrf.mxu0
    %v2723 = vadd.f32 %v1087, %v2722
    %2724 = vmatmul.f32.gmra.mxu0 %v1257
    %v2725 = vpop.f32.mrf.mxu0
    %v2726 = vadd.f32 %v1092, %v2725
    %2727 = vmatmul.f32.gmra.mxu0 %v1260
    %v2728 = vpop.f32.mrf.mxu0
    %v2729 = vadd.f32 %v1097, %v2728
    %2730 = vmatmul.f32.gmra.mxu0 %v1263
    %v2731 = vpop.f32.mrf.mxu0
    %v2732 = vadd.f32 %v1102, %v2731
    %2733 = vmatmul.f32.gmra.mxu0 %v1266
    %v2734 = vpop.f32.mrf.mxu0
    %v2735 = vadd.f32 %v1107, %v2734
    %2736 = vmatmul.f32.gmra.mxu0 %v1269
    %v2737 = vpop.f32.mrf.mxu0
    %v2738 = vadd.f32 %v1112, %v2737
    %2739 = vmatmul.f32.gmra.mxu0 %v1272
    %v2740 = vpop.f32.mrf.mxu0
    %v2741 = vadd.f32 %v1117, %v2740
    %2742 = vmatmul.f32.gmra.mxu0 %v1275
    %v2743 = vpop.f32.mrf.mxu0
    %v2744 = vadd.f32 %v1122, %v2743
    %2745 = vdwg.mxu0
    %v2746 = vmax.f32 %v2723, 0.0
    %v2747 = vmax.f32 %v2726, 0.0
    %v2748 = vmax.f32 %v2729, 0.0
    %v2749 = vmax.f32 %v2732, 0.0
    %v2750 = vmax.f32 %v2735, 0.0
    %v2751 = vmax.f32 %v2738, 0.0
    %v2752 = vmax.f32 %v2741, 0.0
    %v2753 = vmax.f32 %v2744, 0.0
    %v2754 = vmax.f32 %v2697, %v2746
    %v2755 = vmax.f32 %v2698, %v2747
    %v2756 = vmax.f32 %v2699, %v2748
    %v2757 = vmax.f32 %v2700, %v2749
    %v2758 = vmax.f32 %v2701, %v2750
    %v2759 = vmax.f32 %v2702, %v2751
    %v2760 = vmax.f32 %v2703, %v2752
    %v2761 = vmax.f32 %v2704, %v2753
    %v2763 = vsel %vm1489, %v1220, 0
    %v2766 = vsel %vm1489, %v1221, 0
    %v2769 = vsel %vm1489, %v1222, 0
    %v2772 = vsel %vm1489, %v1223, 0
    %v2775 = vsel %vm1489, %v1224, 0
    %v2778 = vsel %vm1489, %v1225, 0
    %v2781 = vsel %vm1489, %v1226, 0
    %v2784 = vsel %vm1489, %v1227, 0
    %v2787 = vsel %vm1489, %v1228, 0
    %v2790 = vsel %vm1489, %v1229, 0
    %v2793 = vsel %vm1489, %v1230, 0
    %v2796 = vsel %vm1489, %v1231, 0
    %v2799 = vsel %vm1489, %v1232, 0
    %v2802 = vsel %vm1489, %v1233, 0
    %v2805 = vsel %vm1489, %v1234, 0
    %v2808 = vsel %vm1489, %v1235, 0
    %2810 = vmatpush.msra.mxu0 0.0
    %2811 = vmatpush.msra.mxu0 0.0
    %2812 = vmatpush.msra.mxu0 0.0
    %2813 = vmatpush.msra.mxu0 0.0
    %2814 = vmatpush.msra.mxu0 0.0
    %2815 = vmatpush.msra.mxu0 0.0
    %2816 = vmatpush.msra.mxu0 0.0
    %2817 = vmatpush.msra.mxu0 0.0
    %2818 = vmatpush.msra.mxu0 %v2761
    %2819 = vmatpush.msra.mxu0 %v2760
    %2820 = vmatpush.msra.mxu0 %v2759
    %2821 = vmatpush.msra.mxu0 %v2758
    %2822 = vmatpush.msra.mxu0 %v2757
    %2823 = vmatpush.msra.mxu0 %v2756
    %2824 = vmatpush.msra.mxu0 %v2755
    %2825 = vmatpush.msra.mxu0 %v2754
    %2826 = vmatmul.f32.gmra.mxu0 %v2763
    %v2827 = vpop.f32.mrf.mxu0
    %v2828 = vadd.f32 0.0, %v2827
    %2829 = vmatmul.f32.gmra.mxu0 %v2766
    %v2830 = vpop.f32.mrf.mxu0
    %v2831 = vadd.f32 0.0, %v2830
    %2832 = vmatmul.f32.gmra.mxu0 %v2769
    %v2833 = vpop.f32.mrf.mxu0
    %v2834 = vadd.f32 0.0, %v2833
    %2835 = vmatmul.f32.gmra.mxu0 %v2772
    %v2836 = vpop.f32.mrf.mxu0
    %v2837 = vadd.f32 0.0, %v2836
    %2838 = vmatmul.f32.gmra.mxu0 %v2775
    %v2839 = vpop.f32.mrf.mxu0
    %v2840 = vadd.f32 0.0, %v2839
    %2841 = vmatmul.f32.gmra.mxu0 %v2778
    %v2842 = vpop.f32.mrf.mxu0
    %v2843 = vadd.f32 0.0, %v2842
    %2844 = vmatmul.f32.gmra.mxu0 %v2781
    %v2845 = vpop.f32.mrf.mxu0
    %v2846 = vadd.f32 0.0, %v2845
    %2847 = vmatmul.f32.gmra.mxu0 %v2784
    %v2848 = vpop.f32.mrf.mxu0
    %v2849 = vadd.f32 0.0, %v2848
    %2850 = vmatmul.f32.gmra.mxu0 %v2787
    %v2851 = vpop.f32.mrf.mxu0
    %v2852 = vadd.f32 0.0, %v2851
    %2853 = vmatmul.f32.gmra.mxu0 %v2790
    %v2854 = vpop.f32.mrf.mxu0
    %v2855 = vadd.f32 0.0, %v2854
    %2856 = vmatmul.f32.gmra.mxu0 %v2793
    %v2857 = vpop.f32.mrf.mxu0
    %v2858 = vadd.f32 0.0, %v2857
    %2859 = vmatmul.f32.gmra.mxu0 %v2796
    %v2860 = vpop.f32.mrf.mxu0
    %v2861 = vadd.f32 0.0, %v2860
    %2862 = vmatmul.f32.gmra.mxu0 %v2799
    %v2863 = vpop.f32.mrf.mxu0
    %v2864 = vadd.f32 0.0, %v2863
    %2865 = vmatmul.f32.gmra.mxu0 %v2802
    %v2866 = vpop.f32.mrf.mxu0
    %v2867 = vadd.f32 0.0, %v2866
    %2868 = vmatmul.f32.gmra.mxu0 %v2805
    %v2869 = vpop.f32.mrf.mxu0
    %v2870 = vadd.f32 0.0, %v2869
    %2871 = vmatmul.f32.gmra.mxu0 %v2808
    %v2872 = vpop.f32.mrf.mxu0
    %v2873 = vadd.f32 0.0, %v2872
    %2874 = vdwg.mxu0
    %v2875 = vadd.f32 %v2640, %v2828
    %v2876 = vadd.f32 %v2641, %v2831
    %v2877 = vadd.f32 %v2642, %v2834
    %v2878 = vadd.f32 %v2643, %v2837
    %v2879 = vadd.f32 %v2644, %v2840
    %v2880 = vadd.f32 %v2645, %v2843
    %v2881 = vadd.f32 %v2646, %v2846
    %v2882 = vadd.f32 %v2647, %v2849
    %v2883 = vadd.f32 %v2648, %v2852
    %v2884 = vadd.f32 %v2649, %v2855
    %v2885 = vadd.f32 %v2650, %v2858
    %v2886 = vadd.f32 %v2651, %v2861
    %v2887 = vadd.f32 %v2652, %v2864
    %v2888 = vadd.f32 %v2653, %v2867
    %v2889 = vadd.f32 %v2654, %v2870
    %v2890 = vadd.f32 %v2655, %v2873
    %2891 = vmatpush.msra.mxu0 0.0
    %2892 = vmatpush.msra.mxu0 0.0
    %2893 = vmatpush.msra.mxu0 0.0
    %2894 = vmatpush.msra.mxu0 0.0
    %2895 = vmatpush.msra.mxu0 %v1067
    %2896 = vmatpush.msra.mxu0 %v1066
    %2897 = vmatpush.msra.mxu0 %v1065
    %2898 = vmatpush.msra.mxu0 %v1064
    %2899 = vmatpush.msra.mxu0 %v1011
    %2900 = vmatpush.msra.mxu0 %v1010
    %2901 = vmatpush.msra.mxu0 %v1009
    %2902 = vmatpush.msra.mxu0 %v1008
    %2903 = vmatpush.msra.mxu0 %v955
    %2904 = vmatpush.msra.mxu0 %v954
    %2905 = vmatpush.msra.mxu0 %v953
    %2906 = vmatpush.msra.mxu0 %v952
    %2907 = vmatmul.f32.gmra.mxu0 %v1254
    %v2908 = vpop.f32.mrf.mxu0
    %v2909 = vadd.f32 %v1087, %v2908
    %2910 = vmatmul.f32.gmra.mxu0 %v1257
    %v2911 = vpop.f32.mrf.mxu0
    %v2912 = vadd.f32 %v1092, %v2911
    %2913 = vmatmul.f32.gmra.mxu0 %v1260
    %v2914 = vpop.f32.mrf.mxu0
    %v2915 = vadd.f32 %v1097, %v2914
    %2916 = vmatmul.f32.gmra.mxu0 %v1263
    %v2917 = vpop.f32.mrf.mxu0
    %v2918 = vadd.f32 %v1102, %v2917
    %2919 = vmatmul.f32.gmra.mxu0 %v1266
    %v2920 = vpop.f32.mrf.mxu0
    %v2921 = vadd.f32 %v1107, %v2920
    %2922 = vmatmul.f32.gmra.mxu0 %v1269
    %v2923 = vpop.f32.mrf.mxu0
    %v2924 = vadd.f32 %v1112, %v2923
    %2925 = vmatmul.f32.gmra.mxu0 %v1272
    %v2926 = vpop.f32.mrf.mxu0
    %v2927 = vadd.f32 %v1117, %v2926
    %2928 = vmatmul.f32.gmra.mxu0 %v1275
    %v2929 = vpop.f32.mrf.mxu0
    %v2930 = vadd.f32 %v1122, %v2929
    %2931 = vdwg.mxu0
    %v2932 = vmax.f32 %v2909, 0.0
    %v2933 = vmax.f32 %v2912, 0.0
    %v2934 = vmax.f32 %v2915, 0.0
    %v2935 = vmax.f32 %v2918, 0.0
    %v2936 = vmax.f32 %v2921, 0.0
    %v2937 = vmax.f32 %v2924, 0.0
    %v2938 = vmax.f32 %v2927, 0.0
    %v2939 = vmax.f32 %v2930, 0.0
    %2940 = vmatpush.msra.mxu0 0.0
    %2941 = vmatpush.msra.mxu0 0.0
    %2942 = vmatpush.msra.mxu0 0.0
    %2943 = vmatpush.msra.mxu0 0.0
    %2944 = vmatpush.msra.mxu0 0.0
    %2945 = vmatpush.msra.mxu0 0.0
    %2946 = vmatpush.msra.mxu0 0.0
    %2947 = vmatpush.msra.mxu0 0.0
    %2948 = vmatpush.msra.mxu0 %v1067
    %2949 = vmatpush.msra.mxu0 %v1066
    %2950 = vmatpush.msra.mxu0 %v1065
    %2951 = vmatpush.msra.mxu0 %v1064
    %2952 = vmatpush.msra.mxu0 %v1011
    %2953 = vmatpush.msra.mxu0 %v1010
    %2954 = vmatpush.msra.mxu0 %v1009
    %2955 = vmatpush.msra.mxu0 %v1008
    %2956 = vmatmul.f32.gmra.mxu0 %v1254
    %v2957 = vpop.f32.mrf.mxu0
    %v2958 = vadd.f32 %v1087, %v2957
    %2959 = vmatmul.f32.gmra.mxu0 %v1257
    %v2960 = vpop.f32.mrf.mxu0
    %v2961 = vadd.f32 %v1092, %v2960
    %2962 = vmatmul.f32.gmra.mxu0 %v1260
    %v2963 = vpop.f32.mrf.mxu0
    %v2964 = vadd.f32 %v1097, %v2963
    %2965 = vmatmul.f32.gmra.mxu0 %v1263
    %v2966 = vpop.f32.mrf.mxu0
    %v2967 = vadd.f32 %v1102, %v2966
    %2968 = vmatmul.f32.gmra.mxu0 %v1266
    %v2969 = vpop.f32.mrf.mxu0
    %v2970 = vadd.f32 %v1107, %v2969
    %2971 = vmatmul.f32.gmra.mxu0 %v1269
    %v2972 = vpop.f32.mrf.mxu0
    %v2973 = vadd.f32 %v1112, %v2972
    %2974 = vmatmul.f32.gmra.mxu0 %v1272
    %v2975 = vpop.f32.mrf.mxu0
    %v2976 = vadd.f32 %v1117, %v2975
    %2977 = vmatmul.f32.gmra.mxu0 %v1275
    %v2978 = vpop.f32.mrf.mxu0
    %v2979 = vadd.f32 %v1122, %v2978
    %2980 = vdwg.mxu0
    %v2981 = vmax.f32 %v2958, 0.0
    %v2982 = vmax.f32 %v2961, 0.0
    %v2983 = vmax.f32 %v2964, 0.0
    %v2984 = vmax.f32 %v2967, 0.0
    %v2985 = vmax.f32 %v2970, 0.0
    %v2986 = vmax.f32 %v2973, 0.0
    %v2987 = vmax.f32 %v2976, 0.0
    %v2988 = vmax.f32 %v2979, 0.0
    %v2989 = vmax.f32 %v2932, %v2981
    %v2990 = vmax.f32 %v2933, %v2982
    %v2991 = vmax.f32 %v2934, %v2983
    %v2992 = vmax.f32 %v2935, %v2984
    %v2993 = vmax.f32 %v2936, %v2985
    %v2994 = vmax.f32 %v2937, %v2986
    %v2995 = vmax.f32 %v2938, %v2987
    %v2996 = vmax.f32 %v2939, %v2988
    %v2998 = vsel %vm1489, %v1236, 0
    %v3001 = vsel %vm1489, %v1237, 0
    %v3004 = vsel %vm1489, %v1238, 0
    %v3007 = vsel %vm1489, %v1239, 0
    %v3010 = vsel %vm1489, %v1240, 0
    %v3013 = vsel %vm1489, %v1241, 0
    %v3016 = vsel %vm1489, %v1242, 0
    %v3019 = vsel %vm1489, %v1243, 0
    %v3022 = vsel %vm1489, %v1244, 0
    %v3025 = vsel %vm1489, %v1245, 0
    %v3028 = vsel %vm1489, %v1246, 0
    %v3031 = vsel %vm1489, %v1247, 0
    %v3034 = vsel %vm1489, %v1248, 0
    %v3037 = vsel %vm1489, %v1249, 0
    %v3040 = vsel %vm1489, %v1250, 0
    %v3043 = vsel %vm1489, %v1251, 0
    %3045 = vmatpush.msra.mxu0 0.0
    %3046 = vmatpush.msra.mxu0 0.0
    %3047 = vmatpush.msra.mxu0 0.0
    %3048 = vmatpush.msra.mxu0 0.0
    %3049 = vmatpush.msra.mxu0 0.0
    %3050 = vmatpush.msra.mxu0 0.0
    %3051 = vmatpush.msra.mxu0 0.0
    %3052 = vmatpush.msra.mxu0 0.0
    %3053 = vmatpush.msra.mxu0 %v2996
    %3054 = vmatpush.msra.mxu0 %v2995
    %3055 = vmatpush.msra.mxu0 %v2994
    %3056 = vmatpush.msra.mxu0 %v2993
    %3057 = vmatpush.msra.mxu0 %v2992
    %3058 = vmatpush.msra.mxu0 %v2991
    %3059 = vmatpush.msra.mxu0 %v2990
    %3060 = vmatpush.msra.mxu0 %v2989
    %3061 = vmatmul.f32.gmra.mxu0 %v2998
    %v3062 = vpop.f32.mrf.mxu0
    %v3063 = vadd.f32 0.0, %v3062
    %3064 = vmatmul.f32.gmra.mxu0 %v3001
    %v3065 = vpop.f32.mrf.mxu0
    %v3066 = vadd.f32 0.0, %v3065
    %3067 = vmatmul.f32.gmra.mxu0 %v3004
    %v3068 = vpop.f32.mrf.mxu0
    %v3069 = vadd.f32 0.0, %v3068
    %3070 = vmatmul.f32.gmra.mxu0 %v3007
    %v3071 = vpop.f32.mrf.mxu0
    %v3072 = vadd.f32 0.0, %v3071
    %3073 = vmatmul.f32.gmra.mxu0 %v3010
    %v3074 = vpop.f32.mrf.mxu0
    %v3075 = vadd.f32 0.0, %v3074
    %3076 = vmatmul.f32.gmra.mxu0 %v3013
    %v3077 = vpop.f32.mrf.mxu0
    %v3078 = vadd.f32 0.0, %v3077
    %3079 = vmatmul.f32.gmra.mxu0 %v3016
    %v3080 = vpop.f32.mrf.mxu0
    %v3081 = vadd.f32 0.0, %v3080
    %3082 = vmatmul.f32.gmra.mxu0 %v3019
    %v3083 = vpop.f32.mrf.mxu0
    %v3084 = vadd.f32 0.0, %v3083
    %3085 = vmatmul.f32.gmra.mxu0 %v3022
    %v3086 = vpop.f32.mrf.mxu0
    %v3087 = vadd.f32 0.0, %v3086
    %3088 = vmatmul.f32.gmra.mxu0 %v3025
    %v3089 = vpop.f32.mrf.mxu0
    %v3090 = vadd.f32 0.0, %v3089
    %3091 = vmatmul.f32.gmra.mxu0 %v3028
    %v3092 = vpop.f32.mrf.mxu0
    %v3093 = vadd.f32 0.0, %v3092
    %3094 = vmatmul.f32.gmra.mxu0 %v3031
    %v3095 = vpop.f32.mrf.mxu0
    %v3096 = vadd.f32 0.0, %v3095
    %3097 = vmatmul.f32.gmra.mxu0 %v3034
    %v3098 = vpop.f32.mrf.mxu0
    %v3099 = vadd.f32 0.0, %v3098
    %3100 = vmatmul.f32.gmra.mxu0 %v3037
    %v3101 = vpop.f32.mrf.mxu0
    %v3102 = vadd.f32 0.0, %v3101
    %3103 = vmatmul.f32.gmra.mxu0 %v3040
    %v3104 = vpop.f32.mrf.mxu0
    %v3105 = vadd.f32 0.0, %v3104
    %3106 = vmatmul.f32.gmra.mxu0 %v3043
    %v3107 = vpop.f32.mrf.mxu0
    %v3108 = vadd.f32 0.0, %v3107
    %3109 = vdwg.mxu0
    %v3110 = vadd.f32 %v2875, %v3063
    %v3111 = vadd.f32 %v2876, %v3066
    %v3112 = vadd.f32 %v2877, %v3069
    %v3113 = vadd.f32 %v2878, %v3072
    %v3114 = vadd.f32 %v2879, %v3075
    %v3115 = vadd.f32 %v2880, %v3078
    %v3116 = vadd.f32 %v2881, %v3081
    %v3117 = vadd.f32 %v2882, %v3084
    %v3118 = vadd.f32 %v2883, %v3087
    %v3119 = vadd.f32 %v2884, %v3090
    %v3120 = vadd.f32 %v2885, %v3093
    %v3121 = vadd.f32 %v2886, %v3096
    %v3122 = vadd.f32 %v2887, %v3099
    %v3123 = vadd.f32 %v2888, %v3102
    %v3124 = vadd.f32 %v2889, %v3105
    %v3125 = vadd.f32 %v2890, %v3108
    %v3126 = vld [vmem:[%s6] sm:$0xff]
    %v3127 = vld [vmem:[%s6 + $0x8] sm:$0xff]
    %v3128 = vld [vmem:[%s6 + $0x10] sm:$0xff]
    %v3129 = vld [vmem:[%s6 + $0x18] sm:$0xff]
    %v3130 = vld [vmem:[%s6 + $0x20] sm:$0xff]
    %v3131 = vld [vmem:[%s6 + $0x28] sm:$0xff]
    %v3132 = vld [vmem:[%s6 + $0x30] sm:$0xff]
    %v3133 = vld [vmem:[%s6 + $0x38] sm:$0xff]
    %v3134 = vld [vmem:[%s6 + $0x40] sm:$0xff]
    %v3135 = vld [vmem:[%s6 + $0x48] sm:$0xff]
    %v3136 = vld [vmem:[%s6 + $0x50] sm:$0xff]
    %v3137 = vld [vmem:[%s6 + $0x58] sm:$0xff]
    %v3138 = vld [vmem:[%s6 + $0x60] sm:$0xff]
    %v3139 = vld [vmem:[%s6 + $0x68] sm:$0xff]
    %v3140 = vld [vmem:[%s6 + $0x70] sm:$0xff]
    %v3141 = vld [vmem:[%s6 + $0x78] sm:$0xff]
    %3143 = vset.pattern.permute.xlu0 0
    %3144 = vperm.xlu0 %3143, %v3126
    %v3145 = vpop.permute.xlu0 %3144
    %3148 = vset.pattern.permute.xlu0 0
    %3149 = vperm.xlu0 %3148, %v3127
    %v3150 = vpop.permute.xlu0 %3149
    %3153 = vset.pattern.permute.xlu0 0
    %3154 = vperm.xlu0 %3153, %v3128
    %v3155 = vpop.permute.xlu0 %3154
    %3158 = vset.pattern.permute.xlu0 0
    %3159 = vperm.xlu0 %3158, %v3129
    %v3160 = vpop.permute.xlu0 %3159
    %3163 = vset.pattern.permute.xlu0 0
    %3164 = vperm.xlu0 %3163, %v3130
    %v3165 = vpop.permute.xlu0 %3164
    %3168 = vset.pattern.permute.xlu0 0
    %3169 = vperm.xlu0 %3168, %v3131
    %v3170 = vpop.permute.xlu0 %3169
    %3173 = vset.pattern.permute.xlu0 0
    %3174 = vperm.xlu0 %3173, %v3132
    %v3175 = vpop.permute.xlu0 %3174
    %3178 = vset.pattern.permute.xlu0 0
    %3179 = vperm.xlu0 %3178, %v3133
    %v3180 = vpop.permute.xlu0 %3179
    %3183 = vset.pattern.permute.xlu0 0
    %3184 = vperm.xlu0 %3183, %v3134
    %v3185 = vpop.permute.xlu0 %3184
    %3188 = vset.pattern.permute.xlu0 0
    %3189 = vperm.xlu0 %3188, %v3135
    %v3190 = vpop.permute.xlu0 %3189
    %3193 = vset.pattern.permute.xlu0 0
    %3194 = vperm.xlu0 %3193, %v3136
    %v3195 = vpop.permute.xlu0 %3194
    %3198 = vset.pattern.permute.xlu0 0
    %3199 = vperm.xlu0 %3198, %v3137
    %v3200 = vpop.permute.xlu0 %3199
    %3203 = vset.pattern.permute.xlu0 0
    %3204 = vperm.xlu0 %3203, %v3138
    %v3205 = vpop.permute.xlu0 %3204
    %3208 = vset.pattern.permute.xlu0 0
    %3209 = vperm.xlu0 %3208, %v3139
    %v3210 = vpop.permute.xlu0 %3209
    %3213 = vset.pattern.permute.xlu0 0
    %3214 = vperm.xlu0 %3213, %v3140
    %v3215 = vpop.permute.xlu0 %3214
    %3218 = vset.pattern.permute.xlu0 0
    %3219 = vperm.xlu0 %3218, %v3141
    %v3220 = vpop.permute.xlu0 %3219
    %v3222 = vadd.f32 %v3110, %v3145
    %v3223 = vadd.f32 %v3111, %v3150
    %v3224 = vadd.f32 %v3112, %v3155
    %v3225 = vadd.f32 %v3113, %v3160
    %v3226 = vadd.f32 %v3114, %v3165
    %v3227 = vadd.f32 %v3115, %v3170
    %v3228 = vadd.f32 %v3116, %v3175
    %v3229 = vadd.f32 %v3117, %v3180
    %v3230 = vadd.f32 %v3118, %v3185
    %v3231 = vadd.f32 %v3119, %v3190
    %v3232 = vadd.f32 %v3120, %v3195
    %v3233 = vadd.f32 %v3121, %v3200
    %v3234 = vadd.f32 %v3122, %v3205
    %v3235 = vadd.f32 %v3123, %v3210
    %v3236 = vadd.f32 %v3124, %v3215
    %v3237 = vadd.f32 %v3125, %v3220
    %3238 = vxpose.xlu0.b32.start [1/16] %v3222, 128
    %3239 = vxpose.xlu0.b32.cont [2/16] %v3223, 128
    %3240 = vxpose.xlu0.b32.cont [3/16] %v3224, 128
    %3241 = vxpose.xlu0.b32.cont [4/16] %v3225, 128
    %3242 = vxpose.xlu0.b32.cont [5/16] %v3226, 128
    %3243 = vxpose.xlu0.b32.cont [6/16] %v3227, 128
    %3244 = vxpose.xlu0.b32.cont [7/16] %v3228, 128
    %3245 = vxpose.xlu0.b32.cont [8/16] %v3229, 128
    %3246 = vxpose.xlu0.b32.cont [9/16] %v3230, 128
    %3247 = vxpose.xlu0.b32.cont [10/16] %v3231, 128
    %3248 = vxpose.xlu0.b32.cont [11/16] %v3232, 128
    %3249 = vxpose.xlu0.b32.cont [12/16] %v3233, 128
    %3250 = vxpose.xlu0.b32.cont [13/16] %v3234, 128
    %3251 = vxpose.xlu0.b32.cont [14/16] %v3235, 128
    %3252 = vxpose.xlu0.b32.cont [15/16] %v3236, 128
    %3253 = vxpose.xlu0.b32.end [16/16] %v3237, 128
    %v3254 = vpop.trf.xlu0
    %v3255 = vpop.trf.xlu0
    %v3256 = vpop.trf.xlu0
    %v3257 = vpop.trf.xlu0
    %v3258 = vpop.trf.xlu0
    %v3259 = vpop.trf.xlu0
    %v3260 = vpop.trf.xlu0
    %v3261 = vpop.trf.xlu0
    %v3262 = vpop.trf.xlu0
    %v3263 = vpop.trf.xlu0
    %v3264 = vpop.trf.xlu0
    %v3265 = vpop.trf.xlu0
    %v3266 = vpop.trf.xlu0
    %v3267 = vpop.trf.xlu0
    %v3268 = vpop.trf.xlu0
    %v3269 = vpop.trf.xlu0
    %3270 = vst [vmem:[#allocation2] sm:$0x3] %v3254
    // Predicated region
    $region30: #{tpu_custom_call.1} parent=1 // pred_check
      _
    $region31: #{tpu_custom_call.1} parent=1 // pred_check_branch
      %3272 = sbr.rel (0) target = $region33
    $region32: #{tpu_custom_call.1} parent=1 // pred_region
      %3274 = vsyncadd [#allocation3], 0
      %s3276 = sshll.u32 [#allocation2], 4
      %s3277 = int_to_ptr.vmem [resolvable:$true] %s3276
      %s3278 = sshll.u32 %s7, 4
      %s3279 = int_to_ptr.hbm [resolvable:$true] %s3278
      %3281 = dma.vmem_to_hbm [thread:$0]  %s3277, 32, %s3279, [#allocation3]
    $region33: #{tpu_custom_call.1} parent=1 // pred_fallthru
      _
    // Predicated region
    $region34: #{tpu_custom_call.1} parent=1 // pred_check
      _
    $region35: #{tpu_custom_call.1} parent=1 // pred_check_branch
      %3283 = sbr.rel (0) target = $region37
    $region36: #{tpu_custom_call.1} parent=1 // pred_region
      %3285 = dma.done [#allocation3], 32
    $region37: #{tpu_custom_call.1} parent=1 // pred_fallthru
      _
    %3286 = vsyncpa [#allocation3], 1

</llo_original>
